<compile_context>
chip_gen: v7x
topology: tpu7x:2x2x1
jax: 0.10.0
libtpu: 0.0.40
codegen_flags: <defaults>
</compile_context>

<pallas_src>
import functools

import jax
import jax.numpy as jnp
from jax import lax
from jax.experimental import pallas as pl
from jax.experimental.pallas import tpu as pltpu

EPS = 1e-5
NEG_SLOPE = 0.01  # nn.LeakyReLU default and the explicit final_act slope


def _round_up(x, m):
    return (x + m - 1) // m * m


def _tap_offsets(hp, wp):
    """Flat column offsets of the 27 conv taps in the padded-volume layout."""
    offs = []
    for kd in range(3):
        for kh in range(3):
            for kw in range(3):
                offs.append((kd - 1) * hp * wp + (kh - 1) * wp + (kw - 1))
    return tuple(offs)


# ----------------------------- Pallas kernels ------------------------------

def _dual_conv_kernel(p_ref, w13_ref, b1_ref, mask_ref,
                      h1_ref, r_ref, rsum_ref, rsq_ref, *, cp):
    """Fused conv1(stride2)+LeakyReLU and conv3(stride2, residual) over shared
    im2col patches: one stacked (2cp,K)@(K,TM) dot.  h1 is zeroed on the pad
    ring (so it is a correctly zero-padded volume for conv2); r's pad columns
    are exactly zero (zero patches, bias folded out), so its BN partial sums
    need no masking."""
    y = jnp.dot(w13_ref[...], p_ref[...], preferred_element_type=jnp.float32)
    y1 = y[:cp] + b1_ref[...]                      # conv1 + bias
    y3 = y[cp:]                                    # conv3 (bias cancels in BN)
    a1 = jnp.where(y1 > 0, y1, NEG_SLOPE * y1)     # LeakyReLU
    h1_ref[...] = (a1 * mask_ref[...]).astype(h1_ref.dtype)   # zero pad ring
    r_ref[...] = y3.astype(r_ref.dtype)            # bf16 store, f32 stats below
    rsum_ref[...] = jnp.sum(y3, axis=1, keepdims=True)
    rsq_ref[...] = jnp.sum(y3 * y3, axis=1, keepdims=True)


def _conv2_from_halo(hl_ref, hc_ref, hr_ref, w2_ref, *, tm, hblk, offs):
    """conv2 (3x3x3, stride 1) on the flat padded-volume layout: concatenate
    the left-halo / center / right-halo h1 tiles and accumulate 27 shifted
    (cp,cp)@(cp,TM) dots.  No HBM patch matrix is ever built."""
    x = jnp.concatenate([hl_ref[...], hc_ref[...], hr_ref[...]], axis=1)
    acc = None
    for t, off in enumerate(offs):
        s = hblk + off                             # static slice start
        part = jnp.dot(w2_ref[t], x[:, s:s + tm],
                       preferred_element_type=jnp.float32)
        acc = part if acc is None else acc + part
    return acc                                     # (cp, tm) f32


def _conv2_stats_kernel(hl_ref, hc_ref, hr_ref, w2_ref, mask_ref,
                        sum_ref, sq_ref, *, tm, hblk, offs):
    """Stats-only conv2 pass: per-tile partial BN sums; h2 never hits HBM.
    Select-masking (not multiply) so garbage in the halo pad blocks is inert."""
    y = _conv2_from_halo(hl_ref, hc_ref, hr_ref, w2_ref,
                         tm=tm, hblk=hblk, offs=offs)
    ym = jnp.where(mask_ref[...] > 0, y, 0.0)
    sum_ref[...] = jnp.sum(ym, axis=1, keepdims=True)
    sq_ref[...] = jnp.sum(ym * ym, axis=1, keepdims=True)


def _conv2_bn_add_kernel(hl_ref, hc_ref, hr_ref, r_ref, w2_ref,
                         ms_ref, mb_ref, rs_ref, rb_ref, o_ref,
                         *, tm, hblk, offs):
    """Fused conv2 (recomputed, compute is free) + BN(main) + BN(residual)
    + add + LeakyReLU epilogue."""
    y = _conv2_from_halo(hl_ref, hc_ref, hr_ref, w2_ref,
                         tm=tm, hblk=hblk, offs=offs)
    z = (y * ms_ref[...] + mb_ref[...]
         + r_ref[...].astype(jnp.float32) * rs_ref[...] + rb_ref[...])
    o_ref[...] = jnp.where(z > 0, z, NEG_SLOPE * z)


# --------------------------- pallas_call wrappers ---------------------------

def _dual_conv(p1, w13, b1, mask, cp, tm, g):
    k1p, mp2_t = p1.shape
    kern = functools.partial(_dual_conv_kernel, cp=cp)
    return pl.pallas_call(
        kern,
        out_shape=(jax.ShapeDtypeStruct((cp, mp2_t + 2 * tm), jnp.bfloat16),  # h1 (halo'd)
                   jax.ShapeDtypeStruct((cp, mp2_t), jnp.bfloat16),           # r
                   jax.ShapeDtypeStruct((g, cp, 1), jnp.float32),             # r partial sum
                   jax.ShapeDtypeStruct((g, cp, 1), jnp.float32)),            # r partial sumsq
        grid=(g,),
        in_specs=[pl.BlockSpec((k1p, tm), lambda i: (0, i)),
                  pl.BlockSpec((2 * cp, k1p), lambda i: (0, 0)),
                  pl.BlockSpec((cp, 1), lambda i: (0, 0)),
                  pl.BlockSpec((1, tm), lambda i: (0, i))],
        out_specs=(pl.BlockSpec((cp, tm), lambda i: (0, i + 1)),   # leave TM halos
                   pl.BlockSpec((cp, tm), lambda i: (0, i)),
                   pl.BlockSpec((None, cp, 1), lambda i: (i, 0, 0)),
                   pl.BlockSpec((None, cp, 1), lambda i: (i, 0, 0))),
        compiler_params=pltpu.CompilerParams(dimension_semantics=("parallel",)),
    )(p1, w13, b1, mask)


def _conv2_stats(h1g, w2t, mask, cp, tm, g, hblk, offs):
    nb = tm // hblk
    kern = functools.partial(_conv2_stats_kernel, tm=tm, hblk=hblk, offs=offs)
    return pl.pallas_call(
        kern,
        out_shape=(jax.ShapeDtypeStruct((g, cp, 1), jnp.float32),
                   jax.ShapeDtypeStruct((g, cp, 1), jnp.float32)),
        grid=(g,),
        in_specs=[pl.BlockSpec((cp, hblk), lambda i: (0, (i + 1) * nb - 1)),  # left halo
                  pl.BlockSpec((cp, tm), lambda i: (0, i + 1)),               # center
                  pl.BlockSpec((cp, hblk), lambda i: (0, (i + 2) * nb)),      # right halo
                  pl.BlockSpec((27, cp, cp), lambda i: (0, 0, 0)),
                  pl.BlockSpec((1, tm), lambda i: (0, i))],
        out_specs=(pl.BlockSpec((None, cp, 1), lambda i: (i, 0, 0)),
                   pl.BlockSpec((None, cp, 1), lambda i: (i, 0, 0))),
        compiler_params=pltpu.CompilerParams(dimension_semantics=("parallel",)),
    )(h1g, h1g, h1g, w2t, mask)


def _conv2_bn_add_act(h1g, r, w2t, ms, mb, rs, rb, cp, tm, g, hblk, offs):
    nb = tm // hblk
    mp2_t = r.shape[1]
    kern = functools.partial(_conv2_bn_add_kernel, tm=tm, hblk=hblk, offs=offs)
    return pl.pallas_call(
        kern,
        out_shape=jax.ShapeDtypeStruct((cp, mp2_t), jnp.float32),
        grid=(g,),
        in_specs=[pl.BlockSpec((cp, hblk), lambda i: (0, (i + 1) * nb - 1)),
                  pl.BlockSpec((cp, tm), lambda i: (0, i + 1)),
                  pl.BlockSpec((cp, hblk), lambda i: (0, (i + 2) * nb)),
                  pl.BlockSpec((cp, tm), lambda i: (0, i)),
                  pl.BlockSpec((27, cp, cp), lambda i: (0, 0, 0)),
                  pl.BlockSpec((cp, 1), lambda i: (0, 0)),
                  pl.BlockSpec((cp, 1), lambda i: (0, 0)),
                  pl.BlockSpec((cp, 1), lambda i: (0, 0)),
                  pl.BlockSpec((cp, 1), lambda i: (0, 0))],
        out_specs=pl.BlockSpec((cp, tm), lambda i: (0, i)),
        compiler_params=pltpu.CompilerParams(dimension_semantics=("parallel",)),
    )(h1g, h1g, h1g, r, w2t, ms, mb, rs, rb)


# ------------------------------- host glue ----------------------------------

def _extract_patches_padded(x_ncdhw):
    """Stride-2 3x3x3 im2col of x (NCDHW) -> (Cin*27, N*Dp*Hp*Wp) with columns
    in the zero-PADDED output-volume order (n, dp, hp, wp); pad-ring columns
    are all-zero patches.  Row (K) order is (c, kd, kh, kw)."""
    n, c, d, h, w = x_ncdhw.shape
    xp = jnp.pad(x_ncdhw, ((0, 0), (0, 0), (1, 1), (1, 1), (1, 1)))
    do, ho, wo = (d - 1) // 2 + 1, (h - 1) // 2 + 1, (w - 1) // 2 + 1
    taps = []
    for kd in range(3):
        for kh in range(3):
            for kw in range(3):
                taps.append(xp[:, :,
                               kd:kd + 2 * (do - 1) + 1:2,
                               kh:kh + 2 * (ho - 1) + 1:2,
                               kw:kw + 2 * (wo - 1) + 1:2])
    p = jnp.stack(taps, axis=2)                      # (N, C, 27, Do, Ho, Wo)
    p = jnp.transpose(p, (1, 2, 0, 3, 4, 5))         # (C, 27, N, Do, Ho, Wo)
    p = jnp.pad(p, ((0, 0), (0, 0), (0, 0), (1, 1), (1, 1), (1, 1)))
    dp, hp, wp = do + 2, ho + 2, wo + 2
    return p.reshape(c * 27, n * dp * hp * wp), (n, do, ho, wo)


def _prep_w(w, k_pad, cp):
    """PyTorch Conv3d weight (Cout, Cin, 3,3,3) -> bf16 (cp, k_pad)."""
    co, ci = w.shape[0], w.shape[1]
    wm = w.reshape(co, ci * 27)
    wm = jnp.pad(wm, ((0, cp - co), (0, k_pad - ci * 27)))
    return wm.astype(jnp.bfloat16)


def _prep_w2_taps(w2, cout, cp):
    """(Cout, Cin, 3,3,3) -> (27, cp, cp) bf16, tap-major (kd, kh, kw)."""
    w2p = jnp.pad(w2, ((0, cp - cout), (0, cp - cout), (0, 0), (0, 0), (0, 0)))
    return jnp.transpose(w2p, (2, 3, 4, 0, 1)).reshape(27, cp, cp).astype(jnp.bfloat16)


def _prep_b(b, cp):
    return jnp.pad(b, (0, cp - b.shape[0])).reshape(cp, 1).astype(jnp.float32)


def _bn_affine(partial_sum, partial_sq, gamma, beta, m, cout, cp):
    """Training-mode BN affine params from fused per-tile partial sums.
    Conv bias before BN cancels exactly, so it is never added anywhere.
    NOTE: E[x^2]-E[x]^2 can cancel for huge M / tiny variance; guarded >= 0."""
    s = jnp.sum(partial_sum, axis=0)[:cout, 0]
    q = jnp.sum(partial_sq, axis=0)[:cout, 0]
    mean = s / m
    var = jnp.maximum(q / m - mean * mean, 0.0)
    scale = gamma * lax.rsqrt(var + EPS)
    shift = beta - mean * scale
    scale = jnp.pad(scale, (0, cp - cout)).reshape(cp, 1).astype(jnp.float32)
    shift = jnp.pad(shift, (0, cp - cout)).reshape(cp, 1).astype(jnp.float32)
    return scale, shift


def _pick_tm(mp2, hblk):
    """Lane-tile size: up to 2048, multiple of the halo block, and >= 2 grid
    steps when possible so v7x's two TensorCores both get work."""
    tm = min(2048, _round_up(mp2, 128))
    if mp2 > 128:
        tm = min(tm, _round_up(-(-mp2 // 2), 128))
    tm = _round_up(max(tm, hblk), hblk)
    return tm


def conv_res_block(x_ncdhw, params):
    x = x_ncdhw.astype(jnp.float32)                  # NCDHW, channels-first
    n, cin, d, h, w = x.shape
    cout = params["w1"].shape[0]
    cp = _round_up(cout, 8)

    # Shared stride-2 patches, columns in padded-output-volume order.
    p1, (n_, do, ho, wo) = _extract_patches_padded(x)
    dp, hp, wp = do + 2, ho + 2, wo + 2
    mp2 = n_ * dp * hp * wp                          # padded-volume columns
    m = n_ * do * ho * wo                            # interior (valid) columns

    halo = hp * wp + wp + 1                          # max |flat tap offset|
    hblk = _round_up(halo, 128)                      # halo block width
    tm = _pick_tm(mp2, hblk)
    g = -(-mp2 // tm)
    mp2_t = g * tm

    k1 = cin * 27
    k1p = _round_up(k1, 8)
    p1 = jnp.pad(p1.astype(jnp.bfloat16), ((0, k1p - k1), (0, mp2_t - mp2)))

    # Interior mask (1 inside the volume, 0 on the pad ring / trailing pad).
    mask = jnp.pad(jnp.ones((n_, do, ho, wo), jnp.float32),
                   ((0, 0), (1, 1), (1, 1), (1, 1))).reshape(1, mp2)
    mask = jnp.pad(mask, ((0, 0), (0, mp2_t - mp2)))

    w13 = jnp.concatenate([_prep_w(params["w1"], k1p, cp),
                           _prep_w(params["w3"], k1p, cp)], axis=0)   # (2cp, k1p)
    b1 = _prep_b(params["b1"], cp)

    # conv1 (+LeakyReLU) and conv3 fused, plus residual BN partial stats.
    h1g, r, r_sum, r_sq = _dual_conv(p1, w13, b1, mask, cp, tm, g)

    # conv2 stats pass (h2 never materialized), then the fused epilogue.
    w2t = _prep_w2_taps(params["w2"], cout, cp)
    offs = _tap_offsets(hp, wp)
    h_sum, h_sq = _conv2_stats(h1g, w2t, mask, cp, tm, g, hblk, offs)

    ms, mb = _bn_affine(h_sum, h_sq, params["g_main"], params["be_main"], m, cout, cp)
    rs, rb = _bn_affine(r_sum, r_sq, params["g_res"], params["be_res"], m, cout, cp)

    out_flat = _conv2_bn_add_act(h1g, r, w2t, ms, mb, rs, rb,
                                 cp, tm, g, hblk, offs)

    out = out_flat[:cout, :mp2].reshape(cout, n_, dp, hp, wp)
    out = out[:, :, 1:1 + do, 1:1 + ho, 1:1 + wo]    # drop pad-ring columns
    return jnp.transpose(out, (1, 0, 2, 3, 4))       # NCDHW


# ------------------------- pure-JAX reference check -------------------------

def ref_forward(x_ncdhw, params):
    x = x_ncdhw.astype(jnp.float32)

    def conv(z, wt, b, stride):
        y = lax.conv_general_dilated(
            z.astype(jnp.bfloat16), wt.astype(jnp.bfloat16),
            window_strides=(stride,) * 3, padding=[(1, 1)] * 3,
            dimension_numbers=("NCDHW", "OIDHW", "NCDHW"),
            preferred_element_type=jnp.float32)
        return y + b[None, :, None, None, None]

    def bn(z, g, be):
        mean = jnp.mean(z, axis=(0, 2, 3, 4), keepdims=True)
        var = jnp.mean((z - mean) ** 2, axis=(0, 2, 3, 4), keepdims=True)
        return ((z - mean) * (g[None, :, None, None, None] * lax.rsqrt(var + EPS))
                + be[None, :, None, None, None])

    def lrelu(z):
        return jnp.where(z > 0, z, NEG_SLOPE * z)

    hh = lrelu(conv(x, params["w1"], params["b1"], 2))
    hm = bn(conv(hh, params["w2"], params["b2"], 1), params["g_main"], params["be_main"])
    rr = bn(conv(x, params["w3"], params["b3"], 2), params["g_res"], params["be_res"])
    return lrelu(hm + rr)


# ---------------------------------- main ------------------------------------

if __name__ == "__main__":
    N, Cin, Cout, D, H, W = 2, 4, 8, 8, 8, 8

    key = jax.random.PRNGKey(0)
    ks = jax.random.split(key, 10)
    params = {
        "w1": 0.1 * jax.random.normal(ks[0], (Cout, Cin, 3, 3, 3), jnp.float32),
        "b1": 0.1 * jax.random.normal(ks[1], (Cout,), jnp.float32),
        "w2": 0.1 * jax.random.normal(ks[2], (Cout, Cout, 3, 3, 3), jnp.float32),
        "b2": 0.1 * jax.random.normal(ks[3], (Cout,), jnp.float32),
        "w3": 0.1 * jax.random.normal(ks[4], (Cout, Cin, 3, 3, 3), jnp.float32),
        "b3": 0.1 * jax.random.normal(ks[5], (Cout,), jnp.float32),
        "g_main": 1.0 + 0.1 * jax.random.normal(ks[6], (Cout,), jnp.float32),
        "be_main": 0.1 * jax.random.normal(ks[7], (Cout,), jnp.float32),
        "g_res": 1.0 + 0.1 * jax.random.normal(ks[8], (Cout,), jnp.float32),
        "be_res": 0.1 * jax.random.normal(ks[9], (Cout,), jnp.float32),
    }

    x = jax.random.normal(jax.random.PRNGKey(1), (N, Cin, D, H, W), jnp.float32)

    out = jax.block_until_ready(jax.jit(conv_res_block)(x, params))
    ref = jax.block_until_ready(jax.jit(ref_forward)(x, params))

    assert out.shape == (N, Cout, D // 2, H // 2, W // 2), out.shape
    err = float(jnp.max(jnp.abs(out - ref)))
    # bf16 storage of the pre-BN residual (per the perf review) adds up to
    # ~1e-2 absolute error on ~3-sigma activations, hence atol=2e-2.
    assert jnp.allclose(out, ref, atol=2e-2, rtol=1e-2), err

    print("KERNEL_OK")
</pallas_src>

<mosaic_0001>
module attributes {stable_mosaic.version = 11 : i64} {
  func.func @_dual_conv_kernel(%arg0: i32, %arg1: memref<112x256xbf16, #tpu.memory_space<vmem>>, %arg2: memref<16x112xbf16, #tpu.memory_space<vmem>>, %arg3: memref<8x1xf32, #tpu.memory_space<vmem>>, %arg4: memref<1x256xf32, #tpu.memory_space<vmem>>, %arg5: memref<8x256xbf16, #tpu.memory_space<vmem>>, %arg6: memref<8x256xbf16, #tpu.memory_space<vmem>>, %arg7: memref<1x8x1xf32, #tpu.memory_space<vmem>>, %arg8: memref<1x8x1xf32, #tpu.memory_space<vmem>>) attributes {dimension_semantics = [#tpu.dimension_semantics<parallel>], iteration_bounds = array<i64: 2>, scalar_prefetch = 0 : i64, scratch_operands = 0 : i64, tpu.core_type = #tpu.core_type<tc>, window_params = [{transform_indices = @transform_0, window_bounds = array<i64: 112, 256>}, {pipeline_mode = #tpu.pipeline_mode<synchronous>, transform_indices = @transform_1, window_bounds = array<i64: 16, 112>}, {pipeline_mode = #tpu.pipeline_mode<synchronous>, transform_indices = @transform_2, window_bounds = array<i64: 8, 1>}, {transform_indices = @transform_3, window_bounds = array<i64: 1, 256>}, {transform_indices = @transform_4, window_bounds = array<i64: 8, 256>}, {transform_indices = @transform_5, window_bounds = array<i64: 8, 256>}, {transform_indices = @transform_6, window_bounds = array<i64: 1, 8, 1>}, {transform_indices = @transform_7, window_bounds = array<i64: 1, 8, 1>}]} {
    %c0 = arith.constant 0 : index
    %c0_0 = arith.constant 0 : index
    %0 = vector.load %arg2[%c0, %c0_0] : memref<16x112xbf16, #tpu.memory_space<vmem>>, vector<16x112xbf16>
    %c0_1 = arith.constant 0 : index
    %c0_2 = arith.constant 0 : index
    %1 = vector.load %arg1[%c0_1, %c0_2] : memref<112x256xbf16, #tpu.memory_space<vmem>>, vector<112x256xbf16>
    %cst = arith.constant dense<0.000000e+00> : vector<16x256xf32>
    %2 = tpu.matmul %0, %1, %cst {dimension_numbers = #tpu.dot_dimension_numbers<[1], [0], [0], [1], [0, 0, 1, 1], [], []>} : vector<16x112xbf16>, vector<112x256xbf16>, vector<16x256xf32> -> vector<16x256xf32>
    %3 = vector.extract_strided_slice %2 {offsets = [0, 0], sizes = [8, 256], strides = [1, 1]} : vector<16x256xf32> to vector<8x256xf32>
    %c0_3 = arith.constant 0 : index
    %c0_4 = arith.constant 0 : index
    %4 = vector.load %arg3[%c0_3, %c0_4] : memref<8x1xf32, #tpu.memory_space<vmem>>, vector<8x1xf32>
    %5 = vector.broadcast %4 : vector<8x1xf32> to vector<8x256xf32>
    %6 = arith.addf %3, %5 : vector<8x256xf32>
    %7 = vector.extract_strided_slice %2 {offsets = [8, 0], sizes = [8, 256], strides = [1, 1]} : vector<16x256xf32> to vector<8x256xf32>
    %cst_5 = arith.constant 0.000000e+00 : f32
    %8 = vector.broadcast %cst_5 : f32 to vector<8x256xf32>
    %9 = arith.cmpf ogt, %6, %8 : vector<8x256xf32>
    %cst_6 = arith.constant 0.00999999977 : f32
    %10 = vector.broadcast %cst_6 : f32 to vector<8x256xf32>
    %11 = arith.mulf %10, %6 : vector<8x256xf32>
    %12 = arith.select %9, %6, %11 : vector<8x256xi1>, vector<8x256xf32>
    %c0_7 = arith.constant 0 : index
    %c0_8 = arith.constant 0 : index
    %13 = vector.load %arg4[%c0_7, %c0_8] : memref<1x256xf32, #tpu.memory_space<vmem>>, vector<1x256xf32>
    %14 = vector.broadcast %13 : vector<1x256xf32> to vector<8x256xf32>
    %15 = arith.mulf %12, %14 : vector<8x256xf32>
    %16 = arith.truncf %15 : vector<8x256xf32> to vector<8x256xbf16>
    %c0_9 = arith.constant 0 : index
    %c0_10 = arith.constant 0 : index
    %17 = vector.load %arg5[%c0_9, %c0_10] : memref<8x256xbf16, #tpu.memory_space<vmem>>, vector<8x256xbf16>
    tpu.vector_store %arg5[%c0_9, %c0_10], %16 {strides = array<i32>} : memref<8x256xbf16, #tpu.memory_space<vmem>>, vector<8x256xbf16>,
    %18 = arith.truncf %7 : vector<8x256xf32> to vector<8x256xbf16>
    %c0_11 = arith.constant 0 : index
    %c0_12 = arith.constant 0 : index
    %19 = vector.load %arg6[%c0_11, %c0_12] : memref<8x256xbf16, #tpu.memory_space<vmem>>, vector<8x256xbf16>
    tpu.vector_store %arg6[%c0_11, %c0_12], %18 {strides = array<i32>} : memref<8x256xbf16, #tpu.memory_space<vmem>>, vector<8x256xbf16>,
    %cst_13 = arith.constant dense<0.000000e+00> : vector<8xf32>
    %20 = vector.multi_reduction <add>, %7, %cst_13 [1] : vector<8x256xf32> to vector<8xf32>
    %21 = vector.shape_cast %20 : vector<8xf32> to vector<8x1xf32>
    %c0_14 = arith.constant 0 : index
    %c0_15 = arith.constant 0 : index
    %c0_16 = arith.constant 0 : index
    %22 = vector.load %arg7[%c0_14, %c0_15, %c0_16] : memref<1x8x1xf32, #tpu.memory_space<vmem>>, vector<1x8x1xf32>
    %23 = vector.shape_cast %22 : vector<1x8x1xf32> to vector<8x1xf32>
    %24 = vector.shape_cast %21 : vector<8x1xf32> to vector<1x8x1xf32>
    tpu.vector_store %arg7[%c0_14, %c0_15, %c0_16], %24 {strides = array<i32>} : memref<1x8x1xf32, #tpu.memory_space<vmem>>, vector<1x8x1xf32>,
    %25 = arith.mulf %7, %7 : vector<8x256xf32>
    %cst_17 = arith.constant dense<0.000000e+00> : vector<8xf32>
    %26 = vector.multi_reduction <add>, %25, %cst_17 [1] : vector<8x256xf32> to vector<8xf32>
    %27 = vector.shape_cast %26 : vector<8xf32> to vector<8x1xf32>
    %c0_18 = arith.constant 0 : index
    %c0_19 = arith.constant 0 : index
    %c0_20 = arith.constant 0 : index
    %28 = vector.load %arg8[%c0_18, %c0_19, %c0_20] : memref<1x8x1xf32, #tpu.memory_space<vmem>>, vector<1x8x1xf32>
    %29 = vector.shape_cast %28 : vector<1x8x1xf32> to vector<8x1xf32>
    %30 = vector.shape_cast %27 : vector<8x1xf32> to vector<1x8x1xf32>
    tpu.vector_store %arg8[%c0_18, %c0_19, %c0_20], %30 {strides = array<i32>} : memref<1x8x1xf32, #tpu.memory_space<vmem>>, vector<1x8x1xf32>,
    return
  }
  func.func @transform_0(%arg0: i32) -> (i32, i32) {
    %c0_i32 = arith.constant 0 : i32
    %c0_i32_0 = arith.constant 0 : i32
    return %c0_i32, %arg0 : i32, i32
  }
  func.func @transform_1(%arg0: i32) -> (i32, i32) {
    %c0_i32 = arith.constant 0 : i32
    %c0_i32_0 = arith.constant 0 : i32
    %c0_i32_1 = arith.constant 0 : i32
    return %c0_i32, %c0_i32_0 : i32, i32
  }
  func.func @transform_2(%arg0: i32) -> (i32, i32) {
    %c0_i32 = arith.constant 0 : i32
    %c0_i32_0 = arith.constant 0 : i32
    %c0_i32_1 = arith.constant 0 : i32
    return %c0_i32, %c0_i32_0 : i32, i32
  }
  func.func @transform_3(%arg0: i32) -> (i32, i32) {
    %c0_i32 = arith.constant 0 : i32
    %c0_i32_0 = arith.constant 0 : i32
    return %c0_i32, %arg0 : i32, i32
  }
  func.func @transform_4(%arg0: i32) -> (i32, i32) {
    %c1_i32 = arith.constant 1 : i32
    %0 = arith.addi %arg0, %c1_i32 : i32
    %c0_i32 = arith.constant 0 : i32
    %c0_i32_0 = arith.constant 0 : i32
    return %c0_i32, %0 : i32, i32
  }
  func.func @transform_5(%arg0: i32) -> (i32, i32) {
    %c0_i32 = arith.constant 0 : i32
    %c0_i32_0 = arith.constant 0 : i32
    return %c0_i32, %arg0 : i32, i32
  }
  func.func @transform_6(%arg0: i32) -> (i32, i32, i32) {
    %c0_i32 = arith.constant 0 : i32
    %c0_i32_0 = arith.constant 0 : i32
    %c0_i32_1 = arith.constant 0 : i32
    return %arg0, %c0_i32, %c0_i32_0 : i32, i32, i32
  }
  func.func @transform_7(%arg0: i32) -> (i32, i32, i32) {
    %c0_i32 = arith.constant 0 : i32
    %c0_i32_0 = arith.constant 0 : i32
    %c0_i32_1 = arith.constant 0 : i32
    return %arg0, %c0_i32, %c0_i32_0 : i32, i32, i32
  }
}

module attributes {stable_mosaic.version = 11 : i64} {
  func.func @_conv2_stats_kernel(%arg0: i32, %arg1: memref<8x128xbf16, #tpu.memory_space<vmem>>, %arg2: memref<8x256xbf16, #tpu.memory_space<vmem>>, %arg3: memref<8x128xbf16, #tpu.memory_space<vmem>>, %arg4: memref<27x8x8xbf16, #tpu.memory_space<vmem>>, %arg5: memref<1x256xf32, #tpu.memory_space<vmem>>, %arg6: memref<1x8x1xf32, #tpu.memory_space<vmem>>, %arg7: memref<1x8x1xf32, #tpu.memory_space<vmem>>) attributes {dimension_semantics = [#tpu.dimension_semantics<parallel>], iteration_bounds = array<i64: 2>, scalar_prefetch = 0 : i64, scratch_operands = 0 : i64, tpu.core_type = #tpu.core_type<tc>, window_params = [{transform_indices = @transform_0, window_bounds = array<i64: 8, 128>}, {transform_indices = @transform_1, window_bounds = array<i64: 8, 256>}, {transform_indices = @transform_2, window_bounds = array<i64: 8, 128>}, {pipeline_mode = #tpu.pipeline_mode<synchronous>, transform_indices = @transform_3, window_bounds = array<i64: 27, 8, 8>}, {transform_indices = @transform_4, window_bounds = array<i64: 1, 256>}, {transform_indices = @transform_5, window_bounds = array<i64: 1, 8, 1>}, {transform_indices = @transform_6, window_bounds = array<i64: 1, 8, 1>}]} {
    %c0 = arith.constant 0 : index
    %c0_0 = arith.constant 0 : index
    %0 = vector.load %arg1[%c0, %c0_0] : memref<8x128xbf16, #tpu.memory_space<vmem>>, vector<8x128xbf16>
    %c0_1 = arith.constant 0 : index
    %c0_2 = arith.constant 0 : index
    %1 = vector.load %arg2[%c0_1, %c0_2] : memref<8x256xbf16, #tpu.memory_space<vmem>>, vector<8x256xbf16>
    %c0_3 = arith.constant 0 : index
    %c0_4 = arith.constant 0 : index
    %2 = vector.load %arg3[%c0_3, %c0_4] : memref<8x128xbf16, #tpu.memory_space<vmem>>, vector<8x128xbf16>
    %3 = tpu.concatenate %0, %1, %2 in 1 : vector<8x128xbf16>, vector<8x256xbf16>, vector<8x128xbf16> -> vector<8x512xbf16>
    %c0_5 = arith.constant 0 : index
    %c0_6 = arith.constant 0 : index
    %c0_7 = arith.constant 0 : index
    %4 = vector.load %arg4[%c0_5, %c0_6, %c0_7] : memref<27x8x8xbf16, #tpu.memory_space<vmem>>, vector<1x8x8xbf16>
    %5 = vector.shape_cast %4 : vector<1x8x8xbf16> to vector<8x8xbf16>
    %6 = vector.extract_strided_slice %3 {offsets = [0, 85], sizes = [8, 256], strides = [1, 1]} : vector<8x512xbf16> to vector<8x256xbf16>
    %cst = arith.constant dense<0.000000e+00> : vector<8x256xf32>
    %7 = tpu.matmul %5, %6, %cst {dimension_numbers = #tpu.dot_dimension_numbers<[1], [0], [0], [1], [0, 0, 1, 1], [], []>} : vector<8x8xbf16>, vector<8x256xbf16>, vector<8x256xf32> -> vector<8x256xf32>
    %c1 = arith.constant 1 : index
    %c0_8 = arith.constant 0 : index
    %c0_9 = arith.constant 0 : index
    %8 = vector.load %arg4[%c1, %c0_8, %c0_9] : memref<27x8x8xbf16, #tpu.memory_space<vmem>>, vector<1x8x8xbf16>
    %9 = vector.shape_cast %8 : vector<1x8x8xbf16> to vector<8x8xbf16>
    %10 = vector.extract_strided_slice %3 {offsets = [0, 86], sizes = [8, 256], strides = [1, 1]} : vector<8x512xbf16> to vector<8x256xbf16>
    %cst_10 = arith.constant dense<0.000000e+00> : vector<8x256xf32>
    %11 = tpu.matmul %9, %10, %cst_10 {dimension_numbers = #tpu.dot_dimension_numbers<[1], [0], [0], [1], [0, 0, 1, 1], [], []>} : vector<8x8xbf16>, vector<8x256xbf16>, vector<8x256xf32> -> vector<8x256xf32>
    %12 = arith.addf %7, %11 : vector<8x256xf32>
    %c2 = arith.constant 2 : index
    %c0_11 = arith.constant 0 : index
    %c0_12 = arith.constant 0 : index
    %13 = vector.load %arg4[%c2, %c0_11, %c0_12] : memref<27x8x8xbf16, #tpu.memory_space<vmem>>, vector<1x8x8xbf16>
    %14 = vector.shape_cast %13 : vector<1x8x8xbf16> to vector<8x8xbf16>
    %15 = vector.extract_strided_slice %3 {offsets = [0, 87], sizes = [8, 256], strides = [1, 1]} : vector<8x512xbf16> to vector<8x256xbf16>
    %cst_13 = arith.constant dense<0.000000e+00> : vector<8x256xf32>
    %16 = tpu.matmul %14, %15, %cst_13 {dimension_numbers = #tpu.dot_dimension_numbers<[1], [0], [0], [1], [0, 0, 1, 1], [], []>} : vector<8x8xbf16>, vector<8x256xbf16>, vector<8x256xf32> -> vector<8x256xf32>
    %17 = arith.addf %12, %16 : vector<8x256xf32>
    %c3 = arith.constant 3 : index
    %c0_14 = arith.constant 0 : index
    %c0_15 = arith.constant 0 : index
    %18 = vector.load %arg4[%c3, %c0_14, %c0_15] : memref<27x8x8xbf16, #tpu.memory_space<vmem>>, vector<1x8x8xbf16>
    %19 = vector.shape_cast %18 : vector<1x8x8xbf16> to vector<8x8xbf16>
    %20 = vector.extract_strided_slice %3 {offsets = [0, 91], sizes = [8, 256], strides = [1, 1]} : vector<8x512xbf16> to vector<8x256xbf16>
    %cst_16 = arith.constant dense<0.000000e+00> : vector<8x256xf32>
    %21 = tpu.matmul %19, %20, %cst_16 {dimension_numbers = #tpu.dot_dimension_numbers<[1], [0], [0], [1], [0, 0, 1, 1], [], []>} : vector<8x8xbf16>, vector<8x256xbf16>, vector<8x256xf32> -> vector<8x256xf32>
    %22 = arith.addf %17, %21 : vector<8x256xf32>
    %c4 = arith.constant 4 : index
    %c0_17 = arith.constant 0 : index
    %c0_18 = arith.constant 0 : index
    %23 = vector.load %arg4[%c4, %c0_17, %c0_18] : memref<27x8x8xbf16, #tpu.memory_space<vmem>>, vector<1x8x8xbf16>
    %24 = vector.shape_cast %23 : vector<1x8x8xbf16> to vector<8x8xbf16>
    %25 = vector.extract_strided_slice %3 {offsets = [0, 92], sizes = [8, 256], strides = [1, 1]} : vector<8x512xbf16> to vector<8x256xbf16>
    %cst_19 = arith.constant dense<0.000000e+00> : vector<8x256xf32>
    %26 = tpu.matmul %24, %25, %cst_19 {dimension_numbers = #tpu.dot_dimension_numbers<[1], [0], [0], [1], [0, 0, 1, 1], [], []>} : vector<8x8xbf16>, vector<8x256xbf16>, vector<8x256xf32> -> vector<8x256xf32>
    %27 = arith.addf %22, %26 : vector<8x256xf32>
    %c5 = arith.constant 5 : index
    %c0_20 = arith.constant 0 : index
    %c0_21 = arith.constant 0 : index
    %28 = vector.load %arg4[%c5, %c0_20, %c0_21] : memref<27x8x8xbf16, #tpu.memory_space<vmem>>, vector<1x8x8xbf16>
    %29 = vector.shape_cast %28 : vector<1x8x8xbf16> to vector<8x8xbf16>
    %30 = vector.extract_strided_slice %3 {offsets = [0, 93], sizes = [8, 256], strides = [1, 1]} : vector<8x512xbf16> to vector<8x256xbf16>
    %cst_22 = arith.constant dense<0.000000e+00> : vector<8x256xf32>
    %31 = tpu.matmul %29, %30, %cst_22 {dimension_numbers = #tpu.dot_dimension_numbers<[1], [0], [0], [1], [0, 0, 1, 1], [], []>} : vector<8x8xbf16>, vector<8x256xbf16>, vector<8x256xf32> -> vector<8x256xf32>
    %32 = arith.addf %27, %31 : vector<8x256xf32>
    %c6 = arith.constant 6 : index
    %c0_23 = arith.constant 0 : index
    %c0_24 = arith.constant 0 : index
    %33 = vector.load %arg4[%c6, %c0_23, %c0_24] : memref<27x8x8xbf16, #tpu.memory_space<vmem>>, vector<1x8x8xbf16>
    %34 = vector.shape_cast %33 : vector<1x8x8xbf16> to vector<8x8xbf16>
    %35 = vector.extract_strided_slice %3 {offsets = [0, 97], sizes = [8, 256], strides = [1, 1]} : vector<8x512xbf16> to vector<8x256xbf16>
    %cst_25 = arith.constant dense<0.000000e+00> : vector<8x256xf32>
    %36 = tpu.matmul %34, %35, %cst_25 {dimension_numbers = #tpu.dot_dimension_numbers<[1], [0], [0], [1], [0, 0, 1, 1], [], []>} : vector<8x8xbf16>, vector<8x256xbf16>, vector<8x256xf32> -> vector<8x256xf32>
    %37 = arith.addf %32, %36 : vector<8x256xf32>
    %c7 = arith.constant 7 : index
    %c0_26 = arith.constant 0 : index
    %c0_27 = arith.constant 0 : index
    %38 = vector.load %arg4[%c7, %c0_26, %c0_27] : memref<27x8x8xbf16, #tpu.memory_space<vmem>>, vector<1x8x8xbf16>
    %39 = vector.shape_cast %38 : vector<1x8x8xbf16> to vector<8x8xbf16>
    %40 = vector.extract_strided_slice %3 {offsets = [0, 98], sizes = [8, 256], strides = [1, 1]} : vector<8x512xbf16> to vector<8x256xbf16>
    %cst_28 = arith.constant dense<0.000000e+00> : vector<8x256xf32>
    %41 = tpu.matmul %39, %40, %cst_28 {dimension_numbers = #tpu.dot_dimension_numbers<[1], [0], [0], [1], [0, 0, 1, 1], [], []>} : vector<8x8xbf16>, vector<8x256xbf16>, vector<8x256xf32> -> vector<8x256xf32>
    %42 = arith.addf %37, %41 : vector<8x256xf32>
    %c8 = arith.constant 8 : index
    %c0_29 = arith.constant 0 : index
    %c0_30 = arith.constant 0 : index
    %43 = vector.load %arg4[%c8, %c0_29, %c0_30] : memref<27x8x8xbf16, #tpu.memory_space<vmem>>, vector<1x8x8xbf16>
    %44 = vector.shape_cast %43 : vector<1x8x8xbf16> to vector<8x8xbf16>
    %45 = vector.extract_strided_slice %3 {offsets = [0, 99], sizes = [8, 256], strides = [1, 1]} : vector<8x512xbf16> to vector<8x256xbf16>
    %cst_31 = arith.constant dense<0.000000e+00> : vector<8x256xf32>
    %46 = tpu.matmul %44, %45, %cst_31 {dimension_numbers = #tpu.dot_dimension_numbers<[1], [0], [0], [1], [0, 0, 1, 1], [], []>} : vector<8x8xbf16>, vector<8x256xbf16>, vector<8x256xf32> -> vector<8x256xf32>
    %47 = arith.addf %42, %46 : vector<8x256xf32>
    %c9 = arith.constant 9 : index
    %c0_32 = arith.constant 0 : index
    %c0_33 = arith.constant 0 : index
    %48 = vector.load %arg4[%c9, %c0_32, %c0_33] : memref<27x8x8xbf16, #tpu.memory_space<vmem>>, vector<1x8x8xbf16>
    %49 = vector.shape_cast %48 : vector<1x8x8xbf16> to vector<8x8xbf16>
    %50 = vector.extract_strided_slice %3 {offsets = [0, 121], sizes = [8, 256], strides = [1, 1]} : vector<8x512xbf16> to vector<8x256xbf16>
    %cst_34 = arith.constant dense<0.000000e+00> : vector<8x256xf32>
    %51 = tpu.matmul %49, %50, %cst_34 {dimension_numbers = #tpu.dot_dimension_numbers<[1], [0], [0], [1], [0, 0, 1, 1], [], []>} : vector<8x8xbf16>, vector<8x256xbf16>, vector<8x256xf32> -> vector<8x256xf32>
    %52 = arith.addf %47, %51 : vector<8x256xf32>
    %c10 = arith.constant 10 : index
    %c0_35 = arith.constant 0 : index
    %c0_36 = arith.constant 0 : index
    %53 = vector.load %arg4[%c10, %c0_35, %c0_36] : memref<27x8x8xbf16, #tpu.memory_space<vmem>>, vector<1x8x8xbf16>
    %54 = vector.shape_cast %53 : vector<1x8x8xbf16> to vector<8x8xbf16>
    %55 = vector.extract_strided_slice %3 {offsets = [0, 122], sizes = [8, 256], strides = [1, 1]} : vector<8x512xbf16> to vector<8x256xbf16>
    %cst_37 = arith.constant dense<0.000000e+00> : vector<8x256xf32>
    %56 = tpu.matmul %54, %55, %cst_37 {dimension_numbers = #tpu.dot_dimension_numbers<[1], [0], [0], [1], [0, 0, 1, 1], [], []>} : vector<8x8xbf16>, vector<8x256xbf16>, vector<8x256xf32> -> vector<8x256xf32>
    %57 = arith.addf %52, %56 : vector<8x256xf32>
    %c11 = arith.constant 11 : index
    %c0_38 = arith.constant 0 : index
    %c0_39 = arith.constant 0 : index
    %58 = vector.load %arg4[%c11, %c0_38, %c0_39] : memref<27x8x8xbf16, #tpu.memory_space<vmem>>, vector<1x8x8xbf16>
    %59 = vector.shape_cast %58 : vector<1x8x8xbf16> to vector<8x8xbf16>
    %60 = vector.extract_strided_slice %3 {offsets = [0, 123], sizes = [8, 256], strides = [1, 1]} : vector<8x512xbf16> to vector<8x256xbf16>
    %cst_40 = arith.constant dense<0.000000e+00> : vector<8x256xf32>
    %61 = tpu.matmul %59, %60, %cst_40 {dimension_numbers = #tpu.dot_dimension_numbers<[1], [0], [0], [1], [0, 0, 1, 1], [], []>} : vector<8x8xbf16>, vector<8x256xbf16>, vector<8x256xf32> -> vector<8x256xf32>
    %62 = arith.addf %57, %61 : vector<8x256xf32>
    %c12 = arith.constant 12 : index
    %c0_41 = arith.constant 0 : index
    %c0_42 = arith.constant 0 : index
    %63 = vector.load %arg4[%c12, %c0_41, %c0_42] : memref<27x8x8xbf16, #tpu.memory_space<vmem>>, vector<1x8x8xbf16>
    %64 = vector.shape_cast %63 : vector<1x8x8xbf16> to vector<8x8xbf16>
    %65 = vector.extract_strided_slice %3 {offsets = [0, 127], sizes = [8, 256], strides = [1, 1]} : vector<8x512xbf16> to vector<8x256xbf16>
    %cst_43 = arith.constant dense<0.000000e+00> : vector<8x256xf32>
    %66 = tpu.matmul %64, %65, %cst_43 {dimension_numbers = #tpu.dot_dimension_numbers<[1], [0], [0], [1], [0, 0, 1, 1], [], []>} : vector<8x8xbf16>, vector<8x256xbf16>, vector<8x256xf32> -> vector<8x256xf32>
    %67 = arith.addf %62, %66 : vector<8x256xf32>
    %c13 = arith.constant 13 : index
    %c0_44 = arith.constant 0 : index
    %c0_45 = arith.constant 0 : index
    %68 = vector.load %arg4[%c13, %c0_44, %c0_45] : memref<27x8x8xbf16, #tpu.memory_space<vmem>>, vector<1x8x8xbf16>
    %69 = vector.shape_cast %68 : vector<1x8x8xbf16> to vector<8x8xbf16>
    %70 = vector.extract_strided_slice %3 {offsets = [0, 128], sizes = [8, 256], strides = [1, 1]} : vector<8x512xbf16> to vector<8x256xbf16>
    %cst_46 = arith.constant dense<0.000000e+00> : vector<8x256xf32>
    %71 = tpu.matmul %69, %70, %cst_46 {dimension_numbers = #tpu.dot_dimension_numbers<[1], [0], [0], [1], [0, 0, 1, 1], [], []>} : vector<8x8xbf16>, vector<8x256xbf16>, vector<8x256xf32> -> vector<8x256xf32>
    %72 = arith.addf %67, %71 : vector<8x256xf32>
    %c14 = arith.constant 14 : index
    %c0_47 = arith.constant 0 : index
    %c0_48 = arith.constant 0 : index
    %73 = vector.load %arg4[%c14, %c0_47, %c0_48] : memref<27x8x8xbf16, #tpu.memory_space<vmem>>, vector<1x8x8xbf16>
    %74 = vector.shape_cast %73 : vector<1x8x8xbf16> to vector<8x8xbf16>
    %75 = vector.extract_strided_slice %3 {offsets = [0, 129], sizes = [8, 256], strides = [1, 1]} : vector<8x512xbf16> to vector<8x256xbf16>
    %cst_49 = arith.constant dense<0.000000e+00> : vector<8x256xf32>
    %76 = tpu.matmul %74, %75, %cst_49 {dimension_numbers = #tpu.dot_dimension_numbers<[1], [0], [0], [1], [0, 0, 1, 1], [], []>} : vector<8x8xbf16>, vector<8x256xbf16>, vector<8x256xf32> -> vector<8x256xf32>
    %77 = arith.addf %72, %76 : vector<8x256xf32>
    %c15 = arith.constant 15 : index
    %c0_50 = arith.constant 0 : index
    %c0_51 = arith.constant 0 : index
    %78 = vector.load %arg4[%c15, %c0_50, %c0_51] : memref<27x8x8xbf16, #tpu.memory_space<vmem>>, vector<1x8x8xbf16>
    %79 = vector.shape_cast %78 : vector<1x8x8xbf16> to vector<8x8xbf16>
    %80 = vector.extract_strided_slice %3 {offsets = [0, 133], sizes = [8, 256], strides = [1, 1]} : vector<8x512xbf16> to vector<8x256xbf16>
    %cst_52 = arith.constant dense<0.000000e+00> : vector<8x256xf32>
    %81 = tpu.matmul %79, %80, %cst_52 {dimension_numbers = #tpu.dot_dimension_numbers<[1], [0], [0], [1], [0, 0, 1, 1], [], []>} : vector<8x8xbf16>, vector<8x256xbf16>, vector<8x256xf32> -> vector<8x256xf32>
    %82 = arith.addf %77, %81 : vector<8x256xf32>
    %c16 = arith.constant 16 : index
    %c0_53 = arith.constant 0 : index
    %c0_54 = arith.constant 0 : index
    %83 = vector.load %arg4[%c16, %c0_53, %c0_54] : memref<27x8x8xbf16, #tpu.memory_space<vmem>>, vector<1x8x8xbf16>
    %84 = vector.shape_cast %83 : vector<1x8x8xbf16> to vector<8x8xbf16>
    %85 = vector.extract_strided_slice %3 {offsets = [0, 134], sizes = [8, 256], strides = [1, 1]} : vector<8x512xbf16> to vector<8x256xbf16>
    %cst_55 = arith.constant dense<0.000000e+00> : vector<8x256xf32>
    %86 = tpu.matmul %84, %85, %cst_55 {dimension_numbers = #tpu.dot_dimension_numbers<[1], [0], [0], [1], [0, 0, 1, 1], [], []>} : vector<8x8xbf16>, vector<8x256xbf16>, vector<8x256xf32> -> vector<8x256xf32>
    %87 = arith.addf %82, %86 : vector<8x256xf32>
    %c17 = arith.constant 17 : index
    %c0_56 = arith.constant 0 : index
    %c0_57 = arith.constant 0 : index
    %88 = vector.load %arg4[%c17, %c0_56, %c0_57] : memref<27x8x8xbf16, #tpu.memory_space<vmem>>, vector<1x8x8xbf16>
    %89 = vector.shape_cast %88 : vector<1x8x8xbf16> to vector<8x8xbf16>
    %90 = vector.extract_strided_slice %3 {offsets = [0, 135], sizes = [8, 256], strides = [1, 1]} : vector<8x512xbf16> to vector<8x256xbf16>
    %cst_58 = arith.constant dense<0.000000e+00> : vector<8x256xf32>
    %91 = tpu.matmul %89, %90, %cst_58 {dimension_numbers = #tpu.dot_dimension_numbers<[1], [0], [0], [1], [0, 0, 1, 1], [], []>} : vector<8x8xbf16>, vector<8x256xbf16>, vector<8x256xf32> -> vector<8x256xf32>
    %92 = arith.addf %87, %91 : vector<8x256xf32>
    %c18 = arith.constant 18 : index
    %c0_59 = arith.constant 0 : index
    %c0_60 = arith.constant 0 : index
    %93 = vector.load %arg4[%c18, %c0_59, %c0_60] : memref<27x8x8xbf16, #tpu.memory_space<vmem>>, vector<1x8x8xbf16>
    %94 = vector.shape_cast %93 : vector<1x8x8xbf16> to vector<8x8xbf16>
    %95 = vector.extract_strided_slice %3 {offsets = [0, 157], sizes = [8, 256], strides = [1, 1]} : vector<8x512xbf16> to vector<8x256xbf16>
    %cst_61 = arith.constant dense<0.000000e+00> : vector<8x256xf32>
    %96 = tpu.matmul %94, %95, %cst_61 {dimension_numbers = #tpu.dot_dimension_numbers<[1], [0], [0], [1], [0, 0, 1, 1], [], []>} : vector<8x8xbf16>, vector<8x256xbf16>, vector<8x256xf32> -> vector<8x256xf32>
    %97 = arith.addf %92, %96 : vector<8x256xf32>
    %c19 = arith.constant 19 : index
    %c0_62 = arith.constant 0 : index
    %c0_63 = arith.constant 0 : index
    %98 = vector.load %arg4[%c19, %c0_62, %c0_63] : memref<27x8x8xbf16, #tpu.memory_space<vmem>>, vector<1x8x8xbf16>
    %99 = vector.shape_cast %98 : vector<1x8x8xbf16> to vector<8x8xbf16>
    %100 = vector.extract_strided_slice %3 {offsets = [0, 158], sizes = [8, 256], strides = [1, 1]} : vector<8x512xbf16> to vector<8x256xbf16>
    %cst_64 = arith.constant dense<0.000000e+00> : vector<8x256xf32>
    %101 = tpu.matmul %99, %100, %cst_64 {dimension_numbers = #tpu.dot_dimension_numbers<[1], [0], [0], [1], [0, 0, 1, 1], [], []>} : vector<8x8xbf16>, vector<8x256xbf16>, vector<8x256xf32> -> vector<8x256xf32>
    %102 = arith.addf %97, %101 : vector<8x256xf32>
    %c20 = arith.constant 20 : index
    %c0_65 = arith.constant 0 : index
    %c0_66 = arith.constant 0 : index
    %103 = vector.load %arg4[%c20, %c0_65, %c0_66] : memref<27x8x8xbf16, #tpu.memory_space<vmem>>, vector<1x8x8xbf16>
    %104 = vector.shape_cast %103 : vector<1x8x8xbf16> to vector<8x8xbf16>
    %105 = vector.extract_strided_slice %3 {offsets = [0, 159], sizes = [8, 256], strides = [1, 1]} : vector<8x512xbf16> to vector<8x256xbf16>
    %cst_67 = arith.constant dense<0.000000e+00> : vector<8x256xf32>
    %106 = tpu.matmul %104, %105, %cst_67 {dimension_numbers = #tpu.dot_dimension_numbers<[1], [0], [0], [1], [0, 0, 1, 1], [], []>} : vector<8x8xbf16>, vector<8x256xbf16>, vector<8x256xf32> -> vector<8x256xf32>
    %107 = arith.addf %102, %106 : vector<8x256xf32>
    %c21 = arith.constant 21 : index
    %c0_68 = arith.constant 0 : index
    %c0_69 = arith.constant 0 : index
    %108 = vector.load %arg4[%c21, %c0_68, %c0_69] : memref<27x8x8xbf16, #tpu.memory_space<vmem>>, vector<1x8x8xbf16>
    %109 = vector.shape_cast %108 : vector<1x8x8xbf16> to vector<8x8xbf16>
    %110 = vector.extract_strided_slice %3 {offsets = [0, 163], sizes = [8, 256], strides = [1, 1]} : vector<8x512xbf16> to vector<8x256xbf16>
    %cst_70 = arith.constant dense<0.000000e+00> : vector<8x256xf32>
    %111 = tpu.matmul %109, %110, %cst_70 {dimension_numbers = #tpu.dot_dimension_numbers<[1], [0], [0], [1], [0, 0, 1, 1], [], []>} : vector<8x8xbf16>, vector<8x256xbf16>, vector<8x256xf32> -> vector<8x256xf32>
    %112 = arith.addf %107, %111 : vector<8x256xf32>
    %c22 = arith.constant 22 : index
    %c0_71 = arith.constant 0 : index
    %c0_72 = arith.constant 0 : index
    %113 = vector.load %arg4[%c22, %c0_71, %c0_72] : memref<27x8x8xbf16, #tpu.memory_space<vmem>>, vector<1x8x8xbf16>
    %114 = vector.shape_cast %113 : vector<1x8x8xbf16> to vector<8x8xbf16>
    %115 = vector.extract_strided_slice %3 {offsets = [0, 164], sizes = [8, 256], strides = [1, 1]} : vector<8x512xbf16> to vector<8x256xbf16>
    %cst_73 = arith.constant dense<0.000000e+00> : vector<8x256xf32>
    %116 = tpu.matmul %114, %115, %cst_73 {dimension_numbers = #tpu.dot_dimension_numbers<[1], [0], [0], [1], [0, 0, 1, 1], [], []>} : vector<8x8xbf16>, vector<8x256xbf16>, vector<8x256xf32> -> vector<8x256xf32>
    %117 = arith.addf %112, %116 : vector<8x256xf32>
    %c23 = arith.constant 23 : index
    %c0_74 = arith.constant 0 : index
    %c0_75 = arith.constant 0 : index
    %118 = vector.load %arg4[%c23, %c0_74, %c0_75] : memref<27x8x8xbf16, #tpu.memory_space<vmem>>, vector<1x8x8xbf16>
    %119 = vector.shape_cast %118 : vector<1x8x8xbf16> to vector<8x8xbf16>
    %120 = vector.extract_strided_slice %3 {offsets = [0, 165], sizes = [8, 256], strides = [1, 1]} : vector<8x512xbf16> to vector<8x256xbf16>
    %cst_76 = arith.constant dense<0.000000e+00> : vector<8x256xf32>
    %121 = tpu.matmul %119, %120, %cst_76 {dimension_numbers = #tpu.dot_dimension_numbers<[1], [0], [0], [1], [0, 0, 1, 1], [], []>} : vector<8x8xbf16>, vector<8x256xbf16>, vector<8x256xf32> -> vector<8x256xf32>
    %122 = arith.addf %117, %121 : vector<8x256xf32>
    %c24 = arith.constant 24 : index
    %c0_77 = arith.constant 0 : index
    %c0_78 = arith.constant 0 : index
    %123 = vector.load %arg4[%c24, %c0_77, %c0_78] : memref<27x8x8xbf16, #tpu.memory_space<vmem>>, vector<1x8x8xbf16>
    %124 = vector.shape_cast %123 : vector<1x8x8xbf16> to vector<8x8xbf16>
    %125 = vector.extract_strided_slice %3 {offsets = [0, 169], sizes = [8, 256], strides = [1, 1]} : vector<8x512xbf16> to vector<8x256xbf16>
    %cst_79 = arith.constant dense<0.000000e+00> : vector<8x256xf32>
    %126 = tpu.matmul %124, %125, %cst_79 {dimension_numbers = #tpu.dot_dimension_numbers<[1], [0], [0], [1], [0, 0, 1, 1], [], []>} : vector<8x8xbf16>, vector<8x256xbf16>, vector<8x256xf32> -> vector<8x256xf32>
    %127 = arith.addf %122, %126 : vector<8x256xf32>
    %c25 = arith.constant 25 : index
    %c0_80 = arith.constant 0 : index
    %c0_81 = arith.constant 0 : index
    %128 = vector.load %arg4[%c25, %c0_80, %c0_81] : memref<27x8x8xbf16, #tpu.memory_space<vmem>>, vector<1x8x8xbf16>
    %129 = vector.shape_cast %128 : vector<1x8x8xbf16> to vector<8x8xbf16>
    %130 = vector.extract_strided_slice %3 {offsets = [0, 170], sizes = [8, 256], strides = [1, 1]} : vector<8x512xbf16> to vector<8x256xbf16>
    %cst_82 = arith.constant dense<0.000000e+00> : vector<8x256xf32>
    %131 = tpu.matmul %129, %130, %cst_82 {dimension_numbers = #tpu.dot_dimension_numbers<[1], [0], [0], [1], [0, 0, 1, 1], [], []>} : vector<8x8xbf16>, vector<8x256xbf16>, vector<8x256xf32> -> vector<8x256xf32>
    %132 = arith.addf %127, %131 : vector<8x256xf32>
    %c26 = arith.constant 26 : index
    %c0_83 = arith.constant 0 : index
    %c0_84 = arith.constant 0 : index
    %133 = vector.load %arg4[%c26, %c0_83, %c0_84] : memref<27x8x8xbf16, #tpu.memory_space<vmem>>, vector<1x8x8xbf16>
    %134 = vector.shape_cast %133 : vector<1x8x8xbf16> to vector<8x8xbf16>
    %135 = vector.extract_strided_slice %3 {offsets = [0, 171], sizes = [8, 256], strides = [1, 1]} : vector<8x512xbf16> to vector<8x256xbf16>
    %cst_85 = arith.constant dense<0.000000e+00> : vector<8x256xf32>
    %136 = tpu.matmul %134, %135, %cst_85 {dimension_numbers = #tpu.dot_dimension_numbers<[1], [0], [0], [1], [0, 0, 1, 1], [], []>} : vector<8x8xbf16>, vector<8x256xbf16>, vector<8x256xf32> -> vector<8x256xf32>
    %137 = arith.addf %132, %136 : vector<8x256xf32>
    %c0_86 = arith.constant 0 : index
    %c0_87 = arith.constant 0 : index
    %138 = vector.load %arg5[%c0_86, %c0_87] : memref<1x256xf32, #tpu.memory_space<vmem>>, vector<1x256xf32>
    %cst_88 = arith.constant 0.000000e+00 : f32
    %139 = vector.broadcast %cst_88 : f32 to vector<1x256xf32>
    %140 = arith.cmpf ogt, %138, %139 : vector<1x256xf32>
    %cst_89 = arith.constant 0.000000e+00 : f32
    %141 = vector.shape_cast %140 : vector<1x256xi1> to vector<1x256xi1>
    %142 = vector.broadcast %141 : vector<1x256xi1> to vector<8x256xi1>
    %143 = vector.broadcast %cst_89 : f32 to vector<8x256xf32>
    %144 = arith.select %142, %137, %143 : vector<8x256xi1>, vector<8x256xf32>
    %cst_90 = arith.constant dense<0.000000e+00> : vector<8xf32>
    %145 = vector.multi_reduction <add>, %144, %cst_90 [1] : vector<8x256xf32> to vector<8xf32>
    %146 = vector.shape_cast %145 : vector<8xf32> to vector<8x1xf32>
    %c0_91 = arith.constant 0 : index
    %c0_92 = arith.constant 0 : index
    %c0_93 = arith.constant 0 : index
    %147 = vector.load %arg6[%c0_91, %c0_92, %c0_93] : memref<1x8x1xf32, #tpu.memory_space<vmem>>, vector<1x8x1xf32>
    %148 = vector.shape_cast %147 : vector<1x8x1xf32> to vector<8x1xf32>
    %149 = vector.shape_cast %146 : vector<8x1xf32> to vector<1x8x1xf32>
    tpu.vector_store %arg6[%c0_91, %c0_92, %c0_93], %149 {strides = array<i32>} : memref<1x8x1xf32, #tpu.memory_space<vmem>>, vector<1x8x1xf32>,
    %150 = arith.mulf %144, %144 : vector<8x256xf32>
    %cst_94 = arith.constant dense<0.000000e+00> : vector<8xf32>
    %151 = vector.multi_reduction <add>, %150, %cst_94 [1] : vector<8x256xf32> to vector<8xf32>
    %152 = vector.shape_cast %151 : vector<8xf32> to vector<8x1xf32>
    %c0_95 = arith.constant 0 : index
    %c0_96 = arith.constant 0 : index
    %c0_97 = arith.constant 0 : index
    %153 = vector.load %arg7[%c0_95, %c0_96, %c0_97] : memref<1x8x1xf32, #tpu.memory_space<vmem>>, vector<1x8x1xf32>
    %154 = vector.shape_cast %153 : vector<1x8x1xf32> to vector<8x1xf32>
    %155 = vector.shape_cast %152 : vector<8x1xf32> to vector<1x8x1xf32>
    tpu.vector_store %arg7[%c0_95, %c0_96, %c0_97], %155 {strides = array<i32>} : memref<1x8x1xf32, #tpu.memory_space<vmem>>, vector<1x8x1xf32>,
    return
  }
  func.func @transform_0(%arg0: i32) -> (i32, i32) {
    %c1_i32 = arith.constant 1 : i32
    %0 = arith.addi %arg0, %c1_i32 : i32
    %c2_i32 = arith.constant 2 : i32
    %1 = arith.muli %0, %c2_i32 : i32
    %c1_i32_0 = arith.constant 1 : i32
    %2 = arith.subi %1, %c1_i32_0 : i32
    %c0_i32 = arith.constant 0 : i32
    %c0_i32_1 = arith.constant 0 : i32
    return %c0_i32, %2 : i32, i32
  }
  func.func @transform_1(%arg0: i32) -> (i32, i32) {
    %c1_i32 = arith.constant 1 : i32
    %0 = arith.addi %arg0, %c1_i32 : i32
    %c0_i32 = arith.constant 0 : i32
    %c0_i32_0 = arith.constant 0 : i32
    return %c0_i32, %0 : i32, i32
  }
  func.func @transform_2(%arg0: i32) -> (i32, i32) {
    %c2_i32 = arith.constant 2 : i32
    %0 = arith.addi %arg0, %c2_i32 : i32
    %c2_i32_0 = arith.constant 2 : i32
    %1 = arith.muli %0, %c2_i32_0 : i32
    %c0_i32 = arith.constant 0 : i32
    %c0_i32_1 = arith.constant 0 : i32
    return %c0_i32, %1 : i32, i32
  }
  func.func @transform_3(%arg0: i32) -> (i32, i32, i32) {
    %c0_i32 = arith.constant 0 : i32
    %c0_i32_0 = arith.constant 0 : i32
    %c0_i32_1 = arith.constant 0 : i32
    %c0_i32_2 = arith.constant 0 : i32
    return %c0_i32, %c0_i32_0, %c0_i32_1 : i32, i32, i32
  }
  func.func @transform_4(%arg0: i32) -> (i32, i32) {
    %c0_i32 = arith.constant 0 : i32
    %c0_i32_0 = arith.constant 0 : i32
    return %c0_i32, %arg0 : i32, i32
  }
  func.func @transform_5(%arg0: i32) -> (i32, i32, i32) {
    %c0_i32 = arith.constant 0 : i32
    %c0_i32_0 = arith.constant 0 : i32
    %c0_i32_1 = arith.constant 0 : i32
    return %arg0, %c0_i32, %c0_i32_0 : i32, i32, i32
  }
  func.func @transform_6(%arg0: i32) -> (i32, i32, i32) {
    %c0_i32 = arith.constant 0 : i32
    %c0_i32_0 = arith.constant 0 : i32
    %c0_i32_1 = arith.constant 0 : i32
    return %arg0, %c0_i32, %c0_i32_0 : i32, i32, i32
  }
}

module attributes {stable_mosaic.version = 11 : i64} {
  func.func @_conv2_bn_add_kernel(%arg0: i32, %arg1: memref<8x128xbf16, #tpu.memory_space<vmem>>, %arg2: memref<8x256xbf16, #tpu.memory_space<vmem>>, %arg3: memref<8x128xbf16, #tpu.memory_space<vmem>>, %arg4: memref<8x256xbf16, #tpu.memory_space<vmem>>, %arg5: memref<27x8x8xbf16, #tpu.memory_space<vmem>>, %arg6: memref<8x1xf32, #tpu.memory_space<vmem>>, %arg7: memref<8x1xf32, #tpu.memory_space<vmem>>, %arg8: memref<8x1xf32, #tpu.memory_space<vmem>>, %arg9: memref<8x1xf32, #tpu.memory_space<vmem>>, %arg10: memref<8x256xf32, #tpu.memory_space<vmem>>) attributes {dimension_semantics = [#tpu.dimension_semantics<parallel>], iteration_bounds = array<i64: 2>, scalar_prefetch = 0 : i64, scratch_operands = 0 : i64, tpu.core_type = #tpu.core_type<tc>, window_params = [{transform_indices = @transform_0, window_bounds = array<i64: 8, 128>}, {transform_indices = @transform_1, window_bounds = array<i64: 8, 256>}, {transform_indices = @transform_2, window_bounds = array<i64: 8, 128>}, {transform_indices = @transform_3, window_bounds = array<i64: 8, 256>}, {pipeline_mode = #tpu.pipeline_mode<synchronous>, transform_indices = @transform_4, window_bounds = array<i64: 27, 8, 8>}, {pipeline_mode = #tpu.pipeline_mode<synchronous>, transform_indices = @transform_5, window_bounds = array<i64: 8, 1>}, {pipeline_mode = #tpu.pipeline_mode<synchronous>, transform_indices = @transform_6, window_bounds = array<i64: 8, 1>}, {pipeline_mode = #tpu.pipeline_mode<synchronous>, transform_indices = @transform_7, window_bounds = array<i64: 8, 1>}, {pipeline_mode = #tpu.pipeline_mode<synchronous>, transform_indices = @transform_8, window_bounds = array<i64: 8, 1>}, {transform_indices = @transform_9, window_bounds = array<i64: 8, 256>}]} {
    %c0 = arith.constant 0 : index
    %c0_0 = arith.constant 0 : index
    %0 = vector.load %arg1[%c0, %c0_0] : memref<8x128xbf16, #tpu.memory_space<vmem>>, vector<8x128xbf16>
    %c0_1 = arith.constant 0 : index
    %c0_2 = arith.constant 0 : index
    %1 = vector.load %arg2[%c0_1, %c0_2] : memref<8x256xbf16, #tpu.memory_space<vmem>>, vector<8x256xbf16>
    %c0_3 = arith.constant 0 : index
    %c0_4 = arith.constant 0 : index
    %2 = vector.load %arg3[%c0_3, %c0_4] : memref<8x128xbf16, #tpu.memory_space<vmem>>, vector<8x128xbf16>
    %3 = tpu.concatenate %0, %1, %2 in 1 : vector<8x128xbf16>, vector<8x256xbf16>, vector<8x128xbf16> -> vector<8x512xbf16>
    %c0_5 = arith.constant 0 : index
    %c0_6 = arith.constant 0 : index
    %c0_7 = arith.constant 0 : index
    %4 = vector.load %arg5[%c0_5, %c0_6, %c0_7] : memref<27x8x8xbf16, #tpu.memory_space<vmem>>, vector<1x8x8xbf16>
    %5 = vector.shape_cast %4 : vector<1x8x8xbf16> to vector<8x8xbf16>
    %6 = vector.extract_strided_slice %3 {offsets = [0, 85], sizes = [8, 256], strides = [1, 1]} : vector<8x512xbf16> to vector<8x256xbf16>
    %cst = arith.constant dense<0.000000e+00> : vector<8x256xf32>
    %7 = tpu.matmul %5, %6, %cst {dimension_numbers = #tpu.dot_dimension_numbers<[1], [0], [0], [1], [0, 0, 1, 1], [], []>} : vector<8x8xbf16>, vector<8x256xbf16>, vector<8x256xf32> -> vector<8x256xf32>
    %c1 = arith.constant 1 : index
    %c0_8 = arith.constant 0 : index
    %c0_9 = arith.constant 0 : index
    %8 = vector.load %arg5[%c1, %c0_8, %c0_9] : memref<27x8x8xbf16, #tpu.memory_space<vmem>>, vector<1x8x8xbf16>
    %9 = vector.shape_cast %8 : vector<1x8x8xbf16> to vector<8x8xbf16>
    %10 = vector.extract_strided_slice %3 {offsets = [0, 86], sizes = [8, 256], strides = [1, 1]} : vector<8x512xbf16> to vector<8x256xbf16>
    %cst_10 = arith.constant dense<0.000000e+00> : vector<8x256xf32>
    %11 = tpu.matmul %9, %10, %cst_10 {dimension_numbers = #tpu.dot_dimension_numbers<[1], [0], [0], [1], [0, 0, 1, 1], [], []>} : vector<8x8xbf16>, vector<8x256xbf16>, vector<8x256xf32> -> vector<8x256xf32>
    %12 = arith.addf %7, %11 : vector<8x256xf32>
    %c2 = arith.constant 2 : index
    %c0_11 = arith.constant 0 : index
    %c0_12 = arith.constant 0 : index
    %13 = vector.load %arg5[%c2, %c0_11, %c0_12] : memref<27x8x8xbf16, #tpu.memory_space<vmem>>, vector<1x8x8xbf16>
    %14 = vector.shape_cast %13 : vector<1x8x8xbf16> to vector<8x8xbf16>
    %15 = vector.extract_strided_slice %3 {offsets = [0, 87], sizes = [8, 256], strides = [1, 1]} : vector<8x512xbf16> to vector<8x256xbf16>
    %cst_13 = arith.constant dense<0.000000e+00> : vector<8x256xf32>
    %16 = tpu.matmul %14, %15, %cst_13 {dimension_numbers = #tpu.dot_dimension_numbers<[1], [0], [0], [1], [0, 0, 1, 1], [], []>} : vector<8x8xbf16>, vector<8x256xbf16>, vector<8x256xf32> -> vector<8x256xf32>
    %17 = arith.addf %12, %16 : vector<8x256xf32>
    %c3 = arith.constant 3 : index
    %c0_14 = arith.constant 0 : index
    %c0_15 = arith.constant 0 : index
    %18 = vector.load %arg5[%c3, %c0_14, %c0_15] : memref<27x8x8xbf16, #tpu.memory_space<vmem>>, vector<1x8x8xbf16>
    %19 = vector.shape_cast %18 : vector<1x8x8xbf16> to vector<8x8xbf16>
    %20 = vector.extract_strided_slice %3 {offsets = [0, 91], sizes = [8, 256], strides = [1, 1]} : vector<8x512xbf16> to vector<8x256xbf16>
    %cst_16 = arith.constant dense<0.000000e+00> : vector<8x256xf32>
    %21 = tpu.matmul %19, %20, %cst_16 {dimension_numbers = #tpu.dot_dimension_numbers<[1], [0], [0], [1], [0, 0, 1, 1], [], []>} : vector<8x8xbf16>, vector<8x256xbf16>, vector<8x256xf32> -> vector<8x256xf32>
    %22 = arith.addf %17, %21 : vector<8x256xf32>
    %c4 = arith.constant 4 : index
    %c0_17 = arith.constant 0 : index
    %c0_18 = arith.constant 0 : index
    %23 = vector.load %arg5[%c4, %c0_17, %c0_18] : memref<27x8x8xbf16, #tpu.memory_space<vmem>>, vector<1x8x8xbf16>
    %24 = vector.shape_cast %23 : vector<1x8x8xbf16> to vector<8x8xbf16>
    %25 = vector.extract_strided_slice %3 {offsets = [0, 92], sizes = [8, 256], strides = [1, 1]} : vector<8x512xbf16> to vector<8x256xbf16>
    %cst_19 = arith.constant dense<0.000000e+00> : vector<8x256xf32>
    %26 = tpu.matmul %24, %25, %cst_19 {dimension_numbers = #tpu.dot_dimension_numbers<[1], [0], [0], [1], [0, 0, 1, 1], [], []>} : vector<8x8xbf16>, vector<8x256xbf16>, vector<8x256xf32> -> vector<8x256xf32>
    %27 = arith.addf %22, %26 : vector<8x256xf32>
    %c5 = arith.constant 5 : index
    %c0_20 = arith.constant 0 : index
    %c0_21 = arith.constant 0 : index
    %28 = vector.load %arg5[%c5, %c0_20, %c0_21] : memref<27x8x8xbf16, #tpu.memory_space<vmem>>, vector<1x8x8xbf16>
    %29 = vector.shape_cast %28 : vector<1x8x8xbf16> to vector<8x8xbf16>
    %30 = vector.extract_strided_slice %3 {offsets = [0, 93], sizes = [8, 256], strides = [1, 1]} : vector<8x512xbf16> to vector<8x256xbf16>
    %cst_22 = arith.constant dense<0.000000e+00> : vector<8x256xf32>
    %31 = tpu.matmul %29, %30, %cst_22 {dimension_numbers = #tpu.dot_dimension_numbers<[1], [0], [0], [1], [0, 0, 1, 1], [], []>} : vector<8x8xbf16>, vector<8x256xbf16>, vector<8x256xf32> -> vector<8x256xf32>
    %32 = arith.addf %27, %31 : vector<8x256xf32>
    %c6 = arith.constant 6 : index
    %c0_23 = arith.constant 0 : index
    %c0_24 = arith.constant 0 : index
    %33 = vector.load %arg5[%c6, %c0_23, %c0_24] : memref<27x8x8xbf16, #tpu.memory_space<vmem>>, vector<1x8x8xbf16>
    %34 = vector.shape_cast %33 : vector<1x8x8xbf16> to vector<8x8xbf16>
    %35 = vector.extract_strided_slice %3 {offsets = [0, 97], sizes = [8, 256], strides = [1, 1]} : vector<8x512xbf16> to vector<8x256xbf16>
    %cst_25 = arith.constant dense<0.000000e+00> : vector<8x256xf32>
    %36 = tpu.matmul %34, %35, %cst_25 {dimension_numbers = #tpu.dot_dimension_numbers<[1], [0], [0], [1], [0, 0, 1, 1], [], []>} : vector<8x8xbf16>, vector<8x256xbf16>, vector<8x256xf32> -> vector<8x256xf32>
    %37 = arith.addf %32, %36 : vector<8x256xf32>
    %c7 = arith.constant 7 : index
    %c0_26 = arith.constant 0 : index
    %c0_27 = arith.constant 0 : index
    %38 = vector.load %arg5[%c7, %c0_26, %c0_27] : memref<27x8x8xbf16, #tpu.memory_space<vmem>>, vector<1x8x8xbf16>
    %39 = vector.shape_cast %38 : vector<1x8x8xbf16> to vector<8x8xbf16>
    %40 = vector.extract_strided_slice %3 {offsets = [0, 98], sizes = [8, 256], strides = [1, 1]} : vector<8x512xbf16> to vector<8x256xbf16>
    %cst_28 = arith.constant dense<0.000000e+00> : vector<8x256xf32>
    %41 = tpu.matmul %39, %40, %cst_28 {dimension_numbers = #tpu.dot_dimension_numbers<[1], [0], [0], [1], [0, 0, 1, 1], [], []>} : vector<8x8xbf16>, vector<8x256xbf16>, vector<8x256xf32> -> vector<8x256xf32>
    %42 = arith.addf %37, %41 : vector<8x256xf32>
    %c8 = arith.constant 8 : index
    %c0_29 = arith.constant 0 : index
    %c0_30 = arith.constant 0 : index
    %43 = vector.load %arg5[%c8, %c0_29, %c0_30] : memref<27x8x8xbf16, #tpu.memory_space<vmem>>, vector<1x8x8xbf16>
    %44 = vector.shape_cast %43 : vector<1x8x8xbf16> to vector<8x8xbf16>
    %45 = vector.extract_strided_slice %3 {offsets = [0, 99], sizes = [8, 256], strides = [1, 1]} : vector<8x512xbf16> to vector<8x256xbf16>
    %cst_31 = arith.constant dense<0.000000e+00> : vector<8x256xf32>
    %46 = tpu.matmul %44, %45, %cst_31 {dimension_numbers = #tpu.dot_dimension_numbers<[1], [0], [0], [1], [0, 0, 1, 1], [], []>} : vector<8x8xbf16>, vector<8x256xbf16>, vector<8x256xf32> -> vector<8x256xf32>
    %47 = arith.addf %42, %46 : vector<8x256xf32>
    %c9 = arith.constant 9 : index
    %c0_32 = arith.constant 0 : index
    %c0_33 = arith.constant 0 : index
    %48 = vector.load %arg5[%c9, %c0_32, %c0_33] : memref<27x8x8xbf16, #tpu.memory_space<vmem>>, vector<1x8x8xbf16>
    %49 = vector.shape_cast %48 : vector<1x8x8xbf16> to vector<8x8xbf16>
    %50 = vector.extract_strided_slice %3 {offsets = [0, 121], sizes = [8, 256], strides = [1, 1]} : vector<8x512xbf16> to vector<8x256xbf16>
    %cst_34 = arith.constant dense<0.000000e+00> : vector<8x256xf32>
    %51 = tpu.matmul %49, %50, %cst_34 {dimension_numbers = #tpu.dot_dimension_numbers<[1], [0], [0], [1], [0, 0, 1, 1], [], []>} : vector<8x8xbf16>, vector<8x256xbf16>, vector<8x256xf32> -> vector<8x256xf32>
    %52 = arith.addf %47, %51 : vector<8x256xf32>
    %c10 = arith.constant 10 : index
    %c0_35 = arith.constant 0 : index
    %c0_36 = arith.constant 0 : index
    %53 = vector.load %arg5[%c10, %c0_35, %c0_36] : memref<27x8x8xbf16, #tpu.memory_space<vmem>>, vector<1x8x8xbf16>
    %54 = vector.shape_cast %53 : vector<1x8x8xbf16> to vector<8x8xbf16>
    %55 = vector.extract_strided_slice %3 {offsets = [0, 122], sizes = [8, 256], strides = [1, 1]} : vector<8x512xbf16> to vector<8x256xbf16>
    %cst_37 = arith.constant dense<0.000000e+00> : vector<8x256xf32>
    %56 = tpu.matmul %54, %55, %cst_37 {dimension_numbers = #tpu.dot_dimension_numbers<[1], [0], [0], [1], [0, 0, 1, 1], [], []>} : vector<8x8xbf16>, vector<8x256xbf16>, vector<8x256xf32> -> vector<8x256xf32>
    %57 = arith.addf %52, %56 : vector<8x256xf32>
    %c11 = arith.constant 11 : index
    %c0_38 = arith.constant 0 : index
    %c0_39 = arith.constant 0 : index
    %58 = vector.load %arg5[%c11, %c0_38, %c0_39] : memref<27x8x8xbf16, #tpu.memory_space<vmem>>, vector<1x8x8xbf16>
    %59 = vector.shape_cast %58 : vector<1x8x8xbf16> to vector<8x8xbf16>
    %60 = vector.extract_strided_slice %3 {offsets = [0, 123], sizes = [8, 256], strides = [1, 1]} : vector<8x512xbf16> to vector<8x256xbf16>
    %cst_40 = arith.constant dense<0.000000e+00> : vector<8x256xf32>
    %61 = tpu.matmul %59, %60, %cst_40 {dimension_numbers = #tpu.dot_dimension_numbers<[1], [0], [0], [1], [0, 0, 1, 1], [], []>} : vector<8x8xbf16>, vector<8x256xbf16>, vector<8x256xf32> -> vector<8x256xf32>
    %62 = arith.addf %57, %61 : vector<8x256xf32>
    %c12 = arith.constant 12 : index
    %c0_41 = arith.constant 0 : index
    %c0_42 = arith.constant 0 : index
    %63 = vector.load %arg5[%c12, %c0_41, %c0_42] : memref<27x8x8xbf16, #tpu.memory_space<vmem>>, vector<1x8x8xbf16>
    %64 = vector.shape_cast %63 : vector<1x8x8xbf16> to vector<8x8xbf16>
    %65 = vector.extract_strided_slice %3 {offsets = [0, 127], sizes = [8, 256], strides = [1, 1]} : vector<8x512xbf16> to vector<8x256xbf16>
    %cst_43 = arith.constant dense<0.000000e+00> : vector<8x256xf32>
    %66 = tpu.matmul %64, %65, %cst_43 {dimension_numbers = #tpu.dot_dimension_numbers<[1], [0], [0], [1], [0, 0, 1, 1], [], []>} : vector<8x8xbf16>, vector<8x256xbf16>, vector<8x256xf32> -> vector<8x256xf32>
    %67 = arith.addf %62, %66 : vector<8x256xf32>
    %c13 = arith.constant 13 : index
    %c0_44 = arith.constant 0 : index
    %c0_45 = arith.constant 0 : index
    %68 = vector.load %arg5[%c13, %c0_44, %c0_45] : memref<27x8x8xbf16, #tpu.memory_space<vmem>>, vector<1x8x8xbf16>
    %69 = vector.shape_cast %68 : vector<1x8x8xbf16> to vector<8x8xbf16>
    %70 = vector.extract_strided_slice %3 {offsets = [0, 128], sizes = [8, 256], strides = [1, 1]} : vector<8x512xbf16> to vector<8x256xbf16>
    %cst_46 = arith.constant dense<0.000000e+00> : vector<8x256xf32>
    %71 = tpu.matmul %69, %70, %cst_46 {dimension_numbers = #tpu.dot_dimension_numbers<[1], [0], [0], [1], [0, 0, 1, 1], [], []>} : vector<8x8xbf16>, vector<8x256xbf16>, vector<8x256xf32> -> vector<8x256xf32>
    %72 = arith.addf %67, %71 : vector<8x256xf32>
    %c14 = arith.constant 14 : index
    %c0_47 = arith.constant 0 : index
    %c0_48 = arith.constant 0 : index
    %73 = vector.load %arg5[%c14, %c0_47, %c0_48] : memref<27x8x8xbf16, #tpu.memory_space<vmem>>, vector<1x8x8xbf16>
    %74 = vector.shape_cast %73 : vector<1x8x8xbf16> to vector<8x8xbf16>
    %75 = vector.extract_strided_slice %3 {offsets = [0, 129], sizes = [8, 256], strides = [1, 1]} : vector<8x512xbf16> to vector<8x256xbf16>
    %cst_49 = arith.constant dense<0.000000e+00> : vector<8x256xf32>
    %76 = tpu.matmul %74, %75, %cst_49 {dimension_numbers = #tpu.dot_dimension_numbers<[1], [0], [0], [1], [0, 0, 1, 1], [], []>} : vector<8x8xbf16>, vector<8x256xbf16>, vector<8x256xf32> -> vector<8x256xf32>
    %77 = arith.addf %72, %76 : vector<8x256xf32>
    %c15 = arith.constant 15 : index
    %c0_50 = arith.constant 0 : index
    %c0_51 = arith.constant 0 : index
    %78 = vector.load %arg5[%c15, %c0_50, %c0_51] : memref<27x8x8xbf16, #tpu.memory_space<vmem>>, vector<1x8x8xbf16>
    %79 = vector.shape_cast %78 : vector<1x8x8xbf16> to vector<8x8xbf16>
    %80 = vector.extract_strided_slice %3 {offsets = [0, 133], sizes = [8, 256], strides = [1, 1]} : vector<8x512xbf16> to vector<8x256xbf16>
    %cst_52 = arith.constant dense<0.000000e+00> : vector<8x256xf32>
    %81 = tpu.matmul %79, %80, %cst_52 {dimension_numbers = #tpu.dot_dimension_numbers<[1], [0], [0], [1], [0, 0, 1, 1], [], []>} : vector<8x8xbf16>, vector<8x256xbf16>, vector<8x256xf32> -> vector<8x256xf32>
    %82 = arith.addf %77, %81 : vector<8x256xf32>
    %c16 = arith.constant 16 : index
    %c0_53 = arith.constant 0 : index
    %c0_54 = arith.constant 0 : index
    %83 = vector.load %arg5[%c16, %c0_53, %c0_54] : memref<27x8x8xbf16, #tpu.memory_space<vmem>>, vector<1x8x8xbf16>
    %84 = vector.shape_cast %83 : vector<1x8x8xbf16> to vector<8x8xbf16>
    %85 = vector.extract_strided_slice %3 {offsets = [0, 134], sizes = [8, 256], strides = [1, 1]} : vector<8x512xbf16> to vector<8x256xbf16>
    %cst_55 = arith.constant dense<0.000000e+00> : vector<8x256xf32>
    %86 = tpu.matmul %84, %85, %cst_55 {dimension_numbers = #tpu.dot_dimension_numbers<[1], [0], [0], [1], [0, 0, 1, 1], [], []>} : vector<8x8xbf16>, vector<8x256xbf16>, vector<8x256xf32> -> vector<8x256xf32>
    %87 = arith.addf %82, %86 : vector<8x256xf32>
    %c17 = arith.constant 17 : index
    %c0_56 = arith.constant 0 : index
    %c0_57 = arith.constant 0 : index
    %88 = vector.load %arg5[%c17, %c0_56, %c0_57] : memref<27x8x8xbf16, #tpu.memory_space<vmem>>, vector<1x8x8xbf16>
    %89 = vector.shape_cast %88 : vector<1x8x8xbf16> to vector<8x8xbf16>
    %90 = vector.extract_strided_slice %3 {offsets = [0, 135], sizes = [8, 256], strides = [1, 1]} : vector<8x512xbf16> to vector<8x256xbf16>
    %cst_58 = arith.constant dense<0.000000e+00> : vector<8x256xf32>
    %91 = tpu.matmul %89, %90, %cst_58 {dimension_numbers = #tpu.dot_dimension_numbers<[1], [0], [0], [1], [0, 0, 1, 1], [], []>} : vector<8x8xbf16>, vector<8x256xbf16>, vector<8x256xf32> -> vector<8x256xf32>
    %92 = arith.addf %87, %91 : vector<8x256xf32>
    %c18 = arith.constant 18 : index
    %c0_59 = arith.constant 0 : index
    %c0_60 = arith.constant 0 : index
    %93 = vector.load %arg5[%c18, %c0_59, %c0_60] : memref<27x8x8xbf16, #tpu.memory_space<vmem>>, vector<1x8x8xbf16>
    %94 = vector.shape_cast %93 : vector<1x8x8xbf16> to vector<8x8xbf16>
    %95 = vector.extract_strided_slice %3 {offsets = [0, 157], sizes = [8, 256], strides = [1, 1]} : vector<8x512xbf16> to vector<8x256xbf16>
    %cst_61 = arith.constant dense<0.000000e+00> : vector<8x256xf32>
    %96 = tpu.matmul %94, %95, %cst_61 {dimension_numbers = #tpu.dot_dimension_numbers<[1], [0], [0], [1], [0, 0, 1, 1], [], []>} : vector<8x8xbf16>, vector<8x256xbf16>, vector<8x256xf32> -> vector<8x256xf32>
    %97 = arith.addf %92, %96 : vector<8x256xf32>
    %c19 = arith.constant 19 : index
    %c0_62 = arith.constant 0 : index
    %c0_63 = arith.constant 0 : index
    %98 = vector.load %arg5[%c19, %c0_62, %c0_63] : memref<27x8x8xbf16, #tpu.memory_space<vmem>>, vector<1x8x8xbf16>
    %99 = vector.shape_cast %98 : vector<1x8x8xbf16> to vector<8x8xbf16>
    %100 = vector.extract_strided_slice %3 {offsets = [0, 158], sizes = [8, 256], strides = [1, 1]} : vector<8x512xbf16> to vector<8x256xbf16>
    %cst_64 = arith.constant dense<0.000000e+00> : vector<8x256xf32>
    %101 = tpu.matmul %99, %100, %cst_64 {dimension_numbers = #tpu.dot_dimension_numbers<[1], [0], [0], [1], [0, 0, 1, 1], [], []>} : vector<8x8xbf16>, vector<8x256xbf16>, vector<8x256xf32> -> vector<8x256xf32>
    %102 = arith.addf %97, %101 : vector<8x256xf32>
    %c20 = arith.constant 20 : index
    %c0_65 = arith.constant 0 : index
    %c0_66 = arith.constant 0 : index
    %103 = vector.load %arg5[%c20, %c0_65, %c0_66] : memref<27x8x8xbf16, #tpu.memory_space<vmem>>, vector<1x8x8xbf16>
    %104 = vector.shape_cast %103 : vector<1x8x8xbf16> to vector<8x8xbf16>
    %105 = vector.extract_strided_slice %3 {offsets = [0, 159], sizes = [8, 256], strides = [1, 1]} : vector<8x512xbf16> to vector<8x256xbf16>
    %cst_67 = arith.constant dense<0.000000e+00> : vector<8x256xf32>
    %106 = tpu.matmul %104, %105, %cst_67 {dimension_numbers = #tpu.dot_dimension_numbers<[1], [0], [0], [1], [0, 0, 1, 1], [], []>} : vector<8x8xbf16>, vector<8x256xbf16>, vector<8x256xf32> -> vector<8x256xf32>
    %107 = arith.addf %102, %106 : vector<8x256xf32>
    %c21 = arith.constant 21 : index
    %c0_68 = arith.constant 0 : index
    %c0_69 = arith.constant 0 : index
    %108 = vector.load %arg5[%c21, %c0_68, %c0_69] : memref<27x8x8xbf16, #tpu.memory_space<vmem>>, vector<1x8x8xbf16>
    %109 = vector.shape_cast %108 : vector<1x8x8xbf16> to vector<8x8xbf16>
    %110 = vector.extract_strided_slice %3 {offsets = [0, 163], sizes = [8, 256], strides = [1, 1]} : vector<8x512xbf16> to vector<8x256xbf16>
    %cst_70 = arith.constant dense<0.000000e+00> : vector<8x256xf32>
    %111 = tpu.matmul %109, %110, %cst_70 {dimension_numbers = #tpu.dot_dimension_numbers<[1], [0], [0], [1], [0, 0, 1, 1], [], []>} : vector<8x8xbf16>, vector<8x256xbf16>, vector<8x256xf32> -> vector<8x256xf32>
    %112 = arith.addf %107, %111 : vector<8x256xf32>
    %c22 = arith.constant 22 : index
    %c0_71 = arith.constant 0 : index
    %c0_72 = arith.constant 0 : index
    %113 = vector.load %arg5[%c22, %c0_71, %c0_72] : memref<27x8x8xbf16, #tpu.memory_space<vmem>>, vector<1x8x8xbf16>
    %114 = vector.shape_cast %113 : vector<1x8x8xbf16> to vector<8x8xbf16>
    %115 = vector.extract_strided_slice %3 {offsets = [0, 164], sizes = [8, 256], strides = [1, 1]} : vector<8x512xbf16> to vector<8x256xbf16>
    %cst_73 = arith.constant dense<0.000000e+00> : vector<8x256xf32>
    %116 = tpu.matmul %114, %115, %cst_73 {dimension_numbers = #tpu.dot_dimension_numbers<[1], [0], [0], [1], [0, 0, 1, 1], [], []>} : vector<8x8xbf16>, vector<8x256xbf16>, vector<8x256xf32> -> vector<8x256xf32>
    %117 = arith.addf %112, %116 : vector<8x256xf32>
    %c23 = arith.constant 23 : index
    %c0_74 = arith.constant 0 : index
    %c0_75 = arith.constant 0 : index
    %118 = vector.load %arg5[%c23, %c0_74, %c0_75] : memref<27x8x8xbf16, #tpu.memory_space<vmem>>, vector<1x8x8xbf16>
    %119 = vector.shape_cast %118 : vector<1x8x8xbf16> to vector<8x8xbf16>
    %120 = vector.extract_strided_slice %3 {offsets = [0, 165], sizes = [8, 256], strides = [1, 1]} : vector<8x512xbf16> to vector<8x256xbf16>
    %cst_76 = arith.constant dense<0.000000e+00> : vector<8x256xf32>
    %121 = tpu.matmul %119, %120, %cst_76 {dimension_numbers = #tpu.dot_dimension_numbers<[1], [0], [0], [1], [0, 0, 1, 1], [], []>} : vector<8x8xbf16>, vector<8x256xbf16>, vector<8x256xf32> -> vector<8x256xf32>
    %122 = arith.addf %117, %121 : vector<8x256xf32>
    %c24 = arith.constant 24 : index
    %c0_77 = arith.constant 0 : index
    %c0_78 = arith.constant 0 : index
    %123 = vector.load %arg5[%c24, %c0_77, %c0_78] : memref<27x8x8xbf16, #tpu.memory_space<vmem>>, vector<1x8x8xbf16>
    %124 = vector.shape_cast %123 : vector<1x8x8xbf16> to vector<8x8xbf16>
    %125 = vector.extract_strided_slice %3 {offsets = [0, 169], sizes = [8, 256], strides = [1, 1]} : vector<8x512xbf16> to vector<8x256xbf16>
    %cst_79 = arith.constant dense<0.000000e+00> : vector<8x256xf32>
    %126 = tpu.matmul %124, %125, %cst_79 {dimension_numbers = #tpu.dot_dimension_numbers<[1], [0], [0], [1], [0, 0, 1, 1], [], []>} : vector<8x8xbf16>, vector<8x256xbf16>, vector<8x256xf32> -> vector<8x256xf32>
    %127 = arith.addf %122, %126 : vector<8x256xf32>
    %c25 = arith.constant 25 : index
    %c0_80 = arith.constant 0 : index
    %c0_81 = arith.constant 0 : index
    %128 = vector.load %arg5[%c25, %c0_80, %c0_81] : memref<27x8x8xbf16, #tpu.memory_space<vmem>>, vector<1x8x8xbf16>
    %129 = vector.shape_cast %128 : vector<1x8x8xbf16> to vector<8x8xbf16>
    %130 = vector.extract_strided_slice %3 {offsets = [0, 170], sizes = [8, 256], strides = [1, 1]} : vector<8x512xbf16> to vector<8x256xbf16>
    %cst_82 = arith.constant dense<0.000000e+00> : vector<8x256xf32>
    %131 = tpu.matmul %129, %130, %cst_82 {dimension_numbers = #tpu.dot_dimension_numbers<[1], [0], [0], [1], [0, 0, 1, 1], [], []>} : vector<8x8xbf16>, vector<8x256xbf16>, vector<8x256xf32> -> vector<8x256xf32>
    %132 = arith.addf %127, %131 : vector<8x256xf32>
    %c26 = arith.constant 26 : index
    %c0_83 = arith.constant 0 : index
    %c0_84 = arith.constant 0 : index
    %133 = vector.load %arg5[%c26, %c0_83, %c0_84] : memref<27x8x8xbf16, #tpu.memory_space<vmem>>, vector<1x8x8xbf16>
    %134 = vector.shape_cast %133 : vector<1x8x8xbf16> to vector<8x8xbf16>
    %135 = vector.extract_strided_slice %3 {offsets = [0, 171], sizes = [8, 256], strides = [1, 1]} : vector<8x512xbf16> to vector<8x256xbf16>
    %cst_85 = arith.constant dense<0.000000e+00> : vector<8x256xf32>
    %136 = tpu.matmul %134, %135, %cst_85 {dimension_numbers = #tpu.dot_dimension_numbers<[1], [0], [0], [1], [0, 0, 1, 1], [], []>} : vector<8x8xbf16>, vector<8x256xbf16>, vector<8x256xf32> -> vector<8x256xf32>
    %137 = arith.addf %132, %136 : vector<8x256xf32>
    %c0_86 = arith.constant 0 : index
    %c0_87 = arith.constant 0 : index
    %138 = vector.load %arg6[%c0_86, %c0_87] : memref<8x1xf32, #tpu.memory_space<vmem>>, vector<8x1xf32>
    %139 = vector.broadcast %138 : vector<8x1xf32> to vector<8x256xf32>
    %140 = arith.mulf %137, %139 : vector<8x256xf32>
    %c0_88 = arith.constant 0 : index
    %c0_89 = arith.constant 0 : index
    %141 = vector.load %arg7[%c0_88, %c0_89] : memref<8x1xf32, #tpu.memory_space<vmem>>, vector<8x1xf32>
    %142 = vector.broadcast %141 : vector<8x1xf32> to vector<8x256xf32>
    %143 = arith.addf %140, %142 : vector<8x256xf32>
    %c0_90 = arith.constant 0 : index
    %c0_91 = arith.constant 0 : index
    %144 = vector.load %arg4[%c0_90, %c0_91] : memref<8x256xbf16, #tpu.memory_space<vmem>>, vector<8x256xbf16>
    %145 = arith.extf %144 : vector<8x256xbf16> to vector<8x256xf32>
    %c0_92 = arith.constant 0 : index
    %c0_93 = arith.constant 0 : index
    %146 = vector.load %arg8[%c0_92, %c0_93] : memref<8x1xf32, #tpu.memory_space<vmem>>, vector<8x1xf32>
    %147 = vector.broadcast %146 : vector<8x1xf32> to vector<8x256xf32>
    %148 = arith.mulf %145, %147 : vector<8x256xf32>
    %149 = arith.addf %143, %148 : vector<8x256xf32>
    %c0_94 = arith.constant 0 : index
    %c0_95 = arith.constant 0 : index
    %150 = vector.load %arg9[%c0_94, %c0_95] : memref<8x1xf32, #tpu.memory_space<vmem>>, vector<8x1xf32>
    %151 = vector.broadcast %150 : vector<8x1xf32> to vector<8x256xf32>
    %152 = arith.addf %149, %151 : vector<8x256xf32>
    %cst_96 = arith.constant 0.000000e+00 : f32
    %153 = vector.broadcast %cst_96 : f32 to vector<8x256xf32>
    %154 = arith.cmpf ogt, %152, %153 : vector<8x256xf32>
    %cst_97 = arith.constant 0.00999999977 : f32
    %155 = vector.broadcast %cst_97 : f32 to vector<8x256xf32>
    %156 = arith.mulf %155, %152 : vector<8x256xf32>
    %157 = arith.select %154, %152, %156 : vector<8x256xi1>, vector<8x256xf32>
    %c0_98 = arith.constant 0 : index
    %c0_99 = arith.constant 0 : index
    %158 = vector.load %arg10[%c0_98, %c0_99] : memref<8x256xf32, #tpu.memory_space<vmem>>, vector<8x256xf32>
    tpu.vector_store %arg10[%c0_98, %c0_99], %157 {strides = array<i32>} : memref<8x256xf32, #tpu.memory_space<vmem>>, vector<8x256xf32>,
    return
  }
  func.func @transform_0(%arg0: i32) -> (i32, i32) {
    %c1_i32 = arith.constant 1 : i32
    %0 = arith.addi %arg0, %c1_i32 : i32
    %c2_i32 = arith.constant 2 : i32
    %1 = arith.muli %0, %c2_i32 : i32
    %c1_i32_0 = arith.constant 1 : i32
    %2 = arith.subi %1, %c1_i32_0 : i32
    %c0_i32 = arith.constant 0 : i32
    %c0_i32_1 = arith.constant 0 : i32
    return %c0_i32, %2 : i32, i32
  }
  func.func @transform_1(%arg0: i32) -> (i32, i32) {
    %c1_i32 = arith.constant 1 : i32
    %0 = arith.addi %arg0, %c1_i32 : i32
    %c0_i32 = arith.constant 0 : i32
    %c0_i32_0 = arith.constant 0 : i32
    return %c0_i32, %0 : i32, i32
  }
  func.func @transform_2(%arg0: i32) -> (i32, i32) {
    %c2_i32 = arith.constant 2 : i32
    %0 = arith.addi %arg0, %c2_i32 : i32
    %c2_i32_0 = arith.constant 2 : i32
    %1 = arith.muli %0, %c2_i32_0 : i32
    %c0_i32 = arith.constant 0 : i32
    %c0_i32_1 = arith.constant 0 : i32
    return %c0_i32, %1 : i32, i32
  }
  func.func @transform_3(%arg0: i32) -> (i32, i32) {
    %c0_i32 = arith.constant 0 : i32
    %c0_i32_0 = arith.constant 0 : i32
    return %c0_i32, %arg0 : i32, i32
  }
  func.func @transform_4(%arg0: i32) -> (i32, i32, i32) {
    %c0_i32 = arith.constant 0 : i32
    %c0_i32_0 = arith.constant 0 : i32
    %c0_i32_1 = arith.constant 0 : i32
    %c0_i32_2 = arith.constant 0 : i32
    return %c0_i32, %c0_i32_0, %c0_i32_1 : i32, i32, i32
  }
  func.func @transform_5(%arg0: i32) -> (i32, i32) {
    %c0_i32 = arith.constant 0 : i32
    %c0_i32_0 = arith.constant 0 : i32
    %c0_i32_1 = arith.constant 0 : i32
    return %c0_i32, %c0_i32_0 : i32, i32
  }
  func.func @transform_6(%arg0: i32) -> (i32, i32) {
    %c0_i32 = arith.constant 0 : i32
    %c0_i32_0 = arith.constant 0 : i32
    %c0_i32_1 = arith.constant 0 : i32
    return %c0_i32, %c0_i32_0 : i32, i32
  }
  func.func @transform_7(%arg0: i32) -> (i32, i32) {
    %c0_i32 = arith.constant 0 : i32
    %c0_i32_0 = arith.constant 0 : i32
    %c0_i32_1 = arith.constant 0 : i32
    return %c0_i32, %c0_i32_0 : i32, i32
  }
  func.func @transform_8(%arg0: i32) -> (i32, i32) {
    %c0_i32 = arith.constant 0 : i32
    %c0_i32_0 = arith.constant 0 : i32
    %c0_i32_1 = arith.constant 0 : i32
    return %c0_i32, %c0_i32_0 : i32, i32
  }
  func.func @transform_9(%arg0: i32) -> (i32, i32) {
    %c0_i32 = arith.constant 0 : i32
    %c0_i32_0 = arith.constant 0 : i32
    return %c0_i32, %arg0 : i32, i32
  }
}

</mosaic_0001>

<llo_original>
// kernel: conv_res_block.3
$region0: #{conv_res_block.3}
  #allocation0 [shape = 'u32[]', space=smem, size = 0x4, offset = 0x4, fixed_abs, tag = 'smem constant byte address 0x4 - core index']
  #allocation1 [shape = 'u32[144,128]{1,0:T(1,128)}', space=vmem, size = 0x12000, scoped, tag = 'internal scratch']
  %s0 = inlined_call_operand.vmem [shape: bf16[112,512], index: 0, kind: input, shape index: {}]
  %s1 = inlined_call_operand.vmem [shape: bf16[16,112], index: 1, kind: input, shape index: {}]
  %s2 = inlined_call_operand.vmem [shape: f32[8,1], index: 2, kind: input, shape index: {}]
  %s3 = inlined_call_operand.vmem [shape: f32[1,512], index: 3, kind: input, shape index: {}]
  %s4 = inlined_call_operand.vmem [shape: bf16[8,1024], index: 4, kind: output, shape index: {0}]
  %s5 = inlined_call_operand.vmem [shape: bf16[8,512], index: 5, kind: output, shape index: {1}]
  %s6 = inlined_call_operand.vmem [shape: f32[2,8,1], index: 6, kind: output, shape index: {2}]
  %s7 = inlined_call_operand.vmem [shape: f32[2,8,1], index: 7, kind: output, shape index: {3}]
  %8 = xla_tuple %s4, %s5, %s6, %s7
  %s9 = sld [smem:[#allocation0]]
  $region111: #{conv_res_block.3} parent=0
    _
  %s11 = ssub.s32 1, %s9
  %s12 = scalar_select 0, %s11, %s9
  $region1: #{conv_res_block.3} parent=0
    #allocation2 [shape = 'u8[114688]{0}', space=vmem, size = 0x1c000, scoped, tag = 'input window, operand 0']
    loop: start=0, step=1, limit=4
    $region2: #{conv_res_block.3} parent=1 // loop_pre_header
      _
    $region3: #{conv_res_block.3} parent=1 // loop_header
      %s14 = sphi 0, %s18
      %p15 = scmp.ge.s32.totalorder %s14, 4
      %s24 = sphi 0, %s26
      %s27 = sphi 0, %s24
      %s28 = sphi 0, %s27
      %s44 = sphi 0, %s28
      %s48 = sphi 0, %s48
      %s50 = sphi 0, %s48
      %s51 = sphi 0, %s50
      %s65 = sphi 0, %s51
      %s69 = sphi 0, %s69
      %s71 = sphi 0, %s69
      %s72 = sphi 0, %s71
      %s86 = sphi 0, %s72
      %s92 = sphi 0, %s94
      %s95 = sphi 0, %s92
      %s96 = sphi 0, %s95
      %s112 = sphi 0, %s96
      %s120 = sphi 0, %s122
      %s123 = sphi 0, %s120
      %s124 = sphi 0, %s123
      %s140 = sphi 0, %s124
      %s146 = sphi 0, %s148
      %s149 = sphi 0, %s146
      %s150 = sphi 0, %s149
      %s166 = sphi 0, %s150
      %s172 = sphi 0, %s174
      %s175 = sphi 0, %s172
      %s176 = sphi 0, %s175
      %s192 = sphi 0, %s176
      %s198 = sphi 0, %s200
      %s201 = sphi 0, %s198
      %s202 = sphi 0, %s201
      %s218 = sphi 0, %s202
    $region4: #{conv_res_block.3} parent=1 // loop_header_branch
      %17 = sbr.rel (%p15) target = $region8
    $region5: #{conv_res_block.3} parent=1 // loop_body
      %s19 = ssub.s32 %s14, 1
      %s20 = ssub.s32 %s14, 2
      %s21 = sadd.s32 %s14, 1
      %s22 = ssub.s32 %s14, %s21
      %p23 = scmp.eq.s32.totalorder %s22, 0
      %s25 = sadd.s32 %s24, 1
      %s26 = scalar_select %p23, %s24, %s25
      %p29 = pneg %p23
      %p30 = scmp.eq.s32.totalorder %s14, 1
      %p31 = por %p29, %p30
      %p32 = scmp.ne.s32.totalorder %s24, %s27
      %p33 = scmp.eq.s32.totalorder %s14, 0
      %p34 = por %p32, %p33
      %p35 = scmp.ne.s32.totalorder %s24, %s27
      %p36 = scmp.eq.s32.totalorder %s19, 1
      %p37 = por %p35, %p36
      %p38 = scmp.ne.s32.totalorder %s27, %s28
      %p39 = scmp.eq.s32.totalorder %s19, 0
      %p40 = por %p38, %p39
      %p41 = scmp.ne.s32.totalorder %s27, %s28
      %p42 = scmp.eq.s32.totalorder %s20, 1
      %p43 = por %p41, %p42
      %p45 = scmp.ne.s32.totalorder %s28, %s44
      %p46 = scmp.eq.s32.totalorder %s20, 0
      %p47 = por %p45, %p46
      %s49 = sadd.s32 %s48, 1
      %p52 = scmp.eq.s32.totalorder %s14, 1
      %p53 = scmp.ne.s32.totalorder %s48, %s50
      %p54 = scmp.eq.s32.totalorder %s14, 0
      %p55 = por %p53, %p54
      %p56 = scmp.ne.s32.totalorder %s48, %s50
      %p57 = scmp.eq.s32.totalorder %s19, 1
      %p58 = por %p56, %p57
      %p59 = scmp.ne.s32.totalorder %s50, %s51
      %p60 = scmp.eq.s32.totalorder %s19, 0
      %p61 = por %p59, %p60
      %p62 = scmp.ne.s32.totalorder %s50, %s51
      %p63 = scmp.eq.s32.totalorder %s20, 1
      %p64 = por %p62, %p63
      %p66 = scmp.ne.s32.totalorder %s51, %s65
      %p67 = scmp.eq.s32.totalorder %s20, 0
      %p68 = por %p66, %p67
      %s70 = sadd.s32 %s69, 1
      %p73 = scmp.eq.s32.totalorder %s14, 1
      %p74 = scmp.ne.s32.totalorder %s69, %s71
      %p75 = scmp.eq.s32.totalorder %s14, 0
      %p76 = por %p74, %p75
      %p77 = scmp.ne.s32.totalorder %s69, %s71
      %p78 = scmp.eq.s32.totalorder %s19, 1
      %p79 = por %p77, %p78
      %p80 = scmp.ne.s32.totalorder %s71, %s72
      %p81 = scmp.eq.s32.totalorder %s19, 0
      %p82 = por %p80, %p81
      %p83 = scmp.ne.s32.totalorder %s71, %s72
      %p84 = scmp.eq.s32.totalorder %s20, 1
      %p85 = por %p83, %p84
      %p87 = scmp.ne.s32.totalorder %s72, %s86
      %p88 = scmp.eq.s32.totalorder %s20, 0
      %p89 = por %p87, %p88
      %s90 = ssub.s32 %s14, %s21
      %p91 = scmp.eq.s32.totalorder %s90, 0
      %s93 = sadd.s32 %s92, 1
      %s94 = scalar_select %p91, %s92, %s93
      %p97 = pneg %p91
      %p98 = scmp.eq.s32.totalorder %s14, 1
      %p99 = por %p97, %p98
      %p100 = scmp.ne.s32.totalorder %s92, %s95
      %p101 = scmp.eq.s32.totalorder %s14, 0
      %p102 = por %p100, %p101
      %p103 = scmp.ne.s32.totalorder %s92, %s95
      %p104 = scmp.eq.s32.totalorder %s19, 1
      %p105 = por %p103, %p104
      %p106 = scmp.ne.s32.totalorder %s95, %s96
      %p107 = scmp.eq.s32.totalorder %s19, 0
      %p108 = por %p106, %p107
      %p109 = scmp.ne.s32.totalorder %s95, %s96
      %p110 = scmp.eq.s32.totalorder %s20, 1
      %p111 = por %p109, %p110
      %p113 = scmp.ne.s32.totalorder %s96, %s112
      %p114 = scmp.eq.s32.totalorder %s20, 0
      %p115 = por %p113, %p114
      %s116 = sadd.s32 %s14, 1
      %s117 = sadd.s32 %s21, 1
      %s118 = ssub.s32 %s116, %s117
      %p119 = scmp.eq.s32.totalorder %s118, 0
      %s121 = sadd.s32 %s120, 1
      %s122 = scalar_select %p119, %s120, %s121
      %p125 = pneg %p119
      %p126 = scmp.eq.s32.totalorder %s14, 1
      %p127 = por %p125, %p126
      %p128 = scmp.ne.s32.totalorder %s120, %s123
      %p129 = scmp.eq.s32.totalorder %s14, 0
      %p130 = por %p128, %p129
      %p131 = scmp.ne.s32.totalorder %s120, %s123
      %p132 = scmp.eq.s32.totalorder %s19, 1
      %p133 = por %p131, %p132
      %p134 = scmp.ne.s32.totalorder %s123, %s124
      %p135 = scmp.eq.s32.totalorder %s19, 0
      %p136 = por %p134, %p135
      %p137 = scmp.ne.s32.totalorder %s123, %s124
      %p138 = scmp.eq.s32.totalorder %s20, 1
      %p139 = por %p137, %p138
      %p141 = scmp.ne.s32.totalorder %s124, %s140
      %p142 = scmp.eq.s32.totalorder %s20, 0
      %p143 = por %p141, %p142
      %s144 = ssub.s32 %s14, %s21
      %p145 = scmp.eq.s32.totalorder %s144, 0
      %s147 = sadd.s32 %s146, 1
      %s148 = scalar_select %p145, %s146, %s147
      %p151 = pneg %p145
      %p152 = scmp.eq.s32.totalorder %s14, 1
      %p153 = por %p151, %p152
      %p154 = scmp.ne.s32.totalorder %s146, %s149
      %p155 = scmp.eq.s32.totalorder %s14, 0
      %p156 = por %p154, %p155
      %p157 = scmp.ne.s32.totalorder %s146, %s149
      %p158 = scmp.eq.s32.totalorder %s19, 1
      %p159 = por %p157, %p158
      %p160 = scmp.ne.s32.totalorder %s149, %s150
      %p161 = scmp.eq.s32.totalorder %s19, 0
      %p162 = por %p160, %p161
      %p163 = scmp.ne.s32.totalorder %s149, %s150
      %p164 = scmp.eq.s32.totalorder %s20, 1
      %p165 = por %p163, %p164
      %p167 = scmp.ne.s32.totalorder %s150, %s166
      %p168 = scmp.eq.s32.totalorder %s20, 0
      %p169 = por %p167, %p168
      %s170 = ssub.s32 %s14, %s21
      %p171 = scmp.eq.s32.totalorder %s170, 0
      %s173 = sadd.s32 %s172, 1
      %s174 = scalar_select %p171, %s172, %s173
      %p177 = pneg %p171
      %p178 = scmp.eq.s32.totalorder %s14, 1
      %p179 = por %p177, %p178
      %p180 = scmp.ne.s32.totalorder %s172, %s175
      %p181 = scmp.eq.s32.totalorder %s14, 0
      %p182 = por %p180, %p181
      %p183 = scmp.ne.s32.totalorder %s172, %s175
      %p184 = scmp.eq.s32.totalorder %s19, 1
      %p185 = por %p183, %p184
      %p186 = scmp.ne.s32.totalorder %s175, %s176
      %p187 = scmp.eq.s32.totalorder %s19, 0
      %p188 = por %p186, %p187
      %p189 = scmp.ne.s32.totalorder %s175, %s176
      %p190 = scmp.eq.s32.totalorder %s20, 1
      %p191 = por %p189, %p190
      %p193 = scmp.ne.s32.totalorder %s176, %s192
      %p194 = scmp.eq.s32.totalorder %s20, 0
      %p195 = por %p193, %p194
      %s196 = ssub.s32 %s14, %s21
      %p197 = scmp.eq.s32.totalorder %s196, 0
      %s199 = sadd.s32 %s198, 1
      %s200 = scalar_select %p197, %s198, %s199
      %p203 = pneg %p197
      %p204 = scmp.eq.s32.totalorder %s14, 1
      %p205 = por %p203, %p204
      %p206 = scmp.ne.s32.totalorder %s198, %s201
      %p207 = scmp.eq.s32.totalorder %s14, 0
      %p208 = por %p206, %p207
      %p209 = scmp.ne.s32.totalorder %s198, %s201
      %p210 = scmp.eq.s32.totalorder %s19, 1
      %p211 = por %p209, %p210
      %p212 = scmp.ne.s32.totalorder %s201, %s202
      %p213 = scmp.eq.s32.totalorder %s19, 0
      %p214 = por %p212, %p213
      %p215 = scmp.ne.s32.totalorder %s201, %s202
      %p216 = scmp.eq.s32.totalorder %s20, 1
      %p217 = por %p215, %p216
      %p219 = scmp.ne.s32.totalorder %s202, %s218
      %p220 = scmp.eq.s32.totalorder %s20, 0
      %p221 = por %p219, %p220
      %p222 = scmp.le.s32.totalorder 1, %s14
      %p223 = scmp.lt.s32.totalorder %s14, 3
      %p224 = pnand %p222, %p223
      %p225 = pneg %p224
      // Predicated region
      $region9: #{conv_res_block.3} parent=5 // pred_check
        _
      $region10: #{conv_res_block.3} parent=5 // pred_check_branch
        %227 = sbr.rel (%p224) target = $region12
      $region11: #{conv_res_block.3} parent=5 // pred_region
        %s228 = ssub.s32 %s14, 1
        // Predicated region
        $region13: #{conv_res_block.3} parent=11 // pred_check
          %p229 = pneg %p61
        $region14: #{conv_res_block.3} parent=11 // pred_check_branch
          %231 = sbr.rel (%p229) target = $region16
        $region15: #{conv_res_block.3} parent=11 // pred_region
          _
        $region16: #{conv_res_block.3} parent=11 // pred_fallthru
          _
        // Predicated region
        $region17: #{conv_res_block.3} parent=11 // pred_check
          %p232 = pneg %p82
        $region18: #{conv_res_block.3} parent=11 // pred_check_branch
          %234 = sbr.rel (%p232) target = $region20
        $region19: #{conv_res_block.3} parent=11 // pred_region
          _
        $region20: #{conv_res_block.3} parent=11 // pred_fallthru
          _
      $region12: #{conv_res_block.3} parent=5 // pred_fallthru
        _
      %p235 = scmp.lt.s32.totalorder %s14, 2
      // Predicated region
      $region21: #{conv_res_block.3} parent=5 // pred_check
        %p236 = pneg %p235
      $region22: #{conv_res_block.3} parent=5 // pred_check_branch
        %238 = sbr.rel (%p236) target = $region24
      $region23: #{conv_res_block.3} parent=5 // pred_region
        // Predicated region
        $region25: #{conv_res_block.3} parent=23 // pred_check
          %p239 = pneg %p34
        $region26: #{conv_res_block.3} parent=23 // pred_check_branch
          %241 = sbr.rel (%p239) target = $region28
        $region27: #{conv_res_block.3} parent=23 // pred_region
          %s242 = sand.u32 %s24, 1
          %s243 = sand.u32 %s24, 1
          %s244 = smul.addr %s243, 112
          %s245 = scalar_lea.vmem [#allocation2], %s244
          %s246 = smul.u32 2, %s14
          %s247 = smul.addr %s246, 4
          %s248 = scalar_lea.vmem %s0, %s247
          // Predicated region
          $region29: #{conv_res_block.3} parent=27 // pred_check
            _
          $region30: #{conv_res_block.3} parent=27 // pred_check_branch
            %250 = sbr.rel (0) target = $region32
          $region31: #{conv_res_block.3} parent=27 // pred_region
            // Predicated region
            $region33: #{conv_res_block.3} parent=31 // pred_check
              _
            $region34: #{conv_res_block.3} parent=31 // pred_check_branch
              %252 = sbr.rel (0) target = $region36
            $region35: #{conv_res_block.3} parent=31 // pred_region
              // Predicated region
              $region48: #{conv_res_block.3} parent=35 // pred_check
                _
              $region49: #{conv_res_block.3} parent=35 // pred_check_branch
                %293 = sbr.rel (0) target = $region51
              $region50: #{conv_res_block.3} parent=35 // pred_region
                loop: start=0, step=1, limit=1
                $region52: #{conv_res_block.3} parent=50 // loop_pre_header
                  _
                $region53: #{conv_res_block.3} parent=50 // loop_header
                  %s295 = sphi 0, %s299
                  %p296 = scmp.ge.s32.totalorder %s295, 1
                  %s300 = sphi %s248, %s248
                  %s301 = sphi %s245, %s245
                $region54: #{conv_res_block.3} parent=50 // loop_header_branch
                  %298 = sbr.rel (%p296) target = $region58
                $region55: #{conv_res_block.3} parent=50 // loop_body
                  %v302 = vld [vmem:[%s300] sm:$0xff]
                  %303 = vst [vmem:[%s301] sm:$0xff] %v302
                  %v304 = vld [vmem:[%s300 + $0x10] sm:$0xff]
                  %305 = vst [vmem:[%s301 + $0x8] sm:$0xff] %v304
                  %v306 = vld [vmem:[%s300 + $0x20] sm:$0xff]
                  %307 = vst [vmem:[%s301 + $0x10] sm:$0xff] %v306
                  %v308 = vld [vmem:[%s300 + $0x30] sm:$0xff]
                  %309 = vst [vmem:[%s301 + $0x18] sm:$0xff] %v308
                  %v310 = vld [vmem:[%s300 + $0x40] sm:$0xff]
                  %311 = vst [vmem:[%s301 + $0x20] sm:$0xff] %v310
                  %v312 = vld [vmem:[%s300 + $0x50] sm:$0xff]
                  %313 = vst [vmem:[%s301 + $0x28] sm:$0xff] %v312
                  %v314 = vld [vmem:[%s300 + $0x60] sm:$0xff]
                  %315 = vst [vmem:[%s301 + $0x30] sm:$0xff] %v314
                  %v316 = vld [vmem:[%s300 + $0x70] sm:$0xff]
                  %317 = vst [vmem:[%s301 + $0x38] sm:$0xff] %v316
                  %v318 = vld [vmem:[%s300 + $0x80] sm:$0xff]
                  %319 = vst [vmem:[%s301 + $0x40] sm:$0xff] %v318
                  %v320 = vld [vmem:[%s300 + $0x90] sm:$0xff]
                  %321 = vst [vmem:[%s301 + $0x48] sm:$0xff] %v320
                  %v322 = vld [vmem:[%s300 + $0xa0] sm:$0xff]
                  %323 = vst [vmem:[%s301 + $0x50] sm:$0xff] %v322
                  %v324 = vld [vmem:[%s300 + $0xb0] sm:$0xff]
                  %325 = vst [vmem:[%s301 + $0x58] sm:$0xff] %v324
                  %v326 = vld [vmem:[%s300 + $0xc0] sm:$0xff]
                  %327 = vst [vmem:[%s301 + $0x60] sm:$0xff] %v326
                  %v328 = vld [vmem:[%s300 + $0xd0] sm:$0xff]
                  %329 = vst [vmem:[%s301 + $0x68] sm:$0xff] %v328
                $region56: #{conv_res_block.3} parent=50 // loop_footer
                  %s299 = sadd.s32 1, %s295
                $region57: #{conv_res_block.3} parent=50 // loop_footer_branch
                  %294 = sbr.rel target = $region53
                $region58: #{conv_res_block.3} parent=50 // loop_exit
                  _
              $region51: #{conv_res_block.3} parent=35 // pred_fallthru
                _
              // Predicated region
              $region59: #{conv_res_block.3} parent=35 // pred_check
                _
              $region60: #{conv_res_block.3} parent=35 // pred_check_branch
                %331 = sbr.rel target = $region62
              $region61: #{conv_res_block.3} parent=35 // pred_region
                _
              $region62: #{conv_res_block.3} parent=35 // pred_fallthru
                _
            $region36: #{conv_res_block.3} parent=31 // pred_fallthru
              _
            // Predicated region
            $region37: #{conv_res_block.3} parent=31 // pred_check
              _
            $region38: #{conv_res_block.3} parent=31 // pred_check_branch
              %254 = sbr.rel target = $region40
            $region39: #{conv_res_block.3} parent=31 // pred_region
              loop: start=0, step=1, limit=1
              $region41: #{conv_res_block.3} parent=39 // loop_pre_header
                _
              $region42: #{conv_res_block.3} parent=39 // loop_header
                %s257 = sphi 0, %s261
                %p258 = scmp.ge.s32.totalorder %s257, 1
                %s262 = sphi %s248, %s248
                %s263 = sphi %s245, %s245
              $region43: #{conv_res_block.3} parent=39 // loop_header_branch
                %260 = sbr.rel (%p258) target = $region47
              $region44: #{conv_res_block.3} parent=39 // loop_body
                %v264 = vld [vmem:[%s262] sm:$0xff]
                %265 = vst [vmem:[%s263] sm:$0xff] %v264
                %v266 = vld [vmem:[%s262 + $0x10] sm:$0xff]
                %267 = vst [vmem:[%s263 + $0x8] sm:$0xff] %v266
                %v268 = vld [vmem:[%s262 + $0x20] sm:$0xff]
                %269 = vst [vmem:[%s263 + $0x10] sm:$0xff] %v268
                %v270 = vld [vmem:[%s262 + $0x30] sm:$0xff]
                %271 = vst [vmem:[%s263 + $0x18] sm:$0xff] %v270
                %v272 = vld [vmem:[%s262 + $0x40] sm:$0xff]
                %273 = vst [vmem:[%s263 + $0x20] sm:$0xff] %v272
                %v274 = vld [vmem:[%s262 + $0x50] sm:$0xff]
                %275 = vst [vmem:[%s263 + $0x28] sm:$0xff] %v274
                %v276 = vld [vmem:[%s262 + $0x60] sm:$0xff]
                %277 = vst [vmem:[%s263 + $0x30] sm:$0xff] %v276
                %v278 = vld [vmem:[%s262 + $0x70] sm:$0xff]
                %279 = vst [vmem:[%s263 + $0x38] sm:$0xff] %v278
                %v280 = vld [vmem:[%s262 + $0x80] sm:$0xff]
                %281 = vst [vmem:[%s263 + $0x40] sm:$0xff] %v280
                %v282 = vld [vmem:[%s262 + $0x90] sm:$0xff]
                %283 = vst [vmem:[%s263 + $0x48] sm:$0xff] %v282
                %v284 = vld [vmem:[%s262 + $0xa0] sm:$0xff]
                %285 = vst [vmem:[%s263 + $0x50] sm:$0xff] %v284
                %v286 = vld [vmem:[%s262 + $0xb0] sm:$0xff]
                %287 = vst [vmem:[%s263 + $0x58] sm:$0xff] %v286
                %v288 = vld [vmem:[%s262 + $0xc0] sm:$0xff]
                %289 = vst [vmem:[%s263 + $0x60] sm:$0xff] %v288
                %v290 = vld [vmem:[%s262 + $0xd0] sm:$0xff]
                %291 = vst [vmem:[%s263 + $0x68] sm:$0xff] %v290
              $region45: #{conv_res_block.3} parent=39 // loop_footer
                %s261 = sadd.s32 1, %s257
              $region46: #{conv_res_block.3} parent=39 // loop_footer_branch
                %256 = sbr.rel target = $region42
              $region47: #{conv_res_block.3} parent=39 // loop_exit
                _
            $region40: #{conv_res_block.3} parent=31 // pred_fallthru
              _
          $region32: #{conv_res_block.3} parent=27 // pred_fallthru
            _
          %332 = vnop
        $region28: #{conv_res_block.3} parent=23 // pred_fallthru
          _
        // Predicated region
        $region63: #{conv_res_block.3} parent=23 // pred_check
          %p333 = pneg %p102
        $region64: #{conv_res_block.3} parent=23 // pred_check_branch
          %335 = sbr.rel (%p333) target = $region66
        $region65: #{conv_res_block.3} parent=23 // pred_region
          %s336 = smul.u32 2, %s14
          %p337 = scmp.lt.s32.totalorder %s336, 3
          %s338 = scalar_select %p337, %s336, 3
          %s339 = scalar_lea.vmem %s3, %s338
          %s340 = smul.u32 2, %s14
        $region66: #{conv_res_block.3} parent=23 // pred_fallthru
          _
      $region24: #{conv_res_block.3} parent=5 // pred_fallthru
        _
      %p341 = scmp.le.s32.totalorder 1, %s14
      %p342 = scmp.lt.s32.totalorder %s14, 3
      %p343 = pnand %p341, %p342
      %p344 = pneg %p343
      // Predicated region
      $region67: #{conv_res_block.3} parent=5 // pred_check
        _
      $region68: #{conv_res_block.3} parent=5 // pred_check_branch
        %346 = sbr.rel (%p343) target = $region70
      $region69: #{conv_res_block.3} parent=5 // pred_region
        %s347 = ssub.s32 %s14, 1
        %s348 = sand.u32 %s27, 1
        %s349 = sand.u32 %s27, 1
        %s350 = smul.addr %s349, 112
        %s351 = scalar_lea.vmem [#allocation2], %s350
        // Predicated region
        $region71: #{conv_res_block.3} parent=69 // pred_check
          %p352 = pneg %p40
        $region72: #{conv_res_block.3} parent=69 // pred_check_branch
          %354 = sbr.rel (%p352) target = $region74
        $region73: #{conv_res_block.3} parent=69 // pred_region
          _
        $region74: #{conv_res_block.3} parent=69 // pred_fallthru
          _
        %s355 = sand.u32 %s27, 1
        %s356 = sand.u32 %s27, 1
        %s357 = smul.addr %s356, 112
        %s358 = scalar_lea.vmem [#allocation2], %s357
        %p359 = pneg %p40
        %p360 = pneg %p37
        %p361 = pneg %p61
        %p362 = pneg %p58
        %p363 = pneg %p82
        %p364 = pneg %p79
        %s365 = smul.u32 2, %s19
        %p366 = scmp.lt.s32.totalorder %s365, 3
        %s367 = scalar_select %p366, %s365, 3
        %s368 = scalar_lea.vmem %s3, %s367
        %p369 = pneg %p108
        %p370 = pneg %p105
        %p371 = pneg %p136
        %p372 = pneg %p133
        %s373 = sadd.s32 %s19, 1
        %s374 = smul.u32 2, %s373
        %p375 = scmp.lt.s32.totalorder %s374, 7
        %s376 = scalar_select %p375, %s374, 7
        %s377 = smul.addr %s376, 4
        %s378 = scalar_lea.vmem %s4, %s377
        %p379 = pneg %p162
        %p380 = pneg %p159
        %s381 = smul.u32 2, %s19
        %p382 = scmp.lt.s32.totalorder %s381, 3
        %s383 = scalar_select %p382, %s381, 3
        %s384 = smul.addr %s383, 4
        %s385 = scalar_lea.vmem %s5, %s384
        %p386 = pneg %p188
        %p387 = pneg %p185
        %p388 = scmp.lt.s32.totalorder %s19, 1
        %s389 = scalar_select %p388, %s19, 1
        %s390 = smul.addr %s389, 8
        %s391 = scalar_lea.vmem %s6, %s390
        %p392 = pneg %p214
        %p393 = pneg %p211
        %p394 = scmp.lt.s32.totalorder %s19, 1
        %s395 = scalar_select %p394, %s19, 1
        %s396 = smul.addr %s395, 8
        %s397 = scalar_lea.vmem %s7, %s396
        %s398 = smul.u32 2, %s19
        %s399 = smul.u32 2, %s19
        %p400 = scmp.lt.s32.totalorder %s399, 3
        %s401 = scalar_select %p400, %s399, 3
        %s402 = scalar_lea.vmem %s3, %s401
        %s403 = smul.u32 2, %s19
        %s404 = sadd.s32 %s19, 1
        %s405 = smul.u32 2, %s404
        %p406 = scmp.lt.s32.totalorder %s405, 7
        %s407 = scalar_select %p406, %s405, 7
        %s408 = smul.addr %s407, 4
        %s409 = scalar_lea.vmem %s4, %s408
        %s410 = sadd.s32 %s19, 1
        %s411 = smul.u32 2, %s410
        %s412 = smul.u32 2, %s19
        %p413 = scmp.lt.s32.totalorder %s412, 3
        %s414 = scalar_select %p413, %s412, 3
        %s415 = smul.addr %s414, 4
        %s416 = scalar_lea.vmem %s5, %s415
        %s417 = smul.u32 2, %s19
        %p418 = scmp.lt.s32.totalorder %s19, 1
        %s419 = scalar_select %p418, %s19, 1
        %s420 = smul.addr %s419, 8
        %s421 = scalar_lea.vmem %s6, %s420
        %p422 = scmp.lt.s32.totalorder %s19, 1
        %s423 = scalar_select %p422, %s19, 1
        %s424 = smul.addr %s423, 8
        %s425 = scalar_lea.vmem %s7, %s424
        %v427 = vld [vmem:[%s1] sm:$0xf]
        %v428 = vld [vmem:[%s1 + $0x4] sm:$0xf]
        %v429 = vld [vmem:[%s351] sm:$0xff]
        %v430 = vld [vmem:[%s351 + $0x8] sm:$0xff]
        %v431 = vld [vmem:[%s351 + $0x10] sm:$0xff]
        %v432 = vld [vmem:[%s351 + $0x18] sm:$0xff]
        %v433 = vld [vmem:[%s351 + $0x20] sm:$0xff]
        %v434 = vld [vmem:[%s351 + $0x28] sm:$0xff]
        %v435 = vld [vmem:[%s351 + $0x30] sm:$0xff]
        %v436 = vld [vmem:[%s351 + $0x38] sm:$0xff]
        %v437 = vld [vmem:[%s351 + $0x40] sm:$0xff]
        %v438 = vld [vmem:[%s351 + $0x48] sm:$0xff]
        %v439 = vld [vmem:[%s351 + $0x50] sm:$0xff]
        %v440 = vld [vmem:[%s351 + $0x58] sm:$0xff]
        %v441 = vld [vmem:[%s351 + $0x60] sm:$0xff]
        %v442 = vld [vmem:[%s351 + $0x68] sm:$0xff]
        %v445 = vunpack.c.l.b16 %v427
        %v446 = vunpack.c.l.b16 %v428
        %v447 = vpack.c.b16 %v446, %v445
        %v462 = vunpack.c.l.b16 %v429
        %v463 = vunpack.c.h.b16 %v429
        %v464 = vunpack.c.l.b16 %v430
        %v465 = vunpack.c.h.b16 %v430
        %v466 = vunpack.c.l.b16 %v431
        %v467 = vunpack.c.h.b16 %v431
        %v468 = vunpack.c.l.b16 %v432
        %v469 = vunpack.c.h.b16 %v432
        %v470 = vunpack.c.l.b16 %v433
        %v471 = vunpack.c.h.b16 %v433
        %v472 = vunpack.c.l.b16 %v434
        %v473 = vunpack.c.h.b16 %v434
        %v474 = vunpack.c.l.b16 %v435
        %v475 = vunpack.c.h.b16 %v435
        %v476 = vunpack.c.l.b16 %v436
        %v477 = vunpack.c.h.b16 %v436
        %v478 = vunpack.c.l.b16 %v437
        %v479 = vunpack.c.h.b16 %v437
        %v480 = vunpack.c.l.b16 %v438
        %v481 = vunpack.c.h.b16 %v438
        %v482 = vunpack.c.l.b16 %v439
        %v483 = vunpack.c.h.b16 %v439
        %v484 = vunpack.c.l.b16 %v440
        %v485 = vunpack.c.h.b16 %v440
        %v486 = vunpack.c.l.b16 %v441
        %v487 = vunpack.c.h.b16 %v441
        %v488 = vunpack.c.l.b16 %v442
        %v489 = vunpack.c.h.b16 %v442
        %v490 = vpack.c.b16 %v464, %v462
        %v491 = vpack.c.b16 %v465, %v463
        %v492 = vpack.c.b16 %v468, %v466
        %v493 = vpack.c.b16 %v469, %v467
        %v494 = vpack.c.b16 %v472, %v470
        %v495 = vpack.c.b16 %v473, %v471
        %v496 = vpack.c.b16 %v476, %v474
        %v497 = vpack.c.b16 %v477, %v475
        %v498 = vpack.c.b16 %v480, %v478
        %v499 = vpack.c.b16 %v481, %v479
        %v500 = vpack.c.b16 %v484, %v482
        %v501 = vpack.c.b16 %v485, %v483
        %v502 = vpack.c.b16 %v488, %v486
        %v503 = vpack.c.b16 %v489, %v487
        %vm518 = vcmask 916480
        %v520 = vsel %vm518, %v447, 0
        %522 = vmatprep.subr.bf16.mxu0 %v491
        %523 = vmatpush1.bf16.msra.mxu0 %v490
        %524 = vmatprep.subr.bf16.mxu0 %v493
        %525 = vmatpush1.bf16.msra.mxu0 %v492
        %526 = vmatprep.subr.bf16.mxu0 %v495
        %527 = vmatpush1.bf16.msra.mxu0 %v494
        %528 = vmatprep.subr.bf16.mxu0 %v497
        %529 = vmatpush1.bf16.msra.mxu0 %v496
        %530 = vmatprep.subr.bf16.mxu0 %v499
        %531 = vmatpush1.bf16.msra.mxu0 %v498
        %532 = vmatprep.subr.bf16.mxu0 %v501
        %533 = vmatpush1.bf16.msra.mxu0 %v500
        %534 = vmatprep.subr.bf16.mxu0 %v503
        %535 = vmatpush1.bf16.msra.mxu0 %v502
        %536 = vmatprep.subr.bf16.mxu0 0
        %537 = vmatpush1.bf16.msra.mxu0 0
        %538 = vmatprep.subr.bf16.mxu0 0
        %539 = vmatpush1.bf16.msra.mxu0 0
        %540 = vmatprep.subr.bf16.mxu0 0
        %541 = vmatpush1.bf16.msra.mxu0 0
        %542 = vmatprep.subr.bf16.mxu0 0
        %543 = vmatpush1.bf16.msra.mxu0 0
        %544 = vmatprep.subr.bf16.mxu0 0
        %545 = vmatpush1.bf16.msra.mxu0 0
        %546 = vmatprep.subr.bf16.mxu0 0
        %547 = vmatpush1.bf16.msra.mxu0 0
        %548 = vmatprep.subr.bf16.mxu0 0
        %549 = vmatpush1.bf16.msra.mxu0 0
        %550 = vmatprep.subr.bf16.mxu0 0
        %551 = vmatpush1.bf16.msra.mxu0 0
        %552 = vmatprep.subr.bf16.mxu0 0
        %553 = vmatpush1.bf16.msra.mxu0 0
        %554 = vmatprep.mubr.bf16.mxu0 0
        %555 = vmatmul.mubr.bf16.gmra.mrb[0].mxu0 %v520
        %v556 = vpop.f32.mrb[0].mxu0
        %v557 = vadd.f32 0.0, %v556
        %v558 = vpop.f32.mrb[0].mxu0
        %v559 = vadd.f32 0.0, %v558
        %v560 = vpop.f32.mrb[0].mxu0
        %v561 = vadd.f32 0.0, %v560
        %v562 = vpop.f32.mrb[0].mxu0
        %v563 = vadd.f32 0.0, %v562
        %564 = vdwg.mxu0
        %v565 = vld [vmem:[%s2] sm:$0xff]
        %567 = vset.pattern.permute.xlu0 0
        %568 = vperm.xlu0 %567, %v565
        %v569 = vpop.permute.xlu0 %568
        %v571 = vadd.f32 %v557, %v569
        %v572 = vadd.f32 %v559, %v569
        %vm573 = vcmp.gt.f32.partialorder %v571, 0.0
        %vm574 = vcmp.gt.f32.partialorder %v572, 0.0
        %v575 = vmul.f32 %v571, 0.01
        %v576 = vmul.f32 %v572, 0.01
        %v577 = vsel %vm573, %v571, %v575
        %v578 = vsel %vm574, %v572, %v576
        %v579 = vld [vmem:[%s402] sm:$0x3]
        %v581 = vlaneseq
        %v582 = vshrl.u32 %v581, 7
        %v583 = vsub.s32 0, %v582
        %v584 = vrot.slane %v579, %v583
        %v585 = vlaneseq
        %v586 = vshrl.u32 %v585, 7
        %v587 = vsub.s32 1, %v586
        %v588 = vrot.slane %v579, %v587
        %v591 = vmul.f32 %v577, %v584
        %v592 = vmul.f32 %v578, %v588
        %v593 = vpack.c.bf16 %v591, %v591
        %v594 = vpack.c.bf16 %v592, %v592
        %v597 = vunpack.c.l.b16 %v593
        %v598 = vunpack.c.l.b16 %v594
        %v599 = vpack.c.b16 %v598, %v597
        %601 = vst [vmem:[%s409] sm:$0xff] %v599
        %v602 = vpack.c.bf16 %v561, %v561
        %v603 = vpack.c.bf16 %v563, %v563
        %v606 = vunpack.c.l.b16 %v602
        %v607 = vunpack.c.l.b16 %v603
        %v608 = vpack.c.b16 %v607, %v606
        %610 = vst [vmem:[%s416] sm:$0xff] %v608
        %v611 = vadd.f32 %v561, %v563
        %612 = vadd.xlane.f32.xlu0 %v611
        %v613 = vpop.xlane.xlu0 %612
        %vm614 = vcmask 7168
        %615 = vst.msk [vmem:[%s421] sm:$0xff] %vm614, %v613
        %v616 = vmul.f32 %v561, %v561
        %v617 = vmul.f32 %v563, %v563
        %v618 = vadd.f32 %v616, %v617
        %619 = vadd.xlane.f32.xlu0 %v618
        %v620 = vpop.xlane.xlu0 %619
        %621 = vst.msk [vmem:[%s425] sm:$0xff] %vm614, %v620
        %s622 = sadd.s32 %s19, 1
        %s623 = smul.u32 2, %s622
        %p624 = scmp.lt.s32.totalorder %s623, 7
        %s625 = scalar_select %p624, %s623, 7
        %s626 = smul.addr %s625, 4
        %s627 = scalar_lea.vmem %s4, %s626
        %s628 = smul.u32 2, %s19
        %p629 = scmp.lt.s32.totalorder %s628, 3
        %s630 = scalar_select %p629, %s628, 3
        %s631 = smul.addr %s630, 4
        %s632 = scalar_lea.vmem %s5, %s631
        %p633 = scmp.lt.s32.totalorder %s19, 1
        %s634 = scalar_select %p633, %s19, 1
        %s635 = smul.addr %s634, 8
        %s636 = scalar_lea.vmem %s6, %s635
        %p637 = scmp.lt.s32.totalorder %s19, 1
        %s638 = scalar_select %p637, %s19, 1
        %s639 = smul.addr %s638, 8
        %s640 = scalar_lea.vmem %s7, %s639
        // Predicated region
        $region75: #{conv_res_block.3} parent=69 // pred_check
          %p641 = pneg %p133
        $region76: #{conv_res_block.3} parent=69 // pred_check_branch
          %643 = sbr.rel (%p641) target = $region78
        $region77: #{conv_res_block.3} parent=69 // pred_region
          %s644 = sadd.s32 %s19, 1
          %s645 = smul.u32 2, %s644
        $region78: #{conv_res_block.3} parent=69 // pred_fallthru
          _
        // Predicated region
        $region79: #{conv_res_block.3} parent=69 // pred_check
          %p646 = pneg %p159
        $region80: #{conv_res_block.3} parent=69 // pred_check_branch
          %648 = sbr.rel (%p646) target = $region82
        $region81: #{conv_res_block.3} parent=69 // pred_region
          %s649 = smul.u32 2, %s19
        $region82: #{conv_res_block.3} parent=69 // pred_fallthru
          _
        // Predicated region
        $region83: #{conv_res_block.3} parent=69 // pred_check
          %p650 = pneg %p185
        $region84: #{conv_res_block.3} parent=69 // pred_check_branch
          %652 = sbr.rel (%p650) target = $region86
        $region85: #{conv_res_block.3} parent=69 // pred_region
          _
        $region86: #{conv_res_block.3} parent=69 // pred_fallthru
          _
        // Predicated region
        $region87: #{conv_res_block.3} parent=69 // pred_check
          %p653 = pneg %p211
        $region88: #{conv_res_block.3} parent=69 // pred_check_branch
          %655 = sbr.rel (%p653) target = $region90
        $region89: #{conv_res_block.3} parent=69 // pred_region
          _
        $region90: #{conv_res_block.3} parent=69 // pred_fallthru
          _
      $region70: #{conv_res_block.3} parent=5 // pred_fallthru
        _
      %p656 = scmp.le.s32.totalorder 2, %s14
      // Predicated region
      $region91: #{conv_res_block.3} parent=5 // pred_check
        %p657 = pneg %p656
      $region92: #{conv_res_block.3} parent=5 // pred_check_branch
        %659 = sbr.rel (%p657) target = $region94
      $region93: #{conv_res_block.3} parent=5 // pred_region
        %s660 = ssub.s32 %s14, 2
        // Predicated region
        $region95: #{conv_res_block.3} parent=93 // pred_check
          %p661 = pneg %p139
        $region96: #{conv_res_block.3} parent=93 // pred_check_branch
          %663 = sbr.rel (%p661) target = $region98
        $region97: #{conv_res_block.3} parent=93 // pred_region
          %s664 = sadd.s32 %s20, 1
          %s665 = smul.u32 2, %s664
          %p666 = scmp.lt.s32.totalorder %s665, 7
          %s667 = scalar_select %p666, %s665, 7
          %s668 = smul.addr %s667, 4
          %s669 = scalar_lea.vmem %s4, %s668
        $region98: #{conv_res_block.3} parent=93 // pred_fallthru
          _
        // Predicated region
        $region99: #{conv_res_block.3} parent=93 // pred_check
          %p670 = pneg %p165
        $region100: #{conv_res_block.3} parent=93 // pred_check_branch
          %672 = sbr.rel (%p670) target = $region102
        $region101: #{conv_res_block.3} parent=93 // pred_region
          %s673 = smul.u32 2, %s20
          %p674 = scmp.lt.s32.totalorder %s673, 3
          %s675 = scalar_select %p674, %s673, 3
          %s676 = smul.addr %s675, 4
          %s677 = scalar_lea.vmem %s5, %s676
        $region102: #{conv_res_block.3} parent=93 // pred_fallthru
          _
        // Predicated region
        $region103: #{conv_res_block.3} parent=93 // pred_check
          %p678 = pneg %p191
        $region104: #{conv_res_block.3} parent=93 // pred_check_branch
          %680 = sbr.rel (%p678) target = $region106
        $region105: #{conv_res_block.3} parent=93 // pred_region
          %p681 = scmp.lt.s32.totalorder %s20, 1
          %s682 = scalar_select %p681, %s20, 1
          %s683 = smul.addr %s682, 8
          %s684 = scalar_lea.vmem %s6, %s683
        $region106: #{conv_res_block.3} parent=93 // pred_fallthru
          _
        // Predicated region
        $region107: #{conv_res_block.3} parent=93 // pred_check
          %p685 = pneg %p217
        $region108: #{conv_res_block.3} parent=93 // pred_check_branch
          %687 = sbr.rel (%p685) target = $region110
        $region109: #{conv_res_block.3} parent=93 // pred_region
          %p688 = scmp.lt.s32.totalorder %s20, 1
          %s689 = scalar_select %p688, %s20, 1
          %s690 = smul.addr %s689, 8
          %s691 = scalar_lea.vmem %s7, %s690
        $region110: #{conv_res_block.3} parent=93 // pred_fallthru
          _
      $region94: #{conv_res_block.3} parent=5 // pred_fallthru
        _
    $region6: #{conv_res_block.3} parent=1 // loop_footer
      %s18 = sadd.s32 1, %s14
    $region7: #{conv_res_block.3} parent=1 // loop_footer_branch
      %13 = sbr.rel target = $region3
    $region8: #{conv_res_block.3} parent=1 // loop_exit
      _

// kernel: conv_res_block.4
$region0: #{conv_res_block.4}
  #allocation0 [shape = 'u32[]', space=smem, size = 0x4, offset = 0x4, fixed_abs, tag = 'smem constant byte address 0x4 - core index']
  #allocation1 [shape = 'u32[144,128]{1,0:T(1,128)}', space=vmem, size = 0x12000, scoped, tag = 'internal scratch']
  %s0 = inlined_call_operand.vmem [shape: bf16[8,1024], index: 0, kind: input, shape index: {}, may-alias: {0,1,2}]
  %s1 = inlined_call_operand.vmem [shape: bf16[8,1024], index: 1, kind: input, shape index: {}, may-alias: {0,1,2}]
  %s2 = inlined_call_operand.vmem [shape: bf16[8,1024], index: 2, kind: input, shape index: {}, may-alias: {0,1,2}]
  %s3 = inlined_call_operand.vmem [shape: bf16[27,8,8], index: 3, kind: input, shape index: {}]
  %s4 = inlined_call_operand.vmem [shape: f32[1,512], index: 4, kind: input, shape index: {}]
  %s5 = inlined_call_operand.vmem [shape: f32[2,8,1], index: 5, kind: output, shape index: {0}]
  %s6 = inlined_call_operand.vmem [shape: f32[2,8,1], index: 6, kind: output, shape index: {1}]
  %7 = xla_tuple %s5, %s6
  %s8 = sld [smem:[#allocation0]]
  $region61: #{conv_res_block.4} parent=0
    _
  %s10 = ssub.s32 1, %s8
  %s11 = scalar_select 0, %s10, %s8
  loop: start=0, step=1, limit=4
  $region2: #{conv_res_block.4} parent=0 // loop_pre_header
    _
  $region3: #{conv_res_block.4} parent=0 // loop_header
    %s13 = sphi 0, %s17
    %p14 = scmp.ge.s32.totalorder %s13, 4
    %s29 = sphi 0, %s31
    %s32 = sphi 0, %s29
    %s33 = sphi 0, %s32
    %s49 = sphi 0, %s33
    %s57 = sphi 0, %s59
    %s60 = sphi 0, %s57
    %s61 = sphi 0, %s60
    %s77 = sphi 0, %s61
    %s87 = sphi 0, %s89
    %s90 = sphi 0, %s87
    %s91 = sphi 0, %s90
    %s107 = sphi 0, %s91
    %s111 = sphi 0, %s111
    %s113 = sphi 0, %s111
    %s114 = sphi 0, %s113
    %s128 = sphi 0, %s114
    %s134 = sphi 0, %s136
    %s137 = sphi 0, %s134
    %s138 = sphi 0, %s137
    %s154 = sphi 0, %s138
    %s160 = sphi 0, %s162
    %s163 = sphi 0, %s160
    %s164 = sphi 0, %s163
    %s180 = sphi 0, %s164
    %s186 = sphi 0, %s188
    %s189 = sphi 0, %s186
    %s190 = sphi 0, %s189
    %s206 = sphi 0, %s190
  $region4: #{conv_res_block.4} parent=0 // loop_header_branch
    %16 = sbr.rel (%p14) target = $region8
  $region5: #{conv_res_block.4} parent=0 // loop_body
    %s18 = ssub.s32 %s13, 1
    %s19 = ssub.s32 %s13, 2
    %s20 = sadd.s32 %s13, 1
    %s21 = sadd.s32 %s13, 1
    %s22 = smul.u32 %s21, 2
    %s23 = ssub.s32 %s22, 1
    %s24 = sadd.s32 %s20, 1
    %s25 = smul.u32 %s24, 2
    %s26 = ssub.s32 %s25, 1
    %s27 = ssub.s32 %s23, %s26
    %p28 = scmp.eq.s32.totalorder %s27, 0
    %s30 = sadd.s32 %s29, 1
    %s31 = scalar_select %p28, %s29, %s30
    %p34 = pneg %p28
    %p35 = scmp.eq.s32.totalorder %s13, 1
    %p36 = por %p34, %p35
    %p37 = scmp.ne.s32.totalorder %s29, %s32
    %p38 = scmp.eq.s32.totalorder %s13, 0
    %p39 = por %p37, %p38
    %p40 = scmp.ne.s32.totalorder %s29, %s32
    %p41 = scmp.eq.s32.totalorder %s18, 1
    %p42 = por %p40, %p41
    %p43 = scmp.ne.s32.totalorder %s32, %s33
    %p44 = scmp.eq.s32.totalorder %s18, 0
    %p45 = por %p43, %p44
    %p46 = scmp.ne.s32.totalorder %s32, %s33
    %p47 = scmp.eq.s32.totalorder %s19, 1
    %p48 = por %p46, %p47
    %p50 = scmp.ne.s32.totalorder %s33, %s49
    %p51 = scmp.eq.s32.totalorder %s19, 0
    %p52 = por %p50, %p51
    %s53 = sadd.s32 %s13, 1
    %s54 = sadd.s32 %s20, 1
    %s55 = ssub.s32 %s53, %s54
    %p56 = scmp.eq.s32.totalorder %s55, 0
    %s58 = sadd.s32 %s57, 1
    %s59 = scalar_select %p56, %s57, %s58
    %p62 = pneg %p56
    %p63 = scmp.eq.s32.totalorder %s13, 1
    %p64 = por %p62, %p63
    %p65 = scmp.ne.s32.totalorder %s57, %s60
    %p66 = scmp.eq.s32.totalorder %s13, 0
    %p67 = por %p65, %p66
    %p68 = scmp.ne.s32.totalorder %s57, %s60
    %p69 = scmp.eq.s32.totalorder %s18, 1
    %p70 = por %p68, %p69
    %p71 = scmp.ne.s32.totalorder %s60, %s61
    %p72 = scmp.eq.s32.totalorder %s18, 0
    %p73 = por %p71, %p72
    %p74 = scmp.ne.s32.totalorder %s60, %s61
    %p75 = scmp.eq.s32.totalorder %s19, 1
    %p76 = por %p74, %p75
    %p78 = scmp.ne.s32.totalorder %s61, %s77
    %p79 = scmp.eq.s32.totalorder %s19, 0
    %p80 = por %p78, %p79
    %s81 = sadd.s32 %s13, 2
    %s82 = smul.u32 %s81, 2
    %s83 = sadd.s32 %s20, 2
    %s84 = smul.u32 %s83, 2
    %s85 = ssub.s32 %s82, %s84
    %p86 = scmp.eq.s32.totalorder %s85, 0
    %s88 = sadd.s32 %s87, 1
    %s89 = scalar_select %p86, %s87, %s88
    %p92 = pneg %p86
    %p93 = scmp.eq.s32.totalorder %s13, 1
    %p94 = por %p92, %p93
    %p95 = scmp.ne.s32.totalorder %s87, %s90
    %p96 = scmp.eq.s32.totalorder %s13, 0
    %p97 = por %p95, %p96
    %p98 = scmp.ne.s32.totalorder %s87, %s90
    %p99 = scmp.eq.s32.totalorder %s18, 1
    %p100 = por %p98, %p99
    %p101 = scmp.ne.s32.totalorder %s90, %s91
    %p102 = scmp.eq.s32.totalorder %s18, 0
    %p103 = por %p101, %p102
    %p104 = scmp.ne.s32.totalorder %s90, %s91
    %p105 = scmp.eq.s32.totalorder %s19, 1
    %p106 = por %p104, %p105
    %p108 = scmp.ne.s32.totalorder %s91, %s107
    %p109 = scmp.eq.s32.totalorder %s19, 0
    %p110 = por %p108, %p109
    %s112 = sadd.s32 %s111, 1
    %p115 = scmp.eq.s32.totalorder %s13, 1
    %p116 = scmp.ne.s32.totalorder %s111, %s113
    %p117 = scmp.eq.s32.totalorder %s13, 0
    %p118 = por %p116, %p117
    %p119 = scmp.ne.s32.totalorder %s111, %s113
    %p120 = scmp.eq.s32.totalorder %s18, 1
    %p121 = por %p119, %p120
    %p122 = scmp.ne.s32.totalorder %s113, %s114
    %p123 = scmp.eq.s32.totalorder %s18, 0
    %p124 = por %p122, %p123
    %p125 = scmp.ne.s32.totalorder %s113, %s114
    %p126 = scmp.eq.s32.totalorder %s19, 1
    %p127 = por %p125, %p126
    %p129 = scmp.ne.s32.totalorder %s114, %s128
    %p130 = scmp.eq.s32.totalorder %s19, 0
    %p131 = por %p129, %p130
    %s132 = ssub.s32 %s13, %s20
    %p133 = scmp.eq.s32.totalorder %s132, 0
    %s135 = sadd.s32 %s134, 1
    %s136 = scalar_select %p133, %s134, %s135
    %p139 = pneg %p133
    %p140 = scmp.eq.s32.totalorder %s13, 1
    %p141 = por %p139, %p140
    %p142 = scmp.ne.s32.totalorder %s134, %s137
    %p143 = scmp.eq.s32.totalorder %s13, 0
    %p144 = por %p142, %p143
    %p145 = scmp.ne.s32.totalorder %s134, %s137
    %p146 = scmp.eq.s32.totalorder %s18, 1
    %p147 = por %p145, %p146
    %p148 = scmp.ne.s32.totalorder %s137, %s138
    %p149 = scmp.eq.s32.totalorder %s18, 0
    %p150 = por %p148, %p149
    %p151 = scmp.ne.s32.totalorder %s137, %s138
    %p152 = scmp.eq.s32.totalorder %s19, 1
    %p153 = por %p151, %p152
    %p155 = scmp.ne.s32.totalorder %s138, %s154
    %p156 = scmp.eq.s32.totalorder %s19, 0
    %p157 = por %p155, %p156
    %s158 = ssub.s32 %s13, %s20
    %p159 = scmp.eq.s32.totalorder %s158, 0
    %s161 = sadd.s32 %s160, 1
    %s162 = scalar_select %p159, %s160, %s161
    %p165 = pneg %p159
    %p166 = scmp.eq.s32.totalorder %s13, 1
    %p167 = por %p165, %p166
    %p168 = scmp.ne.s32.totalorder %s160, %s163
    %p169 = scmp.eq.s32.totalorder %s13, 0
    %p170 = por %p168, %p169
    %p171 = scmp.ne.s32.totalorder %s160, %s163
    %p172 = scmp.eq.s32.totalorder %s18, 1
    %p173 = por %p171, %p172
    %p174 = scmp.ne.s32.totalorder %s163, %s164
    %p175 = scmp.eq.s32.totalorder %s18, 0
    %p176 = por %p174, %p175
    %p177 = scmp.ne.s32.totalorder %s163, %s164
    %p178 = scmp.eq.s32.totalorder %s19, 1
    %p179 = por %p177, %p178
    %p181 = scmp.ne.s32.totalorder %s164, %s180
    %p182 = scmp.eq.s32.totalorder %s19, 0
    %p183 = por %p181, %p182
    %s184 = ssub.s32 %s13, %s20
    %p185 = scmp.eq.s32.totalorder %s184, 0
    %s187 = sadd.s32 %s186, 1
    %s188 = scalar_select %p185, %s186, %s187
    %p191 = pneg %p185
    %p192 = scmp.eq.s32.totalorder %s13, 1
    %p193 = por %p191, %p192
    %p194 = scmp.ne.s32.totalorder %s186, %s189
    %p195 = scmp.eq.s32.totalorder %s13, 0
    %p196 = por %p194, %p195
    %p197 = scmp.ne.s32.totalorder %s186, %s189
    %p198 = scmp.eq.s32.totalorder %s18, 1
    %p199 = por %p197, %p198
    %p200 = scmp.ne.s32.totalorder %s189, %s190
    %p201 = scmp.eq.s32.totalorder %s18, 0
    %p202 = por %p200, %p201
    %p203 = scmp.ne.s32.totalorder %s189, %s190
    %p204 = scmp.eq.s32.totalorder %s19, 1
    %p205 = por %p203, %p204
    %p207 = scmp.ne.s32.totalorder %s190, %s206
    %p208 = scmp.eq.s32.totalorder %s19, 0
    %p209 = por %p207, %p208
    %p210 = scmp.le.s32.totalorder 1, %s13
    %p211 = scmp.lt.s32.totalorder %s13, 3
    %p212 = pnand %p210, %p211
    %p213 = pneg %p212
    // Predicated region
    $region9: #{conv_res_block.4} parent=5 // pred_check
      _
    $region10: #{conv_res_block.4} parent=5 // pred_check_branch
      %215 = sbr.rel (%p212) target = $region12
    $region11: #{conv_res_block.4} parent=5 // pred_region
      %s216 = ssub.s32 %s13, 1
      // Predicated region
      $region13: #{conv_res_block.4} parent=11 // pred_check
        %p217 = pneg %p124
      $region14: #{conv_res_block.4} parent=11 // pred_check_branch
        %219 = sbr.rel (%p217) target = $region16
      $region15: #{conv_res_block.4} parent=11 // pred_region
        _
      $region16: #{conv_res_block.4} parent=11 // pred_fallthru
        _
    $region12: #{conv_res_block.4} parent=5 // pred_fallthru
      _
    %p220 = scmp.lt.s32.totalorder %s13, 2
    // Predicated region
    $region17: #{conv_res_block.4} parent=5 // pred_check
      %p221 = pneg %p220
    $region18: #{conv_res_block.4} parent=5 // pred_check_branch
      %223 = sbr.rel (%p221) target = $region20
    $region19: #{conv_res_block.4} parent=5 // pred_region
      // Predicated region
      $region21: #{conv_res_block.4} parent=19 // pred_check
        %p224 = pneg %p39
      $region22: #{conv_res_block.4} parent=19 // pred_check_branch
        %226 = sbr.rel (%p224) target = $region24
      $region23: #{conv_res_block.4} parent=19 // pred_region
        %s227 = sadd.s32 %s13, 1
        %s228 = smul.u32 %s227, 2
        %s229 = ssub.s32 %s228, 1
        %p230 = scmp.lt.s32.totalorder %s229, 7
        %s231 = scalar_select %p230, %s229, 7
        %s232 = smul.addr %s231, 4
        %s233 = scalar_lea.vmem %s0, %s232
        %s234 = sadd.s32 %s13, 1
        %s235 = smul.u32 %s234, 2
        %s236 = ssub.s32 %s235, 1
      $region24: #{conv_res_block.4} parent=19 // pred_fallthru
        _
      // Predicated region
      $region25: #{conv_res_block.4} parent=19 // pred_check
        %p237 = pneg %p67
      $region26: #{conv_res_block.4} parent=19 // pred_check_branch
        %239 = sbr.rel (%p237) target = $region28
      $region27: #{conv_res_block.4} parent=19 // pred_region
        %s240 = sadd.s32 %s13, 1
        %s241 = smul.u32 2, %s240
        %p242 = scmp.lt.s32.totalorder %s241, 7
        %s243 = scalar_select %p242, %s241, 7
        %s244 = smul.addr %s243, 4
        %s245 = scalar_lea.vmem %s1, %s244
        %s246 = sadd.s32 %s13, 1
        %s247 = smul.u32 2, %s246
      $region28: #{conv_res_block.4} parent=19 // pred_fallthru
        _
      // Predicated region
      $region29: #{conv_res_block.4} parent=19 // pred_check
        %p248 = pneg %p97
      $region30: #{conv_res_block.4} parent=19 // pred_check_branch
        %250 = sbr.rel (%p248) target = $region32
      $region31: #{conv_res_block.4} parent=19 // pred_region
        %s251 = sadd.s32 %s13, 2
        %s252 = smul.u32 %s251, 2
        %p253 = scmp.lt.s32.totalorder %s252, 7
        %s254 = scalar_select %p253, %s252, 7
        %s255 = smul.addr %s254, 4
        %s256 = scalar_lea.vmem %s2, %s255
        %s257 = sadd.s32 %s13, 2
        %s258 = smul.u32 %s257, 2
      $region32: #{conv_res_block.4} parent=19 // pred_fallthru
        _
      // Predicated region
      $region33: #{conv_res_block.4} parent=19 // pred_check
        %p259 = pneg %p144
      $region34: #{conv_res_block.4} parent=19 // pred_check_branch
        %261 = sbr.rel (%p259) target = $region36
      $region35: #{conv_res_block.4} parent=19 // pred_region
        %s262 = smul.u32 2, %s13
        %p263 = scmp.lt.s32.totalorder %s262, 3
        %s264 = scalar_select %p263, %s262, 3
        %s265 = scalar_lea.vmem %s4, %s264
        %s266 = smul.u32 2, %s13
      $region36: #{conv_res_block.4} parent=19 // pred_fallthru
        _
    $region20: #{conv_res_block.4} parent=5 // pred_fallthru
      _
    %p267 = scmp.le.s32.totalorder 1, %s13
    %p268 = scmp.lt.s32.totalorder %s13, 3
    %p269 = pnand %p267, %p268
    %p270 = pneg %p269
    // Predicated region
    $region37: #{conv_res_block.4} parent=5 // pred_check
      _
    $region38: #{conv_res_block.4} parent=5 // pred_check_branch
      %272 = sbr.rel (%p269) target = $region40
    $region39: #{conv_res_block.4} parent=5 // pred_region
      %s273 = ssub.s32 %s13, 1
      %s274 = sadd.s32 %s18, 1
      %s275 = smul.u32 %s274, 2
      %s276 = ssub.s32 %s275, 1
      %p277 = scmp.lt.s32.totalorder %s276, 7
      %s278 = scalar_select %p277, %s276, 7
      %s279 = smul.addr %s278, 4
      %s280 = scalar_lea.vmem %s0, %s279
      %p281 = pneg %p45
      %p282 = pneg %p42
      %s283 = sadd.s32 %s18, 1
      %s284 = smul.u32 2, %s283
      %p285 = scmp.lt.s32.totalorder %s284, 7
      %s286 = scalar_select %p285, %s284, 7
      %s287 = smul.addr %s286, 4
      %s288 = scalar_lea.vmem %s1, %s287
      %p289 = pneg %p73
      %p290 = pneg %p70
      %s291 = sadd.s32 %s18, 2
      %s292 = smul.u32 %s291, 2
      %p293 = scmp.lt.s32.totalorder %s292, 7
      %s294 = scalar_select %p293, %s292, 7
      %s295 = smul.addr %s294, 4
      %s296 = scalar_lea.vmem %s2, %s295
      %p297 = pneg %p103
      %p298 = pneg %p100
      %p299 = pneg %p124
      %p300 = pneg %p121
      %s301 = smul.u32 2, %s18
      %p302 = scmp.lt.s32.totalorder %s301, 3
      %s303 = scalar_select %p302, %s301, 3
      %s304 = scalar_lea.vmem %s4, %s303
      %p305 = pneg %p150
      %p306 = pneg %p147
      %p307 = pneg %p176
      %p308 = pneg %p173
      %p309 = scmp.lt.s32.totalorder %s18, 1
      %s310 = scalar_select %p309, %s18, 1
      %s311 = smul.addr %s310, 8
      %s312 = scalar_lea.vmem %s5, %s311
      %p313 = pneg %p202
      %p314 = pneg %p199
      %p315 = scmp.lt.s32.totalorder %s18, 1
      %s316 = scalar_select %p315, %s18, 1
      %s317 = smul.addr %s316, 8
      %s318 = scalar_lea.vmem %s6, %s317
      %s319 = sadd.s32 %s18, 1
      %s320 = smul.u32 %s319, 2
      %s321 = ssub.s32 %s320, 1
      %p322 = scmp.lt.s32.totalorder %s321, 7
      %s323 = scalar_select %p322, %s321, 7
      %s324 = smul.addr %s323, 4
      %s325 = scalar_lea.vmem %s0, %s324
      %s326 = sadd.s32 %s18, 1
      %s327 = smul.u32 %s326, 2
      %s328 = ssub.s32 %s327, 1
      %s329 = sadd.s32 %s18, 1
      %s330 = smul.u32 2, %s329
      %p331 = scmp.lt.s32.totalorder %s330, 7
      %s332 = scalar_select %p331, %s330, 7
      %s333 = smul.addr %s332, 4
      %s334 = scalar_lea.vmem %s1, %s333
      %s335 = sadd.s32 %s18, 1
      %s336 = smul.u32 2, %s335
      %s337 = sadd.s32 %s18, 2
      %s338 = smul.u32 %s337, 2
      %p339 = scmp.lt.s32.totalorder %s338, 7
      %s340 = scalar_select %p339, %s338, 7
      %s341 = smul.addr %s340, 4
      %s342 = scalar_lea.vmem %s2, %s341
      %s343 = sadd.s32 %s18, 2
      %s344 = smul.u32 %s343, 2
      %s345 = smul.u32 2, %s18
      %p346 = scmp.lt.s32.totalorder %s345, 3
      %s347 = scalar_select %p346, %s345, 3
      %s348 = scalar_lea.vmem %s4, %s347
      %s349 = smul.u32 2, %s18
      %p350 = scmp.lt.s32.totalorder %s18, 1
      %s351 = scalar_select %p350, %s18, 1
      %s352 = smul.addr %s351, 8
      %s353 = scalar_lea.vmem %s5, %s352
      %p354 = scmp.lt.s32.totalorder %s18, 1
      %s355 = scalar_select %p354, %s18, 1
      %s356 = smul.addr %s355, 8
      %s357 = scalar_lea.vmem %s6, %s356
      %v359 = vld [vmem:[%s325] sm:$0xf]
      %v360 = vld [vmem:[%s334] sm:$0xff]
      %v361 = vld [vmem:[%s342] sm:$0xf]
      %v363 = vunpack.c.l.b16 %v360
      %v364 = vunpack.c.h.b16 %v360
      %v365 = vpack.c.b16 %v363, %v363
      %v366 = vpack.c.b16 %v364, %v364
      %v367 = vld [vmem:[%s3] sm:$0xf]
      %s368 = scalar_lea.vmem %s3, 4
      %v369 = vld [vmem:[%s368] sm:$0xf]
      %371 = vrot.lane.b32.xlu0 %v359, 42
      %v372 = vpop.permute.xlu0 %371
      %373 = vrot.lane.b32.xlu0 %v365, 42
      %v374 = vpop.permute.xlu0 %373
      %375 = vrot.lane.b32.xlu0 %v366, 42
      %v376 = vpop.permute.xlu0 %375
      %vm377 = vcmask 343040
      %v378 = vsel %vm377, %v372, %v374
      %v379 = vsel %vm377, %v374, %v376
      %vm380 = vcmask 64512
      %v382 = vsel %vm380, %v369, 0
      %vm384 = vcmask 1043456
      %v386 = vsel %vm384, %v378, 0
      %v389 = vsel %vm384, %v379, 0
      %391 = vmatprep.subr.bf16.mxu0 %v389
      %392 = vmatpush1.bf16.msra.mxu0 %v386
      %393 = vmatprep.subr.bf16.mxu0 0
      %394 = vmatpush1.bf16.msra.mxu0 0
      %395 = vmatprep.subr.bf16.mxu0 0
      %396 = vmatpush1.bf16.msra.mxu0 0
      %397 = vmatprep.subr.bf16.mxu0 0
      %398 = vmatpush1.bf16.msra.mxu0 0
      %399 = vmatprep.subr.bf16.mxu0 0
      %400 = vmatpush1.bf16.msra.mxu0 0
      %401 = vmatprep.subr.bf16.mxu0 0
      %402 = vmatpush1.bf16.msra.mxu0 0
      %403 = vmatprep.subr.bf16.mxu0 0
      %404 = vmatpush1.bf16.msra.mxu0 0
      %405 = vmatprep.subr.bf16.mxu0 0
      %406 = vmatpush1.bf16.msra.mxu0 0
      %407 = vmatprep.subr.bf16.mxu0 0
      %408 = vmatpush1.bf16.msra.mxu0 0
      %409 = vmatprep.subr.bf16.mxu0 0
      %410 = vmatpush1.bf16.msra.mxu0 0
      %411 = vmatprep.subr.bf16.mxu0 0
      %412 = vmatpush1.bf16.msra.mxu0 0
      %413 = vmatprep.subr.bf16.mxu0 0
      %414 = vmatpush1.bf16.msra.mxu0 0
      %415 = vmatprep.subr.bf16.mxu0 0
      %416 = vmatpush1.bf16.msra.mxu0 0
      %417 = vmatprep.subr.bf16.mxu0 0
      %418 = vmatpush1.bf16.msra.mxu0 0
      %419 = vmatprep.subr.bf16.mxu0 0
      %420 = vmatpush1.bf16.msra.mxu0 0
      %421 = vmatprep.subr.bf16.mxu0 0
      %422 = vmatpush1.bf16.msra.mxu0 0
      %423 = vmatprep.mubr.bf16.mxu0 0
      %424 = vmatmul.mubr.bf16.gmra.mrb[0].mxu0 %v382
      %v425 = vpop.f32.mrb[0].mxu0
      %v426 = vadd.f32 0.0, %v425
      %v427 = vpop.f32.mrb[0].mxu0
      %v428 = vadd.f32 0.0, %v427
      %v429 = vpop.f32.mrb[0].mxu0
      %v430 = vpop.f32.mrb[0].mxu0
      %431 = vdwg.mxu0
      %432 = vrot.lane.b32.xlu0 %v359, 43
      %v433 = vpop.permute.xlu0 %432
      %434 = vrot.lane.b32.xlu0 %v365, 43
      %v435 = vpop.permute.xlu0 %434
      %436 = vrot.lane.b32.xlu0 %v366, 43
      %v437 = vpop.permute.xlu0 %436
      %vm438 = vcmask 351232
      %v439 = vsel %vm438, %v433, %v435
      %v440 = vsel %vm438, %v435, %v437
      %v442 = vsel %vm380, %v367, 0
      %v445 = vsel %vm384, %v439, 0
      %v448 = vsel %vm384, %v440, 0
      %450 = vmatprep.subr.bf16.mxu0 %v448
      %451 = vmatpush1.bf16.msra.mxu0 %v445
      %452 = vmatprep.subr.bf16.mxu0 0
      %453 = vmatpush1.bf16.msra.mxu0 0
      %454 = vmatprep.subr.bf16.mxu0 0
      %455 = vmatpush1.bf16.msra.mxu0 0
      %456 = vmatprep.subr.bf16.mxu0 0
      %457 = vmatpush1.bf16.msra.mxu0 0
      %458 = vmatprep.subr.bf16.mxu0 0
      %459 = vmatpush1.bf16.msra.mxu0 0
      %460 = vmatprep.subr.bf16.mxu0 0
      %461 = vmatpush1.bf16.msra.mxu0 0
      %462 = vmatprep.subr.bf16.mxu0 0
      %463 = vmatpush1.bf16.msra.mxu0 0
      %464 = vmatprep.subr.bf16.mxu0 0
      %465 = vmatpush1.bf16.msra.mxu0 0
      %466 = vmatprep.subr.bf16.mxu0 0
      %467 = vmatpush1.bf16.msra.mxu0 0
      %468 = vmatprep.subr.bf16.mxu0 0
      %469 = vmatpush1.bf16.msra.mxu0 0
      %470 = vmatprep.subr.bf16.mxu0 0
      %471 = vmatpush1.bf16.msra.mxu0 0
      %472 = vmatprep.subr.bf16.mxu0 0
      %473 = vmatpush1.bf16.msra.mxu0 0
      %474 = vmatprep.subr.bf16.mxu0 0
      %475 = vmatpush1.bf16.msra.mxu0 0
      %476 = vmatprep.subr.bf16.mxu0 0
      %477 = vmatpush1.bf16.msra.mxu0 0
      %478 = vmatprep.subr.bf16.mxu0 0
      %479 = vmatpush1.bf16.msra.mxu0 0
      %480 = vmatprep.subr.bf16.mxu0 0
      %481 = vmatpush1.bf16.msra.mxu0 0
      %482 = vmatprep.mubr.bf16.mxu0 0
      %483 = vmatmul.mubr.bf16.gmra.mrb[0].mxu0 %v442
      %v484 = vpop.f32.mrb[0].mxu0
      %v485 = vadd.f32 %v426, %v484
      %v486 = vpop.f32.mrb[0].mxu0
      %v487 = vadd.f32 %v428, %v486
      %v488 = vpop.f32.mrb[0].mxu0
      %v489 = vpop.f32.mrb[0].mxu0
      %490 = vdwg.mxu0
      %s491 = scalar_lea.vmem %s3, 8
      %v492 = vld [vmem:[%s491] sm:$0xf]
      %493 = vrot.lane.b32.xlu0 %v359, 41
      %v494 = vpop.permute.xlu0 %493
      %495 = vrot.lane.b32.xlu0 %v365, 41
      %v496 = vpop.permute.xlu0 %495
      %497 = vrot.lane.b32.xlu0 %v366, 41
      %v498 = vpop.permute.xlu0 %497
      %vm499 = vcmask 334848
      %v500 = vsel %vm499, %v494, %v496
      %v501 = vsel %vm499, %v496, %v498
      %v503 = vsel %vm380, %v492, 0
      %v506 = vsel %vm384, %v500, 0
      %v509 = vsel %vm384, %v501, 0
      %511 = vmatprep.subr.bf16.mxu0 %v509
      %512 = vmatpush1.bf16.msra.mxu0 %v506
      %513 = vmatprep.subr.bf16.mxu0 0
      %514 = vmatpush1.bf16.msra.mxu0 0
      %515 = vmatprep.subr.bf16.mxu0 0
      %516 = vmatpush1.bf16.msra.mxu0 0
      %517 = vmatprep.subr.bf16.mxu0 0
      %518 = vmatpush1.bf16.msra.mxu0 0
      %519 = vmatprep.subr.bf16.mxu0 0
      %520 = vmatpush1.bf16.msra.mxu0 0
      %521 = vmatprep.subr.bf16.mxu0 0
      %522 = vmatpush1.bf16.msra.mxu0 0
      %523 = vmatprep.subr.bf16.mxu0 0
      %524 = vmatpush1.bf16.msra.mxu0 0
      %525 = vmatprep.subr.bf16.mxu0 0
      %526 = vmatpush1.bf16.msra.mxu0 0
      %527 = vmatprep.subr.bf16.mxu0 0
      %528 = vmatpush1.bf16.msra.mxu0 0
      %529 = vmatprep.subr.bf16.mxu0 0
      %530 = vmatpush1.bf16.msra.mxu0 0
      %531 = vmatprep.subr.bf16.mxu0 0
      %532 = vmatpush1.bf16.msra.mxu0 0
      %533 = vmatprep.subr.bf16.mxu0 0
      %534 = vmatpush1.bf16.msra.mxu0 0
      %535 = vmatprep.subr.bf16.mxu0 0
      %536 = vmatpush1.bf16.msra.mxu0 0
      %537 = vmatprep.subr.bf16.mxu0 0
      %538 = vmatpush1.bf16.msra.mxu0 0
      %539 = vmatprep.subr.bf16.mxu0 0
      %540 = vmatpush1.bf16.msra.mxu0 0
      %541 = vmatprep.subr.bf16.mxu0 0
      %542 = vmatpush1.bf16.msra.mxu0 0
      %543 = vmatprep.mubr.bf16.mxu0 0
      %544 = vmatmul.mubr.bf16.gmra.mrb[0].mxu0 %v503
      %v545 = vpop.f32.mrb[0].mxu0
      %v546 = vadd.f32 0.0, %v545
      %v547 = vpop.f32.mrb[0].mxu0
      %v548 = vadd.f32 0.0, %v547
      %v549 = vpop.f32.mrb[0].mxu0
      %v550 = vpop.f32.mrb[0].mxu0
      %551 = vdwg.mxu0
      %v552 = vadd.f32 %v485, %v546
      %v553 = vadd.f32 %v487, %v548
      %s554 = scalar_lea.vmem %s3, 12
      %v555 = vld [vmem:[%s554] sm:$0xf]
      %556 = vrot.lane.b32.xlu0 %v359, 37
      %v557 = vpop.permute.xlu0 %556
      %558 = vrot.lane.b32.xlu0 %v365, 37
      %v559 = vpop.permute.xlu0 %558
      %560 = vrot.lane.b32.xlu0 %v366, 37
      %v561 = vpop.permute.xlu0 %560
      %vm562 = vcmask 302080
      %v563 = vsel %vm562, %v557, %v559
      %v564 = vsel %vm562, %v559, %v561
      %v566 = vsel %vm380, %v555, 0
      %v569 = vsel %vm384, %v563, 0
      %v572 = vsel %vm384, %v564, 0
      %574 = vmatprep.subr.bf16.mxu0 %v572
      %575 = vmatpush1.bf16.msra.mxu0 %v569
      %576 = vmatprep.subr.bf16.mxu0 0
      %577 = vmatpush1.bf16.msra.mxu0 0
      %578 = vmatprep.subr.bf16.mxu0 0
      %579 = vmatpush1.bf16.msra.mxu0 0
      %580 = vmatprep.subr.bf16.mxu0 0
      %581 = vmatpush1.bf16.msra.mxu0 0
      %582 = vmatprep.subr.bf16.mxu0 0
      %583 = vmatpush1.bf16.msra.mxu0 0
      %584 = vmatprep.subr.bf16.mxu0 0
      %585 = vmatpush1.bf16.msra.mxu0 0
      %586 = vmatprep.subr.bf16.mxu0 0
      %587 = vmatpush1.bf16.msra.mxu0 0
      %588 = vmatprep.subr.bf16.mxu0 0
      %589 = vmatpush1.bf16.msra.mxu0 0
      %590 = vmatprep.subr.bf16.mxu0 0
      %591 = vmatpush1.bf16.msra.mxu0 0
      %592 = vmatprep.subr.bf16.mxu0 0
      %593 = vmatpush1.bf16.msra.mxu0 0
      %594 = vmatprep.subr.bf16.mxu0 0
      %595 = vmatpush1.bf16.msra.mxu0 0
      %596 = vmatprep.subr.bf16.mxu0 0
      %597 = vmatpush1.bf16.msra.mxu0 0
      %598 = vmatprep.subr.bf16.mxu0 0
      %599 = vmatpush1.bf16.msra.mxu0 0
      %600 = vmatprep.subr.bf16.mxu0 0
      %601 = vmatpush1.bf16.msra.mxu0 0
      %602 = vmatprep.subr.bf16.mxu0 0
      %603 = vmatpush1.bf16.msra.mxu0 0
      %604 = vmatprep.subr.bf16.mxu0 0
      %605 = vmatpush1.bf16.msra.mxu0 0
      %606 = vmatprep.mubr.bf16.mxu0 0
      %607 = vmatmul.mubr.bf16.gmra.mrb[0].mxu0 %v566
      %v608 = vpop.f32.mrb[0].mxu0
      %v609 = vadd.f32 0.0, %v608
      %v610 = vpop.f32.mrb[0].mxu0
      %v611 = vadd.f32 0.0, %v610
      %v612 = vpop.f32.mrb[0].mxu0
      %v613 = vpop.f32.mrb[0].mxu0
      %614 = vdwg.mxu0
      %v615 = vadd.f32 %v552, %v609
      %v616 = vadd.f32 %v553, %v611
      %s617 = scalar_lea.vmem %s3, 16
      %v618 = vld [vmem:[%s617] sm:$0xf]
      %619 = vrot.lane.b32.xlu0 %v359, 36
      %v620 = vpop.permute.xlu0 %619
      %621 = vrot.lane.b32.xlu0 %v365, 36
      %v622 = vpop.permute.xlu0 %621
      %623 = vrot.lane.b32.xlu0 %v366, 36
      %v624 = vpop.permute.xlu0 %623
      %vm625 = vcmask 293888
      %v626 = vsel %vm625, %v620, %v622
      %v627 = vsel %vm625, %v622, %v624
      %v629 = vsel %vm380, %v618, 0
      %v632 = vsel %vm384, %v626, 0
      %v635 = vsel %vm384, %v627, 0
      %637 = vmatprep.subr.bf16.mxu0 %v635
      %638 = vmatpush1.bf16.msra.mxu0 %v632
      %639 = vmatprep.subr.bf16.mxu0 0
      %640 = vmatpush1.bf16.msra.mxu0 0
      %641 = vmatprep.subr.bf16.mxu0 0
      %642 = vmatpush1.bf16.msra.mxu0 0
      %643 = vmatprep.subr.bf16.mxu0 0
      %644 = vmatpush1.bf16.msra.mxu0 0
      %645 = vmatprep.subr.bf16.mxu0 0
      %646 = vmatpush1.bf16.msra.mxu0 0
      %647 = vmatprep.subr.bf16.mxu0 0
      %648 = vmatpush1.bf16.msra.mxu0 0
      %649 = vmatprep.subr.bf16.mxu0 0
      %650 = vmatpush1.bf16.msra.mxu0 0
      %651 = vmatprep.subr.bf16.mxu0 0
      %652 = vmatpush1.bf16.msra.mxu0 0
      %653 = vmatprep.subr.bf16.mxu0 0
      %654 = vmatpush1.bf16.msra.mxu0 0
      %655 = vmatprep.subr.bf16.mxu0 0
      %656 = vmatpush1.bf16.msra.mxu0 0
      %657 = vmatprep.subr.bf16.mxu0 0
      %658 = vmatpush1.bf16.msra.mxu0 0
      %659 = vmatprep.subr.bf16.mxu0 0
      %660 = vmatpush1.bf16.msra.mxu0 0
      %661 = vmatprep.subr.bf16.mxu0 0
      %662 = vmatpush1.bf16.msra.mxu0 0
      %663 = vmatprep.subr.bf16.mxu0 0
      %664 = vmatpush1.bf16.msra.mxu0 0
      %665 = vmatprep.subr.bf16.mxu0 0
      %666 = vmatpush1.bf16.msra.mxu0 0
      %667 = vmatprep.subr.bf16.mxu0 0
      %668 = vmatpush1.bf16.msra.mxu0 0
      %669 = vmatprep.mubr.bf16.mxu0 0
      %670 = vmatmul.mubr.bf16.gmra.mrb[0].mxu0 %v629
      %v671 = vpop.f32.mrb[0].mxu0
      %v672 = vadd.f32 0.0, %v671
      %v673 = vpop.f32.mrb[0].mxu0
      %v674 = vadd.f32 0.0, %v673
      %v675 = vpop.f32.mrb[0].mxu0
      %v676 = vpop.f32.mrb[0].mxu0
      %677 = vdwg.mxu0
      %v678 = vadd.f32 %v615, %v672
      %v679 = vadd.f32 %v616, %v674
      %s680 = scalar_lea.vmem %s3, 20
      %v681 = vld [vmem:[%s680] sm:$0xf]
      %682 = vrot.lane.b32.xlu0 %v359, 35
      %v683 = vpop.permute.xlu0 %682
      %684 = vrot.lane.b32.xlu0 %v365, 35
      %v685 = vpop.permute.xlu0 %684
      %686 = vrot.lane.b32.xlu0 %v366, 35
      %v687 = vpop.permute.xlu0 %686
      %vm688 = vcmask 285696
      %v689 = vsel %vm688, %v683, %v685
      %v690 = vsel %vm688, %v685, %v687
      %v692 = vsel %vm380, %v681, 0
      %v695 = vsel %vm384, %v689, 0
      %v698 = vsel %vm384, %v690, 0
      %700 = vmatprep.subr.bf16.mxu0 %v698
      %701 = vmatpush1.bf16.msra.mxu0 %v695
      %702 = vmatprep.subr.bf16.mxu0 0
      %703 = vmatpush1.bf16.msra.mxu0 0
      %704 = vmatprep.subr.bf16.mxu0 0
      %705 = vmatpush1.bf16.msra.mxu0 0
      %706 = vmatprep.subr.bf16.mxu0 0
      %707 = vmatpush1.bf16.msra.mxu0 0
      %708 = vmatprep.subr.bf16.mxu0 0
      %709 = vmatpush1.bf16.msra.mxu0 0
      %710 = vmatprep.subr.bf16.mxu0 0
      %711 = vmatpush1.bf16.msra.mxu0 0
      %712 = vmatprep.subr.bf16.mxu0 0
      %713 = vmatpush1.bf16.msra.mxu0 0
      %714 = vmatprep.subr.bf16.mxu0 0
      %715 = vmatpush1.bf16.msra.mxu0 0
      %716 = vmatprep.subr.bf16.mxu0 0
      %717 = vmatpush1.bf16.msra.mxu0 0
      %718 = vmatprep.subr.bf16.mxu0 0
      %719 = vmatpush1.bf16.msra.mxu0 0
      %720 = vmatprep.subr.bf16.mxu0 0
      %721 = vmatpush1.bf16.msra.mxu0 0
      %722 = vmatprep.subr.bf16.mxu0 0
      %723 = vmatpush1.bf16.msra.mxu0 0
      %724 = vmatprep.subr.bf16.mxu0 0
      %725 = vmatpush1.bf16.msra.mxu0 0
      %726 = vmatprep.subr.bf16.mxu0 0
      %727 = vmatpush1.bf16.msra.mxu0 0
      %728 = vmatprep.subr.bf16.mxu0 0
      %729 = vmatpush1.bf16.msra.mxu0 0
      %730 = vmatprep.subr.bf16.mxu0 0
      %731 = vmatpush1.bf16.msra.mxu0 0
      %732 = vmatprep.mubr.bf16.mxu0 0
      %733 = vmatmul.mubr.bf16.gmra.mrb[0].mxu0 %v692
      %v734 = vpop.f32.mrb[0].mxu0
      %v735 = vadd.f32 0.0, %v734
      %v736 = vpop.f32.mrb[0].mxu0
      %v737 = vadd.f32 0.0, %v736
      %v738 = vpop.f32.mrb[0].mxu0
      %v739 = vpop.f32.mrb[0].mxu0
      %740 = vdwg.mxu0
      %v741 = vadd.f32 %v678, %v735
      %v742 = vadd.f32 %v679, %v737
      %s743 = scalar_lea.vmem %s3, 24
      %v744 = vld [vmem:[%s743] sm:$0xf]
      %745 = vrot.lane.b32.xlu0 %v359, 31
      %v746 = vpop.permute.xlu0 %745
      %747 = vrot.lane.b32.xlu0 %v365, 31
      %v748 = vpop.permute.xlu0 %747
      %749 = vrot.lane.b32.xlu0 %v366, 31
      %v750 = vpop.permute.xlu0 %749
      %vm751 = vcmask 252928
      %v752 = vsel %vm751, %v746, %v748
      %v753 = vsel %vm751, %v748, %v750
      %v755 = vsel %vm380, %v744, 0
      %v758 = vsel %vm384, %v752, 0
      %v761 = vsel %vm384, %v753, 0
      %763 = vmatprep.subr.bf16.mxu0 %v761
      %764 = vmatpush1.bf16.msra.mxu0 %v758
      %765 = vmatprep.subr.bf16.mxu0 0
      %766 = vmatpush1.bf16.msra.mxu0 0
      %767 = vmatprep.subr.bf16.mxu0 0
      %768 = vmatpush1.bf16.msra.mxu0 0
      %769 = vmatprep.subr.bf16.mxu0 0
      %770 = vmatpush1.bf16.msra.mxu0 0
      %771 = vmatprep.subr.bf16.mxu0 0
      %772 = vmatpush1.bf16.msra.mxu0 0
      %773 = vmatprep.subr.bf16.mxu0 0
      %774 = vmatpush1.bf16.msra.mxu0 0
      %775 = vmatprep.subr.bf16.mxu0 0
      %776 = vmatpush1.bf16.msra.mxu0 0
      %777 = vmatprep.subr.bf16.mxu0 0
      %778 = vmatpush1.bf16.msra.mxu0 0
      %779 = vmatprep.subr.bf16.mxu0 0
      %780 = vmatpush1.bf16.msra.mxu0 0
      %781 = vmatprep.subr.bf16.mxu0 0
      %782 = vmatpush1.bf16.msra.mxu0 0
      %783 = vmatprep.subr.bf16.mxu0 0
      %784 = vmatpush1.bf16.msra.mxu0 0
      %785 = vmatprep.subr.bf16.mxu0 0
      %786 = vmatpush1.bf16.msra.mxu0 0
      %787 = vmatprep.subr.bf16.mxu0 0
      %788 = vmatpush1.bf16.msra.mxu0 0
      %789 = vmatprep.subr.bf16.mxu0 0
      %790 = vmatpush1.bf16.msra.mxu0 0
      %791 = vmatprep.subr.bf16.mxu0 0
      %792 = vmatpush1.bf16.msra.mxu0 0
      %793 = vmatprep.subr.bf16.mxu0 0
      %794 = vmatpush1.bf16.msra.mxu0 0
      %795 = vmatprep.mubr.bf16.mxu0 0
      %796 = vmatmul.mubr.bf16.gmra.mrb[0].mxu0 %v755
      %v797 = vpop.f32.mrb[0].mxu0
      %v798 = vadd.f32 0.0, %v797
      %v799 = vpop.f32.mrb[0].mxu0
      %v800 = vadd.f32 0.0, %v799
      %v801 = vpop.f32.mrb[0].mxu0
      %v802 = vpop.f32.mrb[0].mxu0
      %803 = vdwg.mxu0
      %v804 = vadd.f32 %v741, %v798
      %v805 = vadd.f32 %v742, %v800
      %s806 = scalar_lea.vmem %s3, 28
      %v807 = vld [vmem:[%s806] sm:$0xf]
      %808 = vrot.lane.b32.xlu0 %v359, 30
      %v809 = vpop.permute.xlu0 %808
      %810 = vrot.lane.b32.xlu0 %v365, 30
      %v811 = vpop.permute.xlu0 %810
      %812 = vrot.lane.b32.xlu0 %v366, 30
      %v813 = vpop.permute.xlu0 %812
      %vm814 = vcmask 244736
      %v815 = vsel %vm814, %v809, %v811
      %v816 = vsel %vm814, %v811, %v813
      %v818 = vsel %vm380, %v807, 0
      %v821 = vsel %vm384, %v815, 0
      %v824 = vsel %vm384, %v816, 0
      %826 = vmatprep.subr.bf16.mxu0 %v824
      %827 = vmatpush1.bf16.msra.mxu0 %v821
      %828 = vmatprep.subr.bf16.mxu0 0
      %829 = vmatpush1.bf16.msra.mxu0 0
      %830 = vmatprep.subr.bf16.mxu0 0
      %831 = vmatpush1.bf16.msra.mxu0 0
      %832 = vmatprep.subr.bf16.mxu0 0
      %833 = vmatpush1.bf16.msra.mxu0 0
      %834 = vmatprep.subr.bf16.mxu0 0
      %835 = vmatpush1.bf16.msra.mxu0 0
      %836 = vmatprep.subr.bf16.mxu0 0
      %837 = vmatpush1.bf16.msra.mxu0 0
      %838 = vmatprep.subr.bf16.mxu0 0
      %839 = vmatpush1.bf16.msra.mxu0 0
      %840 = vmatprep.subr.bf16.mxu0 0
      %841 = vmatpush1.bf16.msra.mxu0 0
      %842 = vmatprep.subr.bf16.mxu0 0
      %843 = vmatpush1.bf16.msra.mxu0 0
      %844 = vmatprep.subr.bf16.mxu0 0
      %845 = vmatpush1.bf16.msra.mxu0 0
      %846 = vmatprep.subr.bf16.mxu0 0
      %847 = vmatpush1.bf16.msra.mxu0 0
      %848 = vmatprep.subr.bf16.mxu0 0
      %849 = vmatpush1.bf16.msra.mxu0 0
      %850 = vmatprep.subr.bf16.mxu0 0
      %851 = vmatpush1.bf16.msra.mxu0 0
      %852 = vmatprep.subr.bf16.mxu0 0
      %853 = vmatpush1.bf16.msra.mxu0 0
      %854 = vmatprep.subr.bf16.mxu0 0
      %855 = vmatpush1.bf16.msra.mxu0 0
      %856 = vmatprep.subr.bf16.mxu0 0
      %857 = vmatpush1.bf16.msra.mxu0 0
      %858 = vmatprep.mubr.bf16.mxu0 0
      %859 = vmatmul.mubr.bf16.gmra.mrb[0].mxu0 %v818
      %v860 = vpop.f32.mrb[0].mxu0
      %v861 = vadd.f32 0.0, %v860
      %v862 = vpop.f32.mrb[0].mxu0
      %v863 = vadd.f32 0.0, %v862
      %v864 = vpop.f32.mrb[0].mxu0
      %v865 = vpop.f32.mrb[0].mxu0
      %866 = vdwg.mxu0
      %v867 = vadd.f32 %v804, %v861
      %v868 = vadd.f32 %v805, %v863
      %s869 = scalar_lea.vmem %s3, 32
      %v870 = vld [vmem:[%s869] sm:$0xf]
      %871 = vrot.lane.b32.xlu0 %v359, 29
      %v872 = vpop.permute.xlu0 %871
      %873 = vrot.lane.b32.xlu0 %v365, 29
      %v874 = vpop.permute.xlu0 %873
      %875 = vrot.lane.b32.xlu0 %v366, 29
      %v876 = vpop.permute.xlu0 %875
      %vm877 = vcmask 236544
      %v878 = vsel %vm877, %v872, %v874
      %v879 = vsel %vm877, %v874, %v876
      %v881 = vsel %vm380, %v870, 0
      %v884 = vsel %vm384, %v878, 0
      %v887 = vsel %vm384, %v879, 0
      %889 = vmatprep.subr.bf16.mxu0 %v887
      %890 = vmatpush1.bf16.msra.mxu0 %v884
      %891 = vmatprep.subr.bf16.mxu0 0
      %892 = vmatpush1.bf16.msra.mxu0 0
      %893 = vmatprep.subr.bf16.mxu0 0
      %894 = vmatpush1.bf16.msra.mxu0 0
      %895 = vmatprep.subr.bf16.mxu0 0
      %896 = vmatpush1.bf16.msra.mxu0 0
      %897 = vmatprep.subr.bf16.mxu0 0
      %898 = vmatpush1.bf16.msra.mxu0 0
      %899 = vmatprep.subr.bf16.mxu0 0
      %900 = vmatpush1.bf16.msra.mxu0 0
      %901 = vmatprep.subr.bf16.mxu0 0
      %902 = vmatpush1.bf16.msra.mxu0 0
      %903 = vmatprep.subr.bf16.mxu0 0
      %904 = vmatpush1.bf16.msra.mxu0 0
      %905 = vmatprep.subr.bf16.mxu0 0
      %906 = vmatpush1.bf16.msra.mxu0 0
      %907 = vmatprep.subr.bf16.mxu0 0
      %908 = vmatpush1.bf16.msra.mxu0 0
      %909 = vmatprep.subr.bf16.mxu0 0
      %910 = vmatpush1.bf16.msra.mxu0 0
      %911 = vmatprep.subr.bf16.mxu0 0
      %912 = vmatpush1.bf16.msra.mxu0 0
      %913 = vmatprep.subr.bf16.mxu0 0
      %914 = vmatpush1.bf16.msra.mxu0 0
      %915 = vmatprep.subr.bf16.mxu0 0
      %916 = vmatpush1.bf16.msra.mxu0 0
      %917 = vmatprep.subr.bf16.mxu0 0
      %918 = vmatpush1.bf16.msra.mxu0 0
      %919 = vmatprep.subr.bf16.mxu0 0
      %920 = vmatpush1.bf16.msra.mxu0 0
      %921 = vmatprep.mubr.bf16.mxu0 0
      %922 = vmatmul.mubr.bf16.gmra.mrb[0].mxu0 %v881
      %v923 = vpop.f32.mrb[0].mxu0
      %v924 = vadd.f32 0.0, %v923
      %v925 = vpop.f32.mrb[0].mxu0
      %v926 = vadd.f32 0.0, %v925
      %v927 = vpop.f32.mrb[0].mxu0
      %v928 = vpop.f32.mrb[0].mxu0
      %929 = vdwg.mxu0
      %v930 = vadd.f32 %v867, %v924
      %v931 = vadd.f32 %v868, %v926
      %s932 = scalar_lea.vmem %s3, 36
      %v933 = vld [vmem:[%s932] sm:$0xf]
      %934 = vrot.lane.b32.xlu0 %v359, 7
      %v935 = vpop.permute.xlu0 %934
      %936 = vrot.lane.b32.xlu0 %v365, 7
      %v937 = vpop.permute.xlu0 %936
      %938 = vrot.lane.b32.xlu0 %v366, 7
      %v939 = vpop.permute.xlu0 %938
      %vm940 = vcmask 56320
      %v941 = vsel %vm940, %v935, %v937
      %v942 = vsel %vm940, %v937, %v939
      %v944 = vsel %vm380, %v933, 0
      %v947 = vsel %vm384, %v941, 0
      %v950 = vsel %vm384, %v942, 0
      %952 = vmatprep.subr.bf16.mxu0 %v950
      %953 = vmatpush1.bf16.msra.mxu0 %v947
      %954 = vmatprep.subr.bf16.mxu0 0
      %955 = vmatpush1.bf16.msra.mxu0 0
      %956 = vmatprep.subr.bf16.mxu0 0
      %957 = vmatpush1.bf16.msra.mxu0 0
      %958 = vmatprep.subr.bf16.mxu0 0
      %959 = vmatpush1.bf16.msra.mxu0 0
      %960 = vmatprep.subr.bf16.mxu0 0
      %961 = vmatpush1.bf16.msra.mxu0 0
      %962 = vmatprep.subr.bf16.mxu0 0
      %963 = vmatpush1.bf16.msra.mxu0 0
      %964 = vmatprep.subr.bf16.mxu0 0
      %965 = vmatpush1.bf16.msra.mxu0 0
      %966 = vmatprep.subr.bf16.mxu0 0
      %967 = vmatpush1.bf16.msra.mxu0 0
      %968 = vmatprep.subr.bf16.mxu0 0
      %969 = vmatpush1.bf16.msra.mxu0 0
      %970 = vmatprep.subr.bf16.mxu0 0
      %971 = vmatpush1.bf16.msra.mxu0 0
      %972 = vmatprep.subr.bf16.mxu0 0
      %973 = vmatpush1.bf16.msra.mxu0 0
      %974 = vmatprep.subr.bf16.mxu0 0
      %975 = vmatpush1.bf16.msra.mxu0 0
      %976 = vmatprep.subr.bf16.mxu0 0
      %977 = vmatpush1.bf16.msra.mxu0 0
      %978 = vmatprep.subr.bf16.mxu0 0
      %979 = vmatpush1.bf16.msra.mxu0 0
      %980 = vmatprep.subr.bf16.mxu0 0
      %981 = vmatpush1.bf16.msra.mxu0 0
      %982 = vmatprep.subr.bf16.mxu0 0
      %983 = vmatpush1.bf16.msra.mxu0 0
      %984 = vmatprep.mubr.bf16.mxu0 0
      %985 = vmatmul.mubr.bf16.gmra.mrb[0].mxu0 %v944
      %v986 = vpop.f32.mrb[0].mxu0
      %v987 = vadd.f32 0.0, %v986
      %v988 = vpop.f32.mrb[0].mxu0
      %v989 = vadd.f32 0.0, %v988
      %v990 = vpop.f32.mrb[0].mxu0
      %v991 = vpop.f32.mrb[0].mxu0
      %992 = vdwg.mxu0
      %v993 = vadd.f32 %v930, %v987
      %v994 = vadd.f32 %v931, %v989
      %s995 = scalar_lea.vmem %s3, 40
      %v996 = vld [vmem:[%s995] sm:$0xf]
      %997 = vrot.lane.b32.xlu0 %v359, 6
      %v998 = vpop.permute.xlu0 %997
      %999 = vrot.lane.b32.xlu0 %v365, 6
      %v1000 = vpop.permute.xlu0 %999
      %1001 = vrot.lane.b32.xlu0 %v366, 6
      %v1002 = vpop.permute.xlu0 %1001
      %vm1003 = vcmask 48128
      %v1004 = vsel %vm1003, %v998, %v1000
      %v1005 = vsel %vm1003, %v1000, %v1002
      %v1007 = vsel %vm380, %v996, 0
      %v1010 = vsel %vm384, %v1004, 0
      %v1013 = vsel %vm384, %v1005, 0
      %1015 = vmatprep.subr.bf16.mxu0 %v1013
      %1016 = vmatpush1.bf16.msra.mxu0 %v1010
      %1017 = vmatprep.subr.bf16.mxu0 0
      %1018 = vmatpush1.bf16.msra.mxu0 0
      %1019 = vmatprep.subr.bf16.mxu0 0
      %1020 = vmatpush1.bf16.msra.mxu0 0
      %1021 = vmatprep.subr.bf16.mxu0 0
      %1022 = vmatpush1.bf16.msra.mxu0 0
      %1023 = vmatprep.subr.bf16.mxu0 0
      %1024 = vmatpush1.bf16.msra.mxu0 0
      %1025 = vmatprep.subr.bf16.mxu0 0
      %1026 = vmatpush1.bf16.msra.mxu0 0
      %1027 = vmatprep.subr.bf16.mxu0 0
      %1028 = vmatpush1.bf16.msra.mxu0 0
      %1029 = vmatprep.subr.bf16.mxu0 0
      %1030 = vmatpush1.bf16.msra.mxu0 0
      %1031 = vmatprep.subr.bf16.mxu0 0
      %1032 = vmatpush1.bf16.msra.mxu0 0
      %1033 = vmatprep.subr.bf16.mxu0 0
      %1034 = vmatpush1.bf16.msra.mxu0 0
      %1035 = vmatprep.subr.bf16.mxu0 0
      %1036 = vmatpush1.bf16.msra.mxu0 0
      %1037 = vmatprep.subr.bf16.mxu0 0
      %1038 = vmatpush1.bf16.msra.mxu0 0
      %1039 = vmatprep.subr.bf16.mxu0 0
      %1040 = vmatpush1.bf16.msra.mxu0 0
      %1041 = vmatprep.subr.bf16.mxu0 0
      %1042 = vmatpush1.bf16.msra.mxu0 0
      %1043 = vmatprep.subr.bf16.mxu0 0
      %1044 = vmatpush1.bf16.msra.mxu0 0
      %1045 = vmatprep.subr.bf16.mxu0 0
      %1046 = vmatpush1.bf16.msra.mxu0 0
      %1047 = vmatprep.mubr.bf16.mxu0 0
      %1048 = vmatmul.mubr.bf16.gmra.mrb[0].mxu0 %v1007
      %v1049 = vpop.f32.mrb[0].mxu0
      %v1050 = vadd.f32 0.0, %v1049
      %v1051 = vpop.f32.mrb[0].mxu0
      %v1052 = vadd.f32 0.0, %v1051
      %v1053 = vpop.f32.mrb[0].mxu0
      %v1054 = vpop.f32.mrb[0].mxu0
      %1055 = vdwg.mxu0
      %v1056 = vadd.f32 %v993, %v1050
      %v1057 = vadd.f32 %v994, %v1052
      %s1058 = scalar_lea.vmem %s3, 44
      %v1059 = vld [vmem:[%s1058] sm:$0xf]
      %1060 = vrot.lane.b32.xlu0 %v359, 5
      %v1061 = vpop.permute.xlu0 %1060
      %1062 = vrot.lane.b32.xlu0 %v365, 5
      %v1063 = vpop.permute.xlu0 %1062
      %1064 = vrot.lane.b32.xlu0 %v366, 5
      %v1065 = vpop.permute.xlu0 %1064
      %vm1066 = vcmask 39936
      %v1067 = vsel %vm1066, %v1061, %v1063
      %v1068 = vsel %vm1066, %v1063, %v1065
      %v1070 = vsel %vm380, %v1059, 0
      %v1073 = vsel %vm384, %v1067, 0
      %v1076 = vsel %vm384, %v1068, 0
      %1078 = vmatprep.subr.bf16.mxu0 %v1076
      %1079 = vmatpush1.bf16.msra.mxu0 %v1073
      %1080 = vmatprep.subr.bf16.mxu0 0
      %1081 = vmatpush1.bf16.msra.mxu0 0
      %1082 = vmatprep.subr.bf16.mxu0 0
      %1083 = vmatpush1.bf16.msra.mxu0 0
      %1084 = vmatprep.subr.bf16.mxu0 0
      %1085 = vmatpush1.bf16.msra.mxu0 0
      %1086 = vmatprep.subr.bf16.mxu0 0
      %1087 = vmatpush1.bf16.msra.mxu0 0
      %1088 = vmatprep.subr.bf16.mxu0 0
      %1089 = vmatpush1.bf16.msra.mxu0 0
      %1090 = vmatprep.subr.bf16.mxu0 0
      %1091 = vmatpush1.bf16.msra.mxu0 0
      %1092 = vmatprep.subr.bf16.mxu0 0
      %1093 = vmatpush1.bf16.msra.mxu0 0
      %1094 = vmatprep.subr.bf16.mxu0 0
      %1095 = vmatpush1.bf16.msra.mxu0 0
      %1096 = vmatprep.subr.bf16.mxu0 0
      %1097 = vmatpush1.bf16.msra.mxu0 0
      %1098 = vmatprep.subr.bf16.mxu0 0
      %1099 = vmatpush1.bf16.msra.mxu0 0
      %1100 = vmatprep.subr.bf16.mxu0 0
      %1101 = vmatpush1.bf16.msra.mxu0 0
      %1102 = vmatprep.subr.bf16.mxu0 0
      %1103 = vmatpush1.bf16.msra.mxu0 0
      %1104 = vmatprep.subr.bf16.mxu0 0
      %1105 = vmatpush1.bf16.msra.mxu0 0
      %1106 = vmatprep.subr.bf16.mxu0 0
      %1107 = vmatpush1.bf16.msra.mxu0 0
      %1108 = vmatprep.subr.bf16.mxu0 0
      %1109 = vmatpush1.bf16.msra.mxu0 0
      %1110 = vmatprep.mubr.bf16.mxu0 0
      %1111 = vmatmul.mubr.bf16.gmra.mrb[0].mxu0 %v1070
      %v1112 = vpop.f32.mrb[0].mxu0
      %v1113 = vadd.f32 0.0, %v1112
      %v1114 = vpop.f32.mrb[0].mxu0
      %v1115 = vadd.f32 0.0, %v1114
      %v1116 = vpop.f32.mrb[0].mxu0
      %v1117 = vpop.f32.mrb[0].mxu0
      %1118 = vdwg.mxu0
      %v1119 = vadd.f32 %v1056, %v1113
      %v1120 = vadd.f32 %v1057, %v1115
      %s1121 = scalar_lea.vmem %s3, 48
      %v1122 = vld [vmem:[%s1121] sm:$0xf]
      %1123 = vrot.lane.b32.xlu0 %v359, 1
      %v1124 = vpop.permute.xlu0 %1123
      %1125 = vrot.lane.b32.xlu0 %v365, 1
      %v1126 = vpop.permute.xlu0 %1125
      %1127 = vrot.lane.b32.xlu0 %v366, 1
      %v1128 = vpop.permute.xlu0 %1127
      %vm1129 = vcmask 7168
      %v1130 = vsel %vm1129, %v1124, %v1126
      %v1131 = vsel %vm1129, %v1126, %v1128
      %v1133 = vsel %vm380, %v1122, 0
      %v1136 = vsel %vm384, %v1130, 0
      %v1139 = vsel %vm384, %v1131, 0
      %1141 = vmatprep.subr.bf16.mxu0 %v1139
      %1142 = vmatpush1.bf16.msra.mxu0 %v1136
      %1143 = vmatprep.subr.bf16.mxu0 0
      %1144 = vmatpush1.bf16.msra.mxu0 0
      %1145 = vmatprep.subr.bf16.mxu0 0
      %1146 = vmatpush1.bf16.msra.mxu0 0
      %1147 = vmatprep.subr.bf16.mxu0 0
      %1148 = vmatpush1.bf16.msra.mxu0 0
      %1149 = vmatprep.subr.bf16.mxu0 0
      %1150 = vmatpush1.bf16.msra.mxu0 0
      %1151 = vmatprep.subr.bf16.mxu0 0
      %1152 = vmatpush1.bf16.msra.mxu0 0
      %1153 = vmatprep.subr.bf16.mxu0 0
      %1154 = vmatpush1.bf16.msra.mxu0 0
      %1155 = vmatprep.subr.bf16.mxu0 0
      %1156 = vmatpush1.bf16.msra.mxu0 0
      %1157 = vmatprep.subr.bf16.mxu0 0
      %1158 = vmatpush1.bf16.msra.mxu0 0
      %1159 = vmatprep.subr.bf16.mxu0 0
      %1160 = vmatpush1.bf16.msra.mxu0 0
      %1161 = vmatprep.subr.bf16.mxu0 0
      %1162 = vmatpush1.bf16.msra.mxu0 0
      %1163 = vmatprep.subr.bf16.mxu0 0
      %1164 = vmatpush1.bf16.msra.mxu0 0
      %1165 = vmatprep.subr.bf16.mxu0 0
      %1166 = vmatpush1.bf16.msra.mxu0 0
      %1167 = vmatprep.subr.bf16.mxu0 0
      %1168 = vmatpush1.bf16.msra.mxu0 0
      %1169 = vmatprep.subr.bf16.mxu0 0
      %1170 = vmatpush1.bf16.msra.mxu0 0
      %1171 = vmatprep.subr.bf16.mxu0 0
      %1172 = vmatpush1.bf16.msra.mxu0 0
      %1173 = vmatprep.mubr.bf16.mxu0 0
      %1174 = vmatmul.mubr.bf16.gmra.mrb[0].mxu0 %v1133
      %v1175 = vpop.f32.mrb[0].mxu0
      %v1176 = vadd.f32 0.0, %v1175
      %v1177 = vpop.f32.mrb[0].mxu0
      %v1178 = vadd.f32 0.0, %v1177
      %v1179 = vpop.f32.mrb[0].mxu0
      %v1180 = vpop.f32.mrb[0].mxu0
      %1181 = vdwg.mxu0
      %v1182 = vadd.f32 %v1119, %v1176
      %v1183 = vadd.f32 %v1120, %v1178
      %s1184 = scalar_lea.vmem %s3, 52
      %v1185 = vld [vmem:[%s1184] sm:$0xf]
      %v1187 = vsel %vm380, %v1185, 0
      %v1190 = vsel %vm384, %v365, 0
      %v1193 = vsel %vm384, %v366, 0
      %1195 = vmatprep.subr.bf16.mxu0 %v1193
      %1196 = vmatpush1.bf16.msra.mxu0 %v1190
      %1197 = vmatprep.subr.bf16.mxu0 0
      %1198 = vmatpush1.bf16.msra.mxu0 0
      %1199 = vmatprep.subr.bf16.mxu0 0
      %1200 = vmatpush1.bf16.msra.mxu0 0
      %1201 = vmatprep.subr.bf16.mxu0 0
      %1202 = vmatpush1.bf16.msra.mxu0 0
      %1203 = vmatprep.subr.bf16.mxu0 0
      %1204 = vmatpush1.bf16.msra.mxu0 0
      %1205 = vmatprep.subr.bf16.mxu0 0
      %1206 = vmatpush1.bf16.msra.mxu0 0
      %1207 = vmatprep.subr.bf16.mxu0 0
      %1208 = vmatpush1.bf16.msra.mxu0 0
      %1209 = vmatprep.subr.bf16.mxu0 0
      %1210 = vmatpush1.bf16.msra.mxu0 0
      %1211 = vmatprep.subr.bf16.mxu0 0
      %1212 = vmatpush1.bf16.msra.mxu0 0
      %1213 = vmatprep.subr.bf16.mxu0 0
      %1214 = vmatpush1.bf16.msra.mxu0 0
      %1215 = vmatprep.subr.bf16.mxu0 0
      %1216 = vmatpush1.bf16.msra.mxu0 0
      %1217 = vmatprep.subr.bf16.mxu0 0
      %1218 = vmatpush1.bf16.msra.mxu0 0
      %1219 = vmatprep.subr.bf16.mxu0 0
      %1220 = vmatpush1.bf16.msra.mxu0 0
      %1221 = vmatprep.subr.bf16.mxu0 0
      %1222 = vmatpush1.bf16.msra.mxu0 0
      %1223 = vmatprep.subr.bf16.mxu0 0
      %1224 = vmatpush1.bf16.msra.mxu0 0
      %1225 = vmatprep.subr.bf16.mxu0 0
      %1226 = vmatpush1.bf16.msra.mxu0 0
      %1227 = vmatprep.mubr.bf16.mxu0 0
      %1228 = vmatmul.mubr.bf16.gmra.mrb[0].mxu0 %v1187
      %v1229 = vpop.f32.mrb[0].mxu0
      %v1230 = vadd.f32 0.0, %v1229
      %v1231 = vpop.f32.mrb[0].mxu0
      %v1232 = vadd.f32 0.0, %v1231
      %v1233 = vpop.f32.mrb[0].mxu0
      %v1234 = vpop.f32.mrb[0].mxu0
      %1235 = vdwg.mxu0
      %v1236 = vadd.f32 %v1182, %v1230
      %v1237 = vadd.f32 %v1183, %v1232
      %s1238 = scalar_lea.vmem %s3, 56
      %v1239 = vld [vmem:[%s1238] sm:$0xf]
      %1241 = vrot.lane.b32.xlu0 %v365, 127
      %v1242 = vpop.permute.xlu0 %1241
      %1243 = vrot.lane.b32.xlu0 %v366, 127
      %v1244 = vpop.permute.xlu0 %1243
      %1245 = vrot.lane.b32.xlu0 %v361, 127
      %v1246 = vpop.permute.xlu0 %1245
      %vm1247 = vcmask 1039360
      %v1248 = vsel %vm1247, %v1242, %v1244
      %v1249 = vsel %vm1247, %v1244, %v1246
      %v1251 = vsel %vm380, %v1239, 0
      %v1254 = vsel %vm384, %v1248, 0
      %v1257 = vsel %vm384, %v1249, 0
      %1259 = vmatprep.subr.bf16.mxu0 %v1257
      %1260 = vmatpush1.bf16.msra.mxu0 %v1254
      %1261 = vmatprep.subr.bf16.mxu0 0
      %1262 = vmatpush1.bf16.msra.mxu0 0
      %1263 = vmatprep.subr.bf16.mxu0 0
      %1264 = vmatpush1.bf16.msra.mxu0 0
      %1265 = vmatprep.subr.bf16.mxu0 0
      %1266 = vmatpush1.bf16.msra.mxu0 0
      %1267 = vmatprep.subr.bf16.mxu0 0
      %1268 = vmatpush1.bf16.msra.mxu0 0
      %1269 = vmatprep.subr.bf16.mxu0 0
      %1270 = vmatpush1.bf16.msra.mxu0 0
      %1271 = vmatprep.subr.bf16.mxu0 0
      %1272 = vmatpush1.bf16.msra.mxu0 0
      %1273 = vmatprep.subr.bf16.mxu0 0
      %1274 = vmatpush1.bf16.msra.mxu0 0
      %1275 = vmatprep.subr.bf16.mxu0 0
      %1276 = vmatpush1.bf16.msra.mxu0 0
      %1277 = vmatprep.subr.bf16.mxu0 0
      %1278 = vmatpush1.bf16.msra.mxu0 0
      %1279 = vmatprep.subr.bf16.mxu0 0
      %1280 = vmatpush1.bf16.msra.mxu0 0
      %1281 = vmatprep.subr.bf16.mxu0 0
      %1282 = vmatpush1.bf16.msra.mxu0 0
      %1283 = vmatprep.subr.bf16.mxu0 0
      %1284 = vmatpush1.bf16.msra.mxu0 0
      %1285 = vmatprep.subr.bf16.mxu0 0
      %1286 = vmatpush1.bf16.msra.mxu0 0
      %1287 = vmatprep.subr.bf16.mxu0 0
      %1288 = vmatpush1.bf16.msra.mxu0 0
      %1289 = vmatprep.subr.bf16.mxu0 0
      %1290 = vmatpush1.bf16.msra.mxu0 0
      %1291 = vmatprep.mubr.bf16.mxu0 0
      %1292 = vmatmul.mubr.bf16.gmra.mrb[0].mxu0 %v1251
      %v1293 = vpop.f32.mrb[0].mxu0
      %v1294 = vadd.f32 0.0, %v1293
      %v1295 = vpop.f32.mrb[0].mxu0
      %v1296 = vadd.f32 0.0, %v1295
      %v1297 = vpop.f32.mrb[0].mxu0
      %v1298 = vpop.f32.mrb[0].mxu0
      %1299 = vdwg.mxu0
      %v1300 = vadd.f32 %v1236, %v1294
      %v1301 = vadd.f32 %v1237, %v1296
      %s1302 = scalar_lea.vmem %s3, 60
      %v1303 = vld [vmem:[%s1302] sm:$0xf]
      %1304 = vrot.lane.b32.xlu0 %v365, 123
      %v1305 = vpop.permute.xlu0 %1304
      %1306 = vrot.lane.b32.xlu0 %v366, 123
      %v1307 = vpop.permute.xlu0 %1306
      %1308 = vrot.lane.b32.xlu0 %v361, 123
      %v1309 = vpop.permute.xlu0 %1308
      %vm1310 = vcmask 1006592
      %v1311 = vsel %vm1310, %v1305, %v1307
      %v1312 = vsel %vm1310, %v1307, %v1309
      %v1314 = vsel %vm380, %v1303, 0
      %v1317 = vsel %vm384, %v1311, 0
      %v1320 = vsel %vm384, %v1312, 0
      %1322 = vmatprep.subr.bf16.mxu0 %v1320
      %1323 = vmatpush1.bf16.msra.mxu0 %v1317
      %1324 = vmatprep.subr.bf16.mxu0 0
      %1325 = vmatpush1.bf16.msra.mxu0 0
      %1326 = vmatprep.subr.bf16.mxu0 0
      %1327 = vmatpush1.bf16.msra.mxu0 0
      %1328 = vmatprep.subr.bf16.mxu0 0
      %1329 = vmatpush1.bf16.msra.mxu0 0
      %1330 = vmatprep.subr.bf16.mxu0 0
      %1331 = vmatpush1.bf16.msra.mxu0 0
      %1332 = vmatprep.subr.bf16.mxu0 0
      %1333 = vmatpush1.bf16.msra.mxu0 0
      %1334 = vmatprep.subr.bf16.mxu0 0
      %1335 = vmatpush1.bf16.msra.mxu0 0
      %1336 = vmatprep.subr.bf16.mxu0 0
      %1337 = vmatpush1.bf16.msra.mxu0 0
      %1338 = vmatprep.subr.bf16.mxu0 0
      %1339 = vmatpush1.bf16.msra.mxu0 0
      %1340 = vmatprep.subr.bf16.mxu0 0
      %1341 = vmatpush1.bf16.msra.mxu0 0
      %1342 = vmatprep.subr.bf16.mxu0 0
      %1343 = vmatpush1.bf16.msra.mxu0 0
      %1344 = vmatprep.subr.bf16.mxu0 0
      %1345 = vmatpush1.bf16.msra.mxu0 0
      %1346 = vmatprep.subr.bf16.mxu0 0
      %1347 = vmatpush1.bf16.msra.mxu0 0
      %1348 = vmatprep.subr.bf16.mxu0 0
      %1349 = vmatpush1.bf16.msra.mxu0 0
      %1350 = vmatprep.subr.bf16.mxu0 0
      %1351 = vmatpush1.bf16.msra.mxu0 0
      %1352 = vmatprep.subr.bf16.mxu0 0
      %1353 = vmatpush1.bf16.msra.mxu0 0
      %1354 = vmatprep.mubr.bf16.mxu0 0
      %1355 = vmatmul.mubr.bf16.gmra.mrb[0].mxu0 %v1314
      %v1356 = vpop.f32.mrb[0].mxu0
      %v1357 = vadd.f32 0.0, %v1356
      %v1358 = vpop.f32.mrb[0].mxu0
      %v1359 = vadd.f32 0.0, %v1358
      %v1360 = vpop.f32.mrb[0].mxu0
      %v1361 = vpop.f32.mrb[0].mxu0
      %1362 = vdwg.mxu0
      %v1363 = vadd.f32 %v1300, %v1357
      %v1364 = vadd.f32 %v1301, %v1359
      %s1365 = scalar_lea.vmem %s3, 64
      %v1366 = vld [vmem:[%s1365] sm:$0xf]
      %1367 = vrot.lane.b32.xlu0 %v365, 122
      %v1368 = vpop.permute.xlu0 %1367
      %1369 = vrot.lane.b32.xlu0 %v366, 122
      %v1370 = vpop.permute.xlu0 %1369
      %1371 = vrot.lane.b32.xlu0 %v361, 122
      %v1372 = vpop.permute.xlu0 %1371
      %vm1373 = vcmask 998400
      %v1374 = vsel %vm1373, %v1368, %v1370
      %v1375 = vsel %vm1373, %v1370, %v1372
      %v1377 = vsel %vm380, %v1366, 0
      %v1380 = vsel %vm384, %v1374, 0
      %v1383 = vsel %vm384, %v1375, 0
      %1385 = vmatprep.subr.bf16.mxu0 %v1383
      %1386 = vmatpush1.bf16.msra.mxu0 %v1380
      %1387 = vmatprep.subr.bf16.mxu0 0
      %1388 = vmatpush1.bf16.msra.mxu0 0
      %1389 = vmatprep.subr.bf16.mxu0 0
      %1390 = vmatpush1.bf16.msra.mxu0 0
      %1391 = vmatprep.subr.bf16.mxu0 0
      %1392 = vmatpush1.bf16.msra.mxu0 0
      %1393 = vmatprep.subr.bf16.mxu0 0
      %1394 = vmatpush1.bf16.msra.mxu0 0
      %1395 = vmatprep.subr.bf16.mxu0 0
      %1396 = vmatpush1.bf16.msra.mxu0 0
      %1397 = vmatprep.subr.bf16.mxu0 0
      %1398 = vmatpush1.bf16.msra.mxu0 0
      %1399 = vmatprep.subr.bf16.mxu0 0
      %1400 = vmatpush1.bf16.msra.mxu0 0
      %1401 = vmatprep.subr.bf16.mxu0 0
      %1402 = vmatpush1.bf16.msra.mxu0 0
      %1403 = vmatprep.subr.bf16.mxu0 0
      %1404 = vmatpush1.bf16.msra.mxu0 0
      %1405 = vmatprep.subr.bf16.mxu0 0
      %1406 = vmatpush1.bf16.msra.mxu0 0
      %1407 = vmatprep.subr.bf16.mxu0 0
      %1408 = vmatpush1.bf16.msra.mxu0 0
      %1409 = vmatprep.subr.bf16.mxu0 0
      %1410 = vmatpush1.bf16.msra.mxu0 0
      %1411 = vmatprep.subr.bf16.mxu0 0
      %1412 = vmatpush1.bf16.msra.mxu0 0
      %1413 = vmatprep.subr.bf16.mxu0 0
      %1414 = vmatpush1.bf16.msra.mxu0 0
      %1415 = vmatprep.subr.bf16.mxu0 0
      %1416 = vmatpush1.bf16.msra.mxu0 0
      %1417 = vmatprep.mubr.bf16.mxu0 0
      %1418 = vmatmul.mubr.bf16.gmra.mrb[0].mxu0 %v1377
      %v1419 = vpop.f32.mrb[0].mxu0
      %v1420 = vadd.f32 0.0, %v1419
      %v1421 = vpop.f32.mrb[0].mxu0
      %v1422 = vadd.f32 0.0, %v1421
      %v1423 = vpop.f32.mrb[0].mxu0
      %v1424 = vpop.f32.mrb[0].mxu0
      %1425 = vdwg.mxu0
      %v1426 = vadd.f32 %v1363, %v1420
      %v1427 = vadd.f32 %v1364, %v1422
      %s1428 = scalar_lea.vmem %s3, 68
      %v1429 = vld [vmem:[%s1428] sm:$0xf]
      %1430 = vrot.lane.b32.xlu0 %v365, 121
      %v1431 = vpop.permute.xlu0 %1430
      %1432 = vrot.lane.b32.xlu0 %v366, 121
      %v1433 = vpop.permute.xlu0 %1432
      %1434 = vrot.lane.b32.xlu0 %v361, 121
      %v1435 = vpop.permute.xlu0 %1434
      %vm1436 = vcmask 990208
      %v1437 = vsel %vm1436, %v1431, %v1433
      %v1438 = vsel %vm1436, %v1433, %v1435
      %v1440 = vsel %vm380, %v1429, 0
      %v1443 = vsel %vm384, %v1437, 0
      %v1446 = vsel %vm384, %v1438, 0
      %1448 = vmatprep.subr.bf16.mxu0 %v1446
      %1449 = vmatpush1.bf16.msra.mxu0 %v1443
      %1450 = vmatprep.subr.bf16.mxu0 0
      %1451 = vmatpush1.bf16.msra.mxu0 0
      %1452 = vmatprep.subr.bf16.mxu0 0
      %1453 = vmatpush1.bf16.msra.mxu0 0
      %1454 = vmatprep.subr.bf16.mxu0 0
      %1455 = vmatpush1.bf16.msra.mxu0 0
      %1456 = vmatprep.subr.bf16.mxu0 0
      %1457 = vmatpush1.bf16.msra.mxu0 0
      %1458 = vmatprep.subr.bf16.mxu0 0
      %1459 = vmatpush1.bf16.msra.mxu0 0
      %1460 = vmatprep.subr.bf16.mxu0 0
      %1461 = vmatpush1.bf16.msra.mxu0 0
      %1462 = vmatprep.subr.bf16.mxu0 0
      %1463 = vmatpush1.bf16.msra.mxu0 0
      %1464 = vmatprep.subr.bf16.mxu0 0
      %1465 = vmatpush1.bf16.msra.mxu0 0
      %1466 = vmatprep.subr.bf16.mxu0 0
      %1467 = vmatpush1.bf16.msra.mxu0 0
      %1468 = vmatprep.subr.bf16.mxu0 0
      %1469 = vmatpush1.bf16.msra.mxu0 0
      %1470 = vmatprep.subr.bf16.mxu0 0
      %1471 = vmatpush1.bf16.msra.mxu0 0
      %1472 = vmatprep.subr.bf16.mxu0 0
      %1473 = vmatpush1.bf16.msra.mxu0 0
      %1474 = vmatprep.subr.bf16.mxu0 0
      %1475 = vmatpush1.bf16.msra.mxu0 0
      %1476 = vmatprep.subr.bf16.mxu0 0
      %1477 = vmatpush1.bf16.msra.mxu0 0
      %1478 = vmatprep.subr.bf16.mxu0 0
      %1479 = vmatpush1.bf16.msra.mxu0 0
      %1480 = vmatprep.mubr.bf16.mxu0 0
      %1481 = vmatmul.mubr.bf16.gmra.mrb[0].mxu0 %v1440
      %v1482 = vpop.f32.mrb[0].mxu0
      %v1483 = vadd.f32 0.0, %v1482
      %v1484 = vpop.f32.mrb[0].mxu0
      %v1485 = vadd.f32 0.0, %v1484
      %v1486 = vpop.f32.mrb[0].mxu0
      %v1487 = vpop.f32.mrb[0].mxu0
      %1488 = vdwg.mxu0
      %v1489 = vadd.f32 %v1426, %v1483
      %v1490 = vadd.f32 %v1427, %v1485
      %s1491 = scalar_lea.vmem %s3, 72
      %v1492 = vld [vmem:[%s1491] sm:$0xf]
      %1493 = vrot.lane.b32.xlu0 %v365, 99
      %v1494 = vpop.permute.xlu0 %1493
      %1495 = vrot.lane.b32.xlu0 %v366, 99
      %v1496 = vpop.permute.xlu0 %1495
      %1497 = vrot.lane.b32.xlu0 %v361, 99
      %v1498 = vpop.permute.xlu0 %1497
      %vm1499 = vcmask 809984
      %v1500 = vsel %vm1499, %v1494, %v1496
      %v1501 = vsel %vm1499, %v1496, %v1498
      %v1503 = vsel %vm380, %v1492, 0
      %v1506 = vsel %vm384, %v1500, 0
      %v1509 = vsel %vm384, %v1501, 0
      %1511 = vmatprep.subr.bf16.mxu0 %v1509
      %1512 = vmatpush1.bf16.msra.mxu0 %v1506
      %1513 = vmatprep.subr.bf16.mxu0 0
      %1514 = vmatpush1.bf16.msra.mxu0 0
      %1515 = vmatprep.subr.bf16.mxu0 0
      %1516 = vmatpush1.bf16.msra.mxu0 0
      %1517 = vmatprep.subr.bf16.mxu0 0
      %1518 = vmatpush1.bf16.msra.mxu0 0
      %1519 = vmatprep.subr.bf16.mxu0 0
      %1520 = vmatpush1.bf16.msra.mxu0 0
      %1521 = vmatprep.subr.bf16.mxu0 0
      %1522 = vmatpush1.bf16.msra.mxu0 0
      %1523 = vmatprep.subr.bf16.mxu0 0
      %1524 = vmatpush1.bf16.msra.mxu0 0
      %1525 = vmatprep.subr.bf16.mxu0 0
      %1526 = vmatpush1.bf16.msra.mxu0 0
      %1527 = vmatprep.subr.bf16.mxu0 0
      %1528 = vmatpush1.bf16.msra.mxu0 0
      %1529 = vmatprep.subr.bf16.mxu0 0
      %1530 = vmatpush1.bf16.msra.mxu0 0
      %1531 = vmatprep.subr.bf16.mxu0 0
      %1532 = vmatpush1.bf16.msra.mxu0 0
      %1533 = vmatprep.subr.bf16.mxu0 0
      %1534 = vmatpush1.bf16.msra.mxu0 0
      %1535 = vmatprep.subr.bf16.mxu0 0
      %1536 = vmatpush1.bf16.msra.mxu0 0
      %1537 = vmatprep.subr.bf16.mxu0 0
      %1538 = vmatpush1.bf16.msra.mxu0 0
      %1539 = vmatprep.subr.bf16.mxu0 0
      %1540 = vmatpush1.bf16.msra.mxu0 0
      %1541 = vmatprep.subr.bf16.mxu0 0
      %1542 = vmatpush1.bf16.msra.mxu0 0
      %1543 = vmatprep.mubr.bf16.mxu0 0
      %1544 = vmatmul.mubr.bf16.gmra.mrb[0].mxu0 %v1503
      %v1545 = vpop.f32.mrb[0].mxu0
      %v1546 = vadd.f32 0.0, %v1545
      %v1547 = vpop.f32.mrb[0].mxu0
      %v1548 = vadd.f32 0.0, %v1547
      %v1549 = vpop.f32.mrb[0].mxu0
      %v1550 = vpop.f32.mrb[0].mxu0
      %1551 = vdwg.mxu0
      %v1552 = vadd.f32 %v1489, %v1546
      %v1553 = vadd.f32 %v1490, %v1548
      %s1554 = scalar_lea.vmem %s3, 76
      %v1555 = vld [vmem:[%s1554] sm:$0xf]
      %1556 = vrot.lane.b32.xlu0 %v365, 98
      %v1557 = vpop.permute.xlu0 %1556
      %1558 = vrot.lane.b32.xlu0 %v366, 98
      %v1559 = vpop.permute.xlu0 %1558
      %1560 = vrot.lane.b32.xlu0 %v361, 98
      %v1561 = vpop.permute.xlu0 %1560
      %vm1562 = vcmask 801792
      %v1563 = vsel %vm1562, %v1557, %v1559
      %v1564 = vsel %vm1562, %v1559, %v1561
      %v1566 = vsel %vm380, %v1555, 0
      %v1569 = vsel %vm384, %v1563, 0
      %v1572 = vsel %vm384, %v1564, 0
      %1574 = vmatprep.subr.bf16.mxu0 %v1572
      %1575 = vmatpush1.bf16.msra.mxu0 %v1569
      %1576 = vmatprep.subr.bf16.mxu0 0
      %1577 = vmatpush1.bf16.msra.mxu0 0
      %1578 = vmatprep.subr.bf16.mxu0 0
      %1579 = vmatpush1.bf16.msra.mxu0 0
      %1580 = vmatprep.subr.bf16.mxu0 0
      %1581 = vmatpush1.bf16.msra.mxu0 0
      %1582 = vmatprep.subr.bf16.mxu0 0
      %1583 = vmatpush1.bf16.msra.mxu0 0
      %1584 = vmatprep.subr.bf16.mxu0 0
      %1585 = vmatpush1.bf16.msra.mxu0 0
      %1586 = vmatprep.subr.bf16.mxu0 0
      %1587 = vmatpush1.bf16.msra.mxu0 0
      %1588 = vmatprep.subr.bf16.mxu0 0
      %1589 = vmatpush1.bf16.msra.mxu0 0
      %1590 = vmatprep.subr.bf16.mxu0 0
      %1591 = vmatpush1.bf16.msra.mxu0 0
      %1592 = vmatprep.subr.bf16.mxu0 0
      %1593 = vmatpush1.bf16.msra.mxu0 0
      %1594 = vmatprep.subr.bf16.mxu0 0
      %1595 = vmatpush1.bf16.msra.mxu0 0
      %1596 = vmatprep.subr.bf16.mxu0 0
      %1597 = vmatpush1.bf16.msra.mxu0 0
      %1598 = vmatprep.subr.bf16.mxu0 0
      %1599 = vmatpush1.bf16.msra.mxu0 0
      %1600 = vmatprep.subr.bf16.mxu0 0
      %1601 = vmatpush1.bf16.msra.mxu0 0
      %1602 = vmatprep.subr.bf16.mxu0 0
      %1603 = vmatpush1.bf16.msra.mxu0 0
      %1604 = vmatprep.subr.bf16.mxu0 0
      %1605 = vmatpush1.bf16.msra.mxu0 0
      %1606 = vmatprep.mubr.bf16.mxu0 0
      %1607 = vmatmul.mubr.bf16.gmra.mrb[0].mxu0 %v1566
      %v1608 = vpop.f32.mrb[0].mxu0
      %v1609 = vadd.f32 0.0, %v1608
      %v1610 = vpop.f32.mrb[0].mxu0
      %v1611 = vadd.f32 0.0, %v1610
      %v1612 = vpop.f32.mrb[0].mxu0
      %v1613 = vpop.f32.mrb[0].mxu0
      %1614 = vdwg.mxu0
      %v1615 = vadd.f32 %v1552, %v1609
      %v1616 = vadd.f32 %v1553, %v1611
      %s1617 = scalar_lea.vmem %s3, 80
      %v1618 = vld [vmem:[%s1617] sm:$0xf]
      %1619 = vrot.lane.b32.xlu0 %v365, 97
      %v1620 = vpop.permute.xlu0 %1619
      %1621 = vrot.lane.b32.xlu0 %v366, 97
      %v1622 = vpop.permute.xlu0 %1621
      %1623 = vrot.lane.b32.xlu0 %v361, 97
      %v1624 = vpop.permute.xlu0 %1623
      %vm1625 = vcmask 793600
      %v1626 = vsel %vm1625, %v1620, %v1622
      %v1627 = vsel %vm1625, %v1622, %v1624
      %v1629 = vsel %vm380, %v1618, 0
      %v1632 = vsel %vm384, %v1626, 0
      %v1635 = vsel %vm384, %v1627, 0
      %1637 = vmatprep.subr.bf16.mxu0 %v1635
      %1638 = vmatpush1.bf16.msra.mxu0 %v1632
      %1639 = vmatprep.subr.bf16.mxu0 0
      %1640 = vmatpush1.bf16.msra.mxu0 0
      %1641 = vmatprep.subr.bf16.mxu0 0
      %1642 = vmatpush1.bf16.msra.mxu0 0
      %1643 = vmatprep.subr.bf16.mxu0 0
      %1644 = vmatpush1.bf16.msra.mxu0 0
      %1645 = vmatprep.subr.bf16.mxu0 0
      %1646 = vmatpush1.bf16.msra.mxu0 0
      %1647 = vmatprep.subr.bf16.mxu0 0
      %1648 = vmatpush1.bf16.msra.mxu0 0
      %1649 = vmatprep.subr.bf16.mxu0 0
      %1650 = vmatpush1.bf16.msra.mxu0 0
      %1651 = vmatprep.subr.bf16.mxu0 0
      %1652 = vmatpush1.bf16.msra.mxu0 0
      %1653 = vmatprep.subr.bf16.mxu0 0
      %1654 = vmatpush1.bf16.msra.mxu0 0
      %1655 = vmatprep.subr.bf16.mxu0 0
      %1656 = vmatpush1.bf16.msra.mxu0 0
      %1657 = vmatprep.subr.bf16.mxu0 0
      %1658 = vmatpush1.bf16.msra.mxu0 0
      %1659 = vmatprep.subr.bf16.mxu0 0
      %1660 = vmatpush1.bf16.msra.mxu0 0
      %1661 = vmatprep.subr.bf16.mxu0 0
      %1662 = vmatpush1.bf16.msra.mxu0 0
      %1663 = vmatprep.subr.bf16.mxu0 0
      %1664 = vmatpush1.bf16.msra.mxu0 0
      %1665 = vmatprep.subr.bf16.mxu0 0
      %1666 = vmatpush1.bf16.msra.mxu0 0
      %1667 = vmatprep.subr.bf16.mxu0 0
      %1668 = vmatpush1.bf16.msra.mxu0 0
      %1669 = vmatprep.mubr.bf16.mxu0 0
      %1670 = vmatmul.mubr.bf16.gmra.mrb[0].mxu0 %v1629
      %v1671 = vpop.f32.mrb[0].mxu0
      %v1672 = vadd.f32 0.0, %v1671
      %v1673 = vpop.f32.mrb[0].mxu0
      %v1674 = vadd.f32 0.0, %v1673
      %v1675 = vpop.f32.mrb[0].mxu0
      %v1676 = vpop.f32.mrb[0].mxu0
      %1677 = vdwg.mxu0
      %v1678 = vadd.f32 %v1615, %v1672
      %v1679 = vadd.f32 %v1616, %v1674
      %s1680 = scalar_lea.vmem %s3, 84
      %v1681 = vld [vmem:[%s1680] sm:$0xf]
      %1682 = vrot.lane.b32.xlu0 %v365, 93
      %v1683 = vpop.permute.xlu0 %1682
      %1684 = vrot.lane.b32.xlu0 %v366, 93
      %v1685 = vpop.permute.xlu0 %1684
      %1686 = vrot.lane.b32.xlu0 %v361, 93
      %v1687 = vpop.permute.xlu0 %1686
      %vm1688 = vcmask 760832
      %v1689 = vsel %vm1688, %v1683, %v1685
      %v1690 = vsel %vm1688, %v1685, %v1687
      %v1692 = vsel %vm380, %v1681, 0
      %v1695 = vsel %vm384, %v1689, 0
      %v1698 = vsel %vm384, %v1690, 0
      %1700 = vmatprep.subr.bf16.mxu0 %v1698
      %1701 = vmatpush1.bf16.msra.mxu0 %v1695
      %1702 = vmatprep.subr.bf16.mxu0 0
      %1703 = vmatpush1.bf16.msra.mxu0 0
      %1704 = vmatprep.subr.bf16.mxu0 0
      %1705 = vmatpush1.bf16.msra.mxu0 0
      %1706 = vmatprep.subr.bf16.mxu0 0
      %1707 = vmatpush1.bf16.msra.mxu0 0
      %1708 = vmatprep.subr.bf16.mxu0 0
      %1709 = vmatpush1.bf16.msra.mxu0 0
      %1710 = vmatprep.subr.bf16.mxu0 0
      %1711 = vmatpush1.bf16.msra.mxu0 0
      %1712 = vmatprep.subr.bf16.mxu0 0
      %1713 = vmatpush1.bf16.msra.mxu0 0
      %1714 = vmatprep.subr.bf16.mxu0 0
      %1715 = vmatpush1.bf16.msra.mxu0 0
      %1716 = vmatprep.subr.bf16.mxu0 0
      %1717 = vmatpush1.bf16.msra.mxu0 0
      %1718 = vmatprep.subr.bf16.mxu0 0
      %1719 = vmatpush1.bf16.msra.mxu0 0
      %1720 = vmatprep.subr.bf16.mxu0 0
      %1721 = vmatpush1.bf16.msra.mxu0 0
      %1722 = vmatprep.subr.bf16.mxu0 0
      %1723 = vmatpush1.bf16.msra.mxu0 0
      %1724 = vmatprep.subr.bf16.mxu0 0
      %1725 = vmatpush1.bf16.msra.mxu0 0
      %1726 = vmatprep.subr.bf16.mxu0 0
      %1727 = vmatpush1.bf16.msra.mxu0 0
      %1728 = vmatprep.subr.bf16.mxu0 0
      %1729 = vmatpush1.bf16.msra.mxu0 0
      %1730 = vmatprep.subr.bf16.mxu0 0
      %1731 = vmatpush1.bf16.msra.mxu0 0
      %1732 = vmatprep.mubr.bf16.mxu0 0
      %1733 = vmatmul.mubr.bf16.gmra.mrb[0].mxu0 %v1692
      %v1734 = vpop.f32.mrb[0].mxu0
      %v1735 = vadd.f32 0.0, %v1734
      %v1736 = vpop.f32.mrb[0].mxu0
      %v1737 = vadd.f32 0.0, %v1736
      %v1738 = vpop.f32.mrb[0].mxu0
      %v1739 = vpop.f32.mrb[0].mxu0
      %1740 = vdwg.mxu0
      %v1741 = vadd.f32 %v1678, %v1735
      %v1742 = vadd.f32 %v1679, %v1737
      %s1743 = scalar_lea.vmem %s3, 88
      %v1744 = vld [vmem:[%s1743] sm:$0xf]
      %1745 = vrot.lane.b32.xlu0 %v365, 92
      %v1746 = vpop.permute.xlu0 %1745
      %1747 = vrot.lane.b32.xlu0 %v366, 92
      %v1748 = vpop.permute.xlu0 %1747
      %1749 = vrot.lane.b32.xlu0 %v361, 92
      %v1750 = vpop.permute.xlu0 %1749
      %vm1751 = vcmask 752640
      %v1752 = vsel %vm1751, %v1746, %v1748
      %v1753 = vsel %vm1751, %v1748, %v1750
      %v1755 = vsel %vm380, %v1744, 0
      %v1758 = vsel %vm384, %v1752, 0
      %v1761 = vsel %vm384, %v1753, 0
      %1763 = vmatprep.subr.bf16.mxu0 %v1761
      %1764 = vmatpush1.bf16.msra.mxu0 %v1758
      %1765 = vmatprep.subr.bf16.mxu0 0
      %1766 = vmatpush1.bf16.msra.mxu0 0
      %1767 = vmatprep.subr.bf16.mxu0 0
      %1768 = vmatpush1.bf16.msra.mxu0 0
      %1769 = vmatprep.subr.bf16.mxu0 0
      %1770 = vmatpush1.bf16.msra.mxu0 0
      %1771 = vmatprep.subr.bf16.mxu0 0
      %1772 = vmatpush1.bf16.msra.mxu0 0
      %1773 = vmatprep.subr.bf16.mxu0 0
      %1774 = vmatpush1.bf16.msra.mxu0 0
      %1775 = vmatprep.subr.bf16.mxu0 0
      %1776 = vmatpush1.bf16.msra.mxu0 0
      %1777 = vmatprep.subr.bf16.mxu0 0
      %1778 = vmatpush1.bf16.msra.mxu0 0
      %1779 = vmatprep.subr.bf16.mxu0 0
      %1780 = vmatpush1.bf16.msra.mxu0 0
      %1781 = vmatprep.subr.bf16.mxu0 0
      %1782 = vmatpush1.bf16.msra.mxu0 0
      %1783 = vmatprep.subr.bf16.mxu0 0
      %1784 = vmatpush1.bf16.msra.mxu0 0
      %1785 = vmatprep.subr.bf16.mxu0 0
      %1786 = vmatpush1.bf16.msra.mxu0 0
      %1787 = vmatprep.subr.bf16.mxu0 0
      %1788 = vmatpush1.bf16.msra.mxu0 0
      %1789 = vmatprep.subr.bf16.mxu0 0
      %1790 = vmatpush1.bf16.msra.mxu0 0
      %1791 = vmatprep.subr.bf16.mxu0 0
      %1792 = vmatpush1.bf16.msra.mxu0 0
      %1793 = vmatprep.subr.bf16.mxu0 0
      %1794 = vmatpush1.bf16.msra.mxu0 0
      %1795 = vmatprep.mubr.bf16.mxu0 0
      %1796 = vmatmul.mubr.bf16.gmra.mrb[0].mxu0 %v1755
      %v1797 = vpop.f32.mrb[0].mxu0
      %v1798 = vadd.f32 0.0, %v1797
      %v1799 = vpop.f32.mrb[0].mxu0
      %v1800 = vadd.f32 0.0, %v1799
      %v1801 = vpop.f32.mrb[0].mxu0
      %v1802 = vpop.f32.mrb[0].mxu0
      %1803 = vdwg.mxu0
      %v1804 = vadd.f32 %v1741, %v1798
      %v1805 = vadd.f32 %v1742, %v1800
      %s1806 = scalar_lea.vmem %s3, 92
      %v1807 = vld [vmem:[%s1806] sm:$0xf]
      %1808 = vrot.lane.b32.xlu0 %v365, 91
      %v1809 = vpop.permute.xlu0 %1808
      %1810 = vrot.lane.b32.xlu0 %v366, 91
      %v1811 = vpop.permute.xlu0 %1810
      %1812 = vrot.lane.b32.xlu0 %v361, 91
      %v1813 = vpop.permute.xlu0 %1812
      %vm1814 = vcmask 744448
      %v1815 = vsel %vm1814, %v1809, %v1811
      %v1816 = vsel %vm1814, %v1811, %v1813
      %v1818 = vsel %vm380, %v1807, 0
      %v1821 = vsel %vm384, %v1815, 0
      %v1824 = vsel %vm384, %v1816, 0
      %1826 = vmatprep.subr.bf16.mxu0 %v1824
      %1827 = vmatpush1.bf16.msra.mxu0 %v1821
      %1828 = vmatprep.subr.bf16.mxu0 0
      %1829 = vmatpush1.bf16.msra.mxu0 0
      %1830 = vmatprep.subr.bf16.mxu0 0
      %1831 = vmatpush1.bf16.msra.mxu0 0
      %1832 = vmatprep.subr.bf16.mxu0 0
      %1833 = vmatpush1.bf16.msra.mxu0 0
      %1834 = vmatprep.subr.bf16.mxu0 0
      %1835 = vmatpush1.bf16.msra.mxu0 0
      %1836 = vmatprep.subr.bf16.mxu0 0
      %1837 = vmatpush1.bf16.msra.mxu0 0
      %1838 = vmatprep.subr.bf16.mxu0 0
      %1839 = vmatpush1.bf16.msra.mxu0 0
      %1840 = vmatprep.subr.bf16.mxu0 0
      %1841 = vmatpush1.bf16.msra.mxu0 0
      %1842 = vmatprep.subr.bf16.mxu0 0
      %1843 = vmatpush1.bf16.msra.mxu0 0
      %1844 = vmatprep.subr.bf16.mxu0 0
      %1845 = vmatpush1.bf16.msra.mxu0 0
      %1846 = vmatprep.subr.bf16.mxu0 0
      %1847 = vmatpush1.bf16.msra.mxu0 0
      %1848 = vmatprep.subr.bf16.mxu0 0
      %1849 = vmatpush1.bf16.msra.mxu0 0
      %1850 = vmatprep.subr.bf16.mxu0 0
      %1851 = vmatpush1.bf16.msra.mxu0 0
      %1852 = vmatprep.subr.bf16.mxu0 0
      %1853 = vmatpush1.bf16.msra.mxu0 0
      %1854 = vmatprep.subr.bf16.mxu0 0
      %1855 = vmatpush1.bf16.msra.mxu0 0
      %1856 = vmatprep.subr.bf16.mxu0 0
      %1857 = vmatpush1.bf16.msra.mxu0 0
      %1858 = vmatprep.mubr.bf16.mxu0 0
      %1859 = vmatmul.mubr.bf16.gmra.mrb[0].mxu0 %v1818
      %v1860 = vpop.f32.mrb[0].mxu0
      %v1861 = vadd.f32 0.0, %v1860
      %v1862 = vpop.f32.mrb[0].mxu0
      %v1863 = vadd.f32 0.0, %v1862
      %v1864 = vpop.f32.mrb[0].mxu0
      %v1865 = vpop.f32.mrb[0].mxu0
      %1866 = vdwg.mxu0
      %v1867 = vadd.f32 %v1804, %v1861
      %v1868 = vadd.f32 %v1805, %v1863
      %s1869 = scalar_lea.vmem %s3, 96
      %v1870 = vld [vmem:[%s1869] sm:$0xf]
      %1871 = vrot.lane.b32.xlu0 %v365, 87
      %v1872 = vpop.permute.xlu0 %1871
      %1873 = vrot.lane.b32.xlu0 %v366, 87
      %v1874 = vpop.permute.xlu0 %1873
      %1875 = vrot.lane.b32.xlu0 %v361, 87
      %v1876 = vpop.permute.xlu0 %1875
      %vm1877 = vcmask 711680
      %v1878 = vsel %vm1877, %v1872, %v1874
      %v1879 = vsel %vm1877, %v1874, %v1876
      %v1881 = vsel %vm380, %v1870, 0
      %v1884 = vsel %vm384, %v1878, 0
      %v1887 = vsel %vm384, %v1879, 0
      %1889 = vmatprep.subr.bf16.mxu0 %v1887
      %1890 = vmatpush1.bf16.msra.mxu0 %v1884
      %1891 = vmatprep.subr.bf16.mxu0 0
      %1892 = vmatpush1.bf16.msra.mxu0 0
      %1893 = vmatprep.subr.bf16.mxu0 0
      %1894 = vmatpush1.bf16.msra.mxu0 0
      %1895 = vmatprep.subr.bf16.mxu0 0
      %1896 = vmatpush1.bf16.msra.mxu0 0
      %1897 = vmatprep.subr.bf16.mxu0 0
      %1898 = vmatpush1.bf16.msra.mxu0 0
      %1899 = vmatprep.subr.bf16.mxu0 0
      %1900 = vmatpush1.bf16.msra.mxu0 0
      %1901 = vmatprep.subr.bf16.mxu0 0
      %1902 = vmatpush1.bf16.msra.mxu0 0
      %1903 = vmatprep.subr.bf16.mxu0 0
      %1904 = vmatpush1.bf16.msra.mxu0 0
      %1905 = vmatprep.subr.bf16.mxu0 0
      %1906 = vmatpush1.bf16.msra.mxu0 0
      %1907 = vmatprep.subr.bf16.mxu0 0
      %1908 = vmatpush1.bf16.msra.mxu0 0
      %1909 = vmatprep.subr.bf16.mxu0 0
      %1910 = vmatpush1.bf16.msra.mxu0 0
      %1911 = vmatprep.subr.bf16.mxu0 0
      %1912 = vmatpush1.bf16.msra.mxu0 0
      %1913 = vmatprep.subr.bf16.mxu0 0
      %1914 = vmatpush1.bf16.msra.mxu0 0
      %1915 = vmatprep.subr.bf16.mxu0 0
      %1916 = vmatpush1.bf16.msra.mxu0 0
      %1917 = vmatprep.subr.bf16.mxu0 0
      %1918 = vmatpush1.bf16.msra.mxu0 0
      %1919 = vmatprep.subr.bf16.mxu0 0
      %1920 = vmatpush1.bf16.msra.mxu0 0
      %1921 = vmatprep.mubr.bf16.mxu0 0
      %1922 = vmatmul.mubr.bf16.gmra.mrb[0].mxu0 %v1881
      %v1923 = vpop.f32.mrb[0].mxu0
      %v1924 = vadd.f32 0.0, %v1923
      %v1925 = vpop.f32.mrb[0].mxu0
      %v1926 = vadd.f32 0.0, %v1925
      %v1927 = vpop.f32.mrb[0].mxu0
      %v1928 = vpop.f32.mrb[0].mxu0
      %1929 = vdwg.mxu0
      %v1930 = vadd.f32 %v1867, %v1924
      %v1931 = vadd.f32 %v1868, %v1926
      %s1932 = scalar_lea.vmem %s3, 100
      %v1933 = vld [vmem:[%s1932] sm:$0xf]
      %1934 = vrot.lane.b32.xlu0 %v365, 86
      %v1935 = vpop.permute.xlu0 %1934
      %1936 = vrot.lane.b32.xlu0 %v366, 86
      %v1937 = vpop.permute.xlu0 %1936
      %1938 = vrot.lane.b32.xlu0 %v361, 86
      %v1939 = vpop.permute.xlu0 %1938
      %vm1940 = vcmask 703488
      %v1941 = vsel %vm1940, %v1935, %v1937
      %v1942 = vsel %vm1940, %v1937, %v1939
      %v1944 = vsel %vm380, %v1933, 0
      %v1947 = vsel %vm384, %v1941, 0
      %v1950 = vsel %vm384, %v1942, 0
      %1952 = vmatprep.subr.bf16.mxu0 %v1950
      %1953 = vmatpush1.bf16.msra.mxu0 %v1947
      %1954 = vmatprep.subr.bf16.mxu0 0
      %1955 = vmatpush1.bf16.msra.mxu0 0
      %1956 = vmatprep.subr.bf16.mxu0 0
      %1957 = vmatpush1.bf16.msra.mxu0 0
      %1958 = vmatprep.subr.bf16.mxu0 0
      %1959 = vmatpush1.bf16.msra.mxu0 0
      %1960 = vmatprep.subr.bf16.mxu0 0
      %1961 = vmatpush1.bf16.msra.mxu0 0
      %1962 = vmatprep.subr.bf16.mxu0 0
      %1963 = vmatpush1.bf16.msra.mxu0 0
      %1964 = vmatprep.subr.bf16.mxu0 0
      %1965 = vmatpush1.bf16.msra.mxu0 0
      %1966 = vmatprep.subr.bf16.mxu0 0
      %1967 = vmatpush1.bf16.msra.mxu0 0
      %1968 = vmatprep.subr.bf16.mxu0 0
      %1969 = vmatpush1.bf16.msra.mxu0 0
      %1970 = vmatprep.subr.bf16.mxu0 0
      %1971 = vmatpush1.bf16.msra.mxu0 0
      %1972 = vmatprep.subr.bf16.mxu0 0
      %1973 = vmatpush1.bf16.msra.mxu0 0
      %1974 = vmatprep.subr.bf16.mxu0 0
      %1975 = vmatpush1.bf16.msra.mxu0 0
      %1976 = vmatprep.subr.bf16.mxu0 0
      %1977 = vmatpush1.bf16.msra.mxu0 0
      %1978 = vmatprep.subr.bf16.mxu0 0
      %1979 = vmatpush1.bf16.msra.mxu0 0
      %1980 = vmatprep.subr.bf16.mxu0 0
      %1981 = vmatpush1.bf16.msra.mxu0 0
      %1982 = vmatprep.subr.bf16.mxu0 0
      %1983 = vmatpush1.bf16.msra.mxu0 0
      %1984 = vmatprep.mubr.bf16.mxu0 0
      %1985 = vmatmul.mubr.bf16.gmra.mrb[0].mxu0 %v1944
      %v1986 = vpop.f32.mrb[0].mxu0
      %v1987 = vadd.f32 0.0, %v1986
      %v1988 = vpop.f32.mrb[0].mxu0
      %v1989 = vadd.f32 0.0, %v1988
      %v1990 = vpop.f32.mrb[0].mxu0
      %v1991 = vpop.f32.mrb[0].mxu0
      %1992 = vdwg.mxu0
      %v1993 = vadd.f32 %v1930, %v1987
      %v1994 = vadd.f32 %v1931, %v1989
      %s1995 = scalar_lea.vmem %s3, 104
      %v1996 = vld [vmem:[%s1995] sm:$0xf]
      %1997 = vrot.lane.b32.xlu0 %v365, 85
      %v1998 = vpop.permute.xlu0 %1997
      %1999 = vrot.lane.b32.xlu0 %v366, 85
      %v2000 = vpop.permute.xlu0 %1999
      %2001 = vrot.lane.b32.xlu0 %v361, 85
      %v2002 = vpop.permute.xlu0 %2001
      %vm2003 = vcmask 695296
      %v2004 = vsel %vm2003, %v1998, %v2000
      %v2005 = vsel %vm2003, %v2000, %v2002
      %v2007 = vsel %vm380, %v1996, 0
      %v2010 = vsel %vm384, %v2004, 0
      %v2013 = vsel %vm384, %v2005, 0
      %2015 = vmatprep.subr.bf16.mxu0 %v2013
      %2016 = vmatpush1.bf16.msra.mxu0 %v2010
      %2017 = vmatprep.subr.bf16.mxu0 0
      %2018 = vmatpush1.bf16.msra.mxu0 0
      %2019 = vmatprep.subr.bf16.mxu0 0
      %2020 = vmatpush1.bf16.msra.mxu0 0
      %2021 = vmatprep.subr.bf16.mxu0 0
      %2022 = vmatpush1.bf16.msra.mxu0 0
      %2023 = vmatprep.subr.bf16.mxu0 0
      %2024 = vmatpush1.bf16.msra.mxu0 0
      %2025 = vmatprep.subr.bf16.mxu0 0
      %2026 = vmatpush1.bf16.msra.mxu0 0
      %2027 = vmatprep.subr.bf16.mxu0 0
      %2028 = vmatpush1.bf16.msra.mxu0 0
      %2029 = vmatprep.subr.bf16.mxu0 0
      %2030 = vmatpush1.bf16.msra.mxu0 0
      %2031 = vmatprep.subr.bf16.mxu0 0
      %2032 = vmatpush1.bf16.msra.mxu0 0
      %2033 = vmatprep.subr.bf16.mxu0 0
      %2034 = vmatpush1.bf16.msra.mxu0 0
      %2035 = vmatprep.subr.bf16.mxu0 0
      %2036 = vmatpush1.bf16.msra.mxu0 0
      %2037 = vmatprep.subr.bf16.mxu0 0
      %2038 = vmatpush1.bf16.msra.mxu0 0
      %2039 = vmatprep.subr.bf16.mxu0 0
      %2040 = vmatpush1.bf16.msra.mxu0 0
      %2041 = vmatprep.subr.bf16.mxu0 0
      %2042 = vmatpush1.bf16.msra.mxu0 0
      %2043 = vmatprep.subr.bf16.mxu0 0
      %2044 = vmatpush1.bf16.msra.mxu0 0
      %2045 = vmatprep.subr.bf16.mxu0 0
      %2046 = vmatpush1.bf16.msra.mxu0 0
      %2047 = vmatprep.mubr.bf16.mxu0 0
      %2048 = vmatmul.mubr.bf16.gmra.mrb[0].mxu0 %v2007
      %v2049 = vpop.f32.mrb[0].mxu0
      %v2050 = vadd.f32 0.0, %v2049
      %v2051 = vpop.f32.mrb[0].mxu0
      %v2052 = vadd.f32 0.0, %v2051
      %v2053 = vpop.f32.mrb[0].mxu0
      %v2054 = vpop.f32.mrb[0].mxu0
      %2055 = vdwg.mxu0
      %v2056 = vadd.f32 %v1993, %v2050
      %v2057 = vadd.f32 %v1994, %v2052
      %v2058 = vld [vmem:[%s348] sm:$0x3]
      %vm2059 = vcmp.gt.f32.partialorder %v2058, 0.0
      %v2060 = vsel %vm2059, 1, 0
      %v2061 = vlaneseq
      %v2062 = vshrl.u32 %v2061, 7
      %v2063 = vsub.s32 0, %v2062
      %v2064 = vrot.slane %v2060, %v2063
      %v2065 = vlaneseq
      %v2066 = vshrl.u32 %v2065, 7
      %v2067 = vsub.s32 1, %v2066
      %v2068 = vrot.slane %v2060, %v2067
      %vm2069 = vcmp.eq.s32.totalorder %v2064, 1
      %vm2070 = vcmp.eq.s32.totalorder %v2068, 1
      %v2071 = vsel %vm2069, %v2056, 0.0
      %v2072 = vsel %vm2070, %v2057, 0.0
      %v2073 = vadd.f32 %v2071, %v2072
      %2074 = vadd.xlane.f32.xlu0 %v2073
      %v2075 = vpop.xlane.xlu0 %2074
      %vm2076 = vcmask 7168
      %2077 = vst.msk [vmem:[%s353] sm:$0xff] %vm2076, %v2075
      %v2078 = vmul.f32 %v2071, %v2071
      %v2079 = vmul.f32 %v2072, %v2072
      %v2080 = vadd.f32 %v2078, %v2079
      %2081 = vadd.xlane.f32.xlu0 %v2080
      %v2082 = vpop.xlane.xlu0 %2081
      %2083 = vst.msk [vmem:[%s357] sm:$0xff] %vm2076, %v2082
      %p2084 = scmp.lt.s32.totalorder %s18, 1
      %s2085 = scalar_select %p2084, %s18, 1
      %s2086 = smul.addr %s2085, 8
      %s2087 = scalar_lea.vmem %s5, %s2086
      %p2088 = scmp.lt.s32.totalorder %s18, 1
      %s2089 = scalar_select %p2088, %s18, 1
      %s2090 = smul.addr %s2089, 8
      %s2091 = scalar_lea.vmem %s6, %s2090
      // Predicated region
      $region41: #{conv_res_block.4} parent=39 // pred_check
        %p2092 = pneg %p173
      $region42: #{conv_res_block.4} parent=39 // pred_check_branch
        %2094 = sbr.rel (%p2092) target = $region44
      $region43: #{conv_res_block.4} parent=39 // pred_region
        _
      $region44: #{conv_res_block.4} parent=39 // pred_fallthru
        _
      // Predicated region
      $region45: #{conv_res_block.4} parent=39 // pred_check
        %p2095 = pneg %p199
      $region46: #{conv_res_block.4} parent=39 // pred_check_branch
        %2097 = sbr.rel (%p2095) target = $region48
      $region47: #{conv_res_block.4} parent=39 // pred_region
        _
      $region48: #{conv_res_block.4} parent=39 // pred_fallthru
        _
    $region40: #{conv_res_block.4} parent=5 // pred_fallthru
      _
    %p2098 = scmp.le.s32.totalorder 2, %s13
    // Predicated region
    $region49: #{conv_res_block.4} parent=5 // pred_check
      %p2099 = pneg %p2098
    $region50: #{conv_res_block.4} parent=5 // pred_check_branch
      %2101 = sbr.rel (%p2099) target = $region52
    $region51: #{conv_res_block.4} parent=5 // pred_region
      %s2102 = ssub.s32 %s13, 2
      // Predicated region
      $region53: #{conv_res_block.4} parent=51 // pred_check
        %p2103 = pneg %p179
      $region54: #{conv_res_block.4} parent=51 // pred_check_branch
        %2105 = sbr.rel (%p2103) target = $region56
      $region55: #{conv_res_block.4} parent=51 // pred_region
        %p2106 = scmp.lt.s32.totalorder %s19, 1
        %s2107 = scalar_select %p2106, %s19, 1
        %s2108 = smul.addr %s2107, 8
        %s2109 = scalar_lea.vmem %s5, %s2108
      $region56: #{conv_res_block.4} parent=51 // pred_fallthru
        _
      // Predicated region
      $region57: #{conv_res_block.4} parent=51 // pred_check
        %p2110 = pneg %p205
      $region58: #{conv_res_block.4} parent=51 // pred_check_branch
        %2112 = sbr.rel (%p2110) target = $region60
      $region59: #{conv_res_block.4} parent=51 // pred_region
        %p2113 = scmp.lt.s32.totalorder %s19, 1
        %s2114 = scalar_select %p2113, %s19, 1
        %s2115 = smul.addr %s2114, 8
        %s2116 = scalar_lea.vmem %s6, %s2115
      $region60: #{conv_res_block.4} parent=51 // pred_fallthru
        _
    $region52: #{conv_res_block.4} parent=5 // pred_fallthru
      _
  $region6: #{conv_res_block.4} parent=0 // loop_footer
    %s17 = sadd.s32 1, %s13
  $region7: #{conv_res_block.4} parent=0 // loop_footer_branch
    %12 = sbr.rel target = $region3
  $region8: #{conv_res_block.4} parent=0 // loop_exit
    _

// kernel: conv_res_block.5
$region0: #{conv_res_block.5}
  #allocation0 [shape = 'u32[]', space=smem, size = 0x4, offset = 0x4, fixed_abs, tag = 'smem constant byte address 0x4 - core index']
  #allocation1 [shape = 'u32[144,128]{1,0:T(1,128)}', space=vmem, size = 0x12000, scoped, tag = 'internal scratch']
  %s0 = inlined_call_operand.vmem [shape: bf16[8,1024], index: 0, kind: input, shape index: {}, may-alias: {0,1,2}]
  %s1 = inlined_call_operand.vmem [shape: bf16[8,1024], index: 1, kind: input, shape index: {}, may-alias: {0,1,2}]
  %s2 = inlined_call_operand.vmem [shape: bf16[8,1024], index: 2, kind: input, shape index: {}, may-alias: {0,1,2}]
  %s3 = inlined_call_operand.vmem [shape: bf16[8,512], index: 3, kind: input, shape index: {}]
  %s4 = inlined_call_operand.vmem [shape: bf16[27,8,8], index: 4, kind: input, shape index: {}]
  %s5 = inlined_call_operand.vmem [shape: f32[8,1], index: 5, kind: input, shape index: {}]
  %s6 = inlined_call_operand.vmem [shape: f32[8,1], index: 6, kind: input, shape index: {}]
  %s7 = inlined_call_operand.vmem [shape: f32[8,1], index: 7, kind: input, shape index: {}]
  %s8 = inlined_call_operand.vmem [shape: f32[8,1], index: 8, kind: input, shape index: {}]
  %s9 = inlined_call_operand.vmem [shape: f32[8,512], index: 9, kind: output, shape index: {}]
  %s10 = sld [smem:[#allocation0]]
  $region69: #{conv_res_block.5} parent=0
    _
  %s12 = ssub.s32 1, %s10
  %s13 = scalar_select 0, %s12, %s10
  loop: start=0, step=1, limit=4
  $region2: #{conv_res_block.5} parent=0 // loop_pre_header
    _
  $region3: #{conv_res_block.5} parent=0 // loop_header
    %s15 = sphi 0, %s19
    %p16 = scmp.ge.s32.totalorder %s15, 4
    %s31 = sphi 0, %s33
    %s34 = sphi 0, %s31
    %s35 = sphi 0, %s34
    %s51 = sphi 0, %s35
    %s59 = sphi 0, %s61
    %s62 = sphi 0, %s59
    %s63 = sphi 0, %s62
    %s79 = sphi 0, %s63
    %s89 = sphi 0, %s91
    %s92 = sphi 0, %s89
    %s93 = sphi 0, %s92
    %s109 = sphi 0, %s93
    %s115 = sphi 0, %s117
    %s118 = sphi 0, %s115
    %s119 = sphi 0, %s118
    %s135 = sphi 0, %s119
    %s139 = sphi 0, %s139
    %s141 = sphi 0, %s139
    %s142 = sphi 0, %s141
    %s156 = sphi 0, %s142
    %s160 = sphi 0, %s160
    %s162 = sphi 0, %s160
    %s163 = sphi 0, %s162
    %s177 = sphi 0, %s163
    %s181 = sphi 0, %s181
    %s183 = sphi 0, %s181
    %s184 = sphi 0, %s183
    %s198 = sphi 0, %s184
    %s202 = sphi 0, %s202
    %s204 = sphi 0, %s202
    %s205 = sphi 0, %s204
    %s219 = sphi 0, %s205
    %s223 = sphi 0, %s223
    %s225 = sphi 0, %s223
    %s226 = sphi 0, %s225
    %s240 = sphi 0, %s226
    %s246 = sphi 0, %s248
    %s249 = sphi 0, %s246
    %s250 = sphi 0, %s249
    %s266 = sphi 0, %s250
  $region4: #{conv_res_block.5} parent=0 // loop_header_branch
    %18 = sbr.rel (%p16) target = $region8
  $region5: #{conv_res_block.5} parent=0 // loop_body
    %s20 = ssub.s32 %s15, 1
    %s21 = ssub.s32 %s15, 2
    %s22 = sadd.s32 %s15, 1
    %s23 = sadd.s32 %s15, 1
    %s24 = smul.u32 %s23, 2
    %s25 = ssub.s32 %s24, 1
    %s26 = sadd.s32 %s22, 1
    %s27 = smul.u32 %s26, 2
    %s28 = ssub.s32 %s27, 1
    %s29 = ssub.s32 %s25, %s28
    %p30 = scmp.eq.s32.totalorder %s29, 0
    %s32 = sadd.s32 %s31, 1
    %s33 = scalar_select %p30, %s31, %s32
    %p36 = pneg %p30
    %p37 = scmp.eq.s32.totalorder %s15, 1
    %p38 = por %p36, %p37
    %p39 = scmp.ne.s32.totalorder %s31, %s34
    %p40 = scmp.eq.s32.totalorder %s15, 0
    %p41 = por %p39, %p40
    %p42 = scmp.ne.s32.totalorder %s31, %s34
    %p43 = scmp.eq.s32.totalorder %s20, 1
    %p44 = por %p42, %p43
    %p45 = scmp.ne.s32.totalorder %s34, %s35
    %p46 = scmp.eq.s32.totalorder %s20, 0
    %p47 = por %p45, %p46
    %p48 = scmp.ne.s32.totalorder %s34, %s35
    %p49 = scmp.eq.s32.totalorder %s21, 1
    %p50 = por %p48, %p49
    %p52 = scmp.ne.s32.totalorder %s35, %s51
    %p53 = scmp.eq.s32.totalorder %s21, 0
    %p54 = por %p52, %p53
    %s55 = sadd.s32 %s15, 1
    %s56 = sadd.s32 %s22, 1
    %s57 = ssub.s32 %s55, %s56
    %p58 = scmp.eq.s32.totalorder %s57, 0
    %s60 = sadd.s32 %s59, 1
    %s61 = scalar_select %p58, %s59, %s60
    %p64 = pneg %p58
    %p65 = scmp.eq.s32.totalorder %s15, 1
    %p66 = por %p64, %p65
    %p67 = scmp.ne.s32.totalorder %s59, %s62
    %p68 = scmp.eq.s32.totalorder %s15, 0
    %p69 = por %p67, %p68
    %p70 = scmp.ne.s32.totalorder %s59, %s62
    %p71 = scmp.eq.s32.totalorder %s20, 1
    %p72 = por %p70, %p71
    %p73 = scmp.ne.s32.totalorder %s62, %s63
    %p74 = scmp.eq.s32.totalorder %s20, 0
    %p75 = por %p73, %p74
    %p76 = scmp.ne.s32.totalorder %s62, %s63
    %p77 = scmp.eq.s32.totalorder %s21, 1
    %p78 = por %p76, %p77
    %p80 = scmp.ne.s32.totalorder %s63, %s79
    %p81 = scmp.eq.s32.totalorder %s21, 0
    %p82 = por %p80, %p81
    %s83 = sadd.s32 %s15, 2
    %s84 = smul.u32 %s83, 2
    %s85 = sadd.s32 %s22, 2
    %s86 = smul.u32 %s85, 2
    %s87 = ssub.s32 %s84, %s86
    %p88 = scmp.eq.s32.totalorder %s87, 0
    %s90 = sadd.s32 %s89, 1
    %s91 = scalar_select %p88, %s89, %s90
    %p94 = pneg %p88
    %p95 = scmp.eq.s32.totalorder %s15, 1
    %p96 = por %p94, %p95
    %p97 = scmp.ne.s32.totalorder %s89, %s92
    %p98 = scmp.eq.s32.totalorder %s15, 0
    %p99 = por %p97, %p98
    %p100 = scmp.ne.s32.totalorder %s89, %s92
    %p101 = scmp.eq.s32.totalorder %s20, 1
    %p102 = por %p100, %p101
    %p103 = scmp.ne.s32.totalorder %s92, %s93
    %p104 = scmp.eq.s32.totalorder %s20, 0
    %p105 = por %p103, %p104
    %p106 = scmp.ne.s32.totalorder %s92, %s93
    %p107 = scmp.eq.s32.totalorder %s21, 1
    %p108 = por %p106, %p107
    %p110 = scmp.ne.s32.totalorder %s93, %s109
    %p111 = scmp.eq.s32.totalorder %s21, 0
    %p112 = por %p110, %p111
    %s113 = ssub.s32 %s15, %s22
    %p114 = scmp.eq.s32.totalorder %s113, 0
    %s116 = sadd.s32 %s115, 1
    %s117 = scalar_select %p114, %s115, %s116
    %p120 = pneg %p114
    %p121 = scmp.eq.s32.totalorder %s15, 1
    %p122 = por %p120, %p121
    %p123 = scmp.ne.s32.totalorder %s115, %s118
    %p124 = scmp.eq.s32.totalorder %s15, 0
    %p125 = por %p123, %p124
    %p126 = scmp.ne.s32.totalorder %s115, %s118
    %p127 = scmp.eq.s32.totalorder %s20, 1
    %p128 = por %p126, %p127
    %p129 = scmp.ne.s32.totalorder %s118, %s119
    %p130 = scmp.eq.s32.totalorder %s20, 0
    %p131 = por %p129, %p130
    %p132 = scmp.ne.s32.totalorder %s118, %s119
    %p133 = scmp.eq.s32.totalorder %s21, 1
    %p134 = por %p132, %p133
    %p136 = scmp.ne.s32.totalorder %s119, %s135
    %p137 = scmp.eq.s32.totalorder %s21, 0
    %p138 = por %p136, %p137
    %s140 = sadd.s32 %s139, 1
    %p143 = scmp.eq.s32.totalorder %s15, 1
    %p144 = scmp.ne.s32.totalorder %s139, %s141
    %p145 = scmp.eq.s32.totalorder %s15, 0
    %p146 = por %p144, %p145
    %p147 = scmp.ne.s32.totalorder %s139, %s141
    %p148 = scmp.eq.s32.totalorder %s20, 1
    %p149 = por %p147, %p148
    %p150 = scmp.ne.s32.totalorder %s141, %s142
    %p151 = scmp.eq.s32.totalorder %s20, 0
    %p152 = por %p150, %p151
    %p153 = scmp.ne.s32.totalorder %s141, %s142
    %p154 = scmp.eq.s32.totalorder %s21, 1
    %p155 = por %p153, %p154
    %p157 = scmp.ne.s32.totalorder %s142, %s156
    %p158 = scmp.eq.s32.totalorder %s21, 0
    %p159 = por %p157, %p158
    %s161 = sadd.s32 %s160, 1
    %p164 = scmp.eq.s32.totalorder %s15, 1
    %p165 = scmp.ne.s32.totalorder %s160, %s162
    %p166 = scmp.eq.s32.totalorder %s15, 0
    %p167 = por %p165, %p166
    %p168 = scmp.ne.s32.totalorder %s160, %s162
    %p169 = scmp.eq.s32.totalorder %s20, 1
    %p170 = por %p168, %p169
    %p171 = scmp.ne.s32.totalorder %s162, %s163
    %p172 = scmp.eq.s32.totalorder %s20, 0
    %p173 = por %p171, %p172
    %p174 = scmp.ne.s32.totalorder %s162, %s163
    %p175 = scmp.eq.s32.totalorder %s21, 1
    %p176 = por %p174, %p175
    %p178 = scmp.ne.s32.totalorder %s163, %s177
    %p179 = scmp.eq.s32.totalorder %s21, 0
    %p180 = por %p178, %p179
    %s182 = sadd.s32 %s181, 1
    %p185 = scmp.eq.s32.totalorder %s15, 1
    %p186 = scmp.ne.s32.totalorder %s181, %s183
    %p187 = scmp.eq.s32.totalorder %s15, 0
    %p188 = por %p186, %p187
    %p189 = scmp.ne.s32.totalorder %s181, %s183
    %p190 = scmp.eq.s32.totalorder %s20, 1
    %p191 = por %p189, %p190
    %p192 = scmp.ne.s32.totalorder %s183, %s184
    %p193 = scmp.eq.s32.totalorder %s20, 0
    %p194 = por %p192, %p193
    %p195 = scmp.ne.s32.totalorder %s183, %s184
    %p196 = scmp.eq.s32.totalorder %s21, 1
    %p197 = por %p195, %p196
    %p199 = scmp.ne.s32.totalorder %s184, %s198
    %p200 = scmp.eq.s32.totalorder %s21, 0
    %p201 = por %p199, %p200
    %s203 = sadd.s32 %s202, 1
    %p206 = scmp.eq.s32.totalorder %s15, 1
    %p207 = scmp.ne.s32.totalorder %s202, %s204
    %p208 = scmp.eq.s32.totalorder %s15, 0
    %p209 = por %p207, %p208
    %p210 = scmp.ne.s32.totalorder %s202, %s204
    %p211 = scmp.eq.s32.totalorder %s20, 1
    %p212 = por %p210, %p211
    %p213 = scmp.ne.s32.totalorder %s204, %s205
    %p214 = scmp.eq.s32.totalorder %s20, 0
    %p215 = por %p213, %p214
    %p216 = scmp.ne.s32.totalorder %s204, %s205
    %p217 = scmp.eq.s32.totalorder %s21, 1
    %p218 = por %p216, %p217
    %p220 = scmp.ne.s32.totalorder %s205, %s219
    %p221 = scmp.eq.s32.totalorder %s21, 0
    %p222 = por %p220, %p221
    %s224 = sadd.s32 %s223, 1
    %p227 = scmp.eq.s32.totalorder %s15, 1
    %p228 = scmp.ne.s32.totalorder %s223, %s225
    %p229 = scmp.eq.s32.totalorder %s15, 0
    %p230 = por %p228, %p229
    %p231 = scmp.ne.s32.totalorder %s223, %s225
    %p232 = scmp.eq.s32.totalorder %s20, 1
    %p233 = por %p231, %p232
    %p234 = scmp.ne.s32.totalorder %s225, %s226
    %p235 = scmp.eq.s32.totalorder %s20, 0
    %p236 = por %p234, %p235
    %p237 = scmp.ne.s32.totalorder %s225, %s226
    %p238 = scmp.eq.s32.totalorder %s21, 1
    %p239 = por %p237, %p238
    %p241 = scmp.ne.s32.totalorder %s226, %s240
    %p242 = scmp.eq.s32.totalorder %s21, 0
    %p243 = por %p241, %p242
    %s244 = ssub.s32 %s15, %s22
    %p245 = scmp.eq.s32.totalorder %s244, 0
    %s247 = sadd.s32 %s246, 1
    %s248 = scalar_select %p245, %s246, %s247
    %p251 = pneg %p245
    %p252 = scmp.eq.s32.totalorder %s15, 1
    %p253 = por %p251, %p252
    %p254 = scmp.ne.s32.totalorder %s246, %s249
    %p255 = scmp.eq.s32.totalorder %s15, 0
    %p256 = por %p254, %p255
    %p257 = scmp.ne.s32.totalorder %s246, %s249
    %p258 = scmp.eq.s32.totalorder %s20, 1
    %p259 = por %p257, %p258
    %p260 = scmp.ne.s32.totalorder %s249, %s250
    %p261 = scmp.eq.s32.totalorder %s20, 0
    %p262 = por %p260, %p261
    %p263 = scmp.ne.s32.totalorder %s249, %s250
    %p264 = scmp.eq.s32.totalorder %s21, 1
    %p265 = por %p263, %p264
    %p267 = scmp.ne.s32.totalorder %s250, %s266
    %p268 = scmp.eq.s32.totalorder %s21, 0
    %p269 = por %p267, %p268
    %p270 = scmp.le.s32.totalorder 1, %s15
    %p271 = scmp.lt.s32.totalorder %s15, 3
    %p272 = pnand %p270, %p271
    %p273 = pneg %p272
    // Predicated region
    $region9: #{conv_res_block.5} parent=5 // pred_check
      _
    $region10: #{conv_res_block.5} parent=5 // pred_check_branch
      %275 = sbr.rel (%p272) target = $region12
    $region11: #{conv_res_block.5} parent=5 // pred_region
      %s276 = ssub.s32 %s15, 1
      // Predicated region
      $region13: #{conv_res_block.5} parent=11 // pred_check
        %p277 = pneg %p152
      $region14: #{conv_res_block.5} parent=11 // pred_check_branch
        %279 = sbr.rel (%p277) target = $region16
      $region15: #{conv_res_block.5} parent=11 // pred_region
        _
      $region16: #{conv_res_block.5} parent=11 // pred_fallthru
        _
      // Predicated region
      $region17: #{conv_res_block.5} parent=11 // pred_check
        %p280 = pneg %p173
      $region18: #{conv_res_block.5} parent=11 // pred_check_branch
        %282 = sbr.rel (%p280) target = $region20
      $region19: #{conv_res_block.5} parent=11 // pred_region
        _
      $region20: #{conv_res_block.5} parent=11 // pred_fallthru
        _
      // Predicated region
      $region21: #{conv_res_block.5} parent=11 // pred_check
        %p283 = pneg %p194
      $region22: #{conv_res_block.5} parent=11 // pred_check_branch
        %285 = sbr.rel (%p283) target = $region24
      $region23: #{conv_res_block.5} parent=11 // pred_region
        _
      $region24: #{conv_res_block.5} parent=11 // pred_fallthru
        _
      // Predicated region
      $region25: #{conv_res_block.5} parent=11 // pred_check
        %p286 = pneg %p215
      $region26: #{conv_res_block.5} parent=11 // pred_check_branch
        %288 = sbr.rel (%p286) target = $region28
      $region27: #{conv_res_block.5} parent=11 // pred_region
        _
      $region28: #{conv_res_block.5} parent=11 // pred_fallthru
        _
      // Predicated region
      $region29: #{conv_res_block.5} parent=11 // pred_check
        %p289 = pneg %p236
      $region30: #{conv_res_block.5} parent=11 // pred_check_branch
        %291 = sbr.rel (%p289) target = $region32
      $region31: #{conv_res_block.5} parent=11 // pred_region
        _
      $region32: #{conv_res_block.5} parent=11 // pred_fallthru
        _
    $region12: #{conv_res_block.5} parent=5 // pred_fallthru
      _
    %p292 = scmp.lt.s32.totalorder %s15, 2
    // Predicated region
    $region33: #{conv_res_block.5} parent=5 // pred_check
      %p293 = pneg %p292
    $region34: #{conv_res_block.5} parent=5 // pred_check_branch
      %295 = sbr.rel (%p293) target = $region36
    $region35: #{conv_res_block.5} parent=5 // pred_region
      // Predicated region
      $region37: #{conv_res_block.5} parent=35 // pred_check
        %p296 = pneg %p41
      $region38: #{conv_res_block.5} parent=35 // pred_check_branch
        %298 = sbr.rel (%p296) target = $region40
      $region39: #{conv_res_block.5} parent=35 // pred_region
        %s299 = sadd.s32 %s15, 1
        %s300 = smul.u32 %s299, 2
        %s301 = ssub.s32 %s300, 1
        %p302 = scmp.lt.s32.totalorder %s301, 7
        %s303 = scalar_select %p302, %s301, 7
        %s304 = smul.addr %s303, 4
        %s305 = scalar_lea.vmem %s0, %s304
        %s306 = sadd.s32 %s15, 1
        %s307 = smul.u32 %s306, 2
        %s308 = ssub.s32 %s307, 1
      $region40: #{conv_res_block.5} parent=35 // pred_fallthru
        _
      // Predicated region
      $region41: #{conv_res_block.5} parent=35 // pred_check
        %p309 = pneg %p69
      $region42: #{conv_res_block.5} parent=35 // pred_check_branch
        %311 = sbr.rel (%p309) target = $region44
      $region43: #{conv_res_block.5} parent=35 // pred_region
        %s312 = sadd.s32 %s15, 1
        %s313 = smul.u32 2, %s312
        %p314 = scmp.lt.s32.totalorder %s313, 7
        %s315 = scalar_select %p314, %s313, 7
        %s316 = smul.addr %s315, 4
        %s317 = scalar_lea.vmem %s1, %s316
        %s318 = sadd.s32 %s15, 1
        %s319 = smul.u32 2, %s318
      $region44: #{conv_res_block.5} parent=35 // pred_fallthru
        _
      // Predicated region
      $region45: #{conv_res_block.5} parent=35 // pred_check
        %p320 = pneg %p99
      $region46: #{conv_res_block.5} parent=35 // pred_check_branch
        %322 = sbr.rel (%p320) target = $region48
      $region47: #{conv_res_block.5} parent=35 // pred_region
        %s323 = sadd.s32 %s15, 2
        %s324 = smul.u32 %s323, 2
        %p325 = scmp.lt.s32.totalorder %s324, 7
        %s326 = scalar_select %p325, %s324, 7
        %s327 = smul.addr %s326, 4
        %s328 = scalar_lea.vmem %s2, %s327
        %s329 = sadd.s32 %s15, 2
        %s330 = smul.u32 %s329, 2
      $region48: #{conv_res_block.5} parent=35 // pred_fallthru
        _
      // Predicated region
      $region49: #{conv_res_block.5} parent=35 // pred_check
        %p331 = pneg %p125
      $region50: #{conv_res_block.5} parent=35 // pred_check_branch
        %333 = sbr.rel (%p331) target = $region52
      $region51: #{conv_res_block.5} parent=35 // pred_region
        %s334 = smul.u32 2, %s15
        %p335 = scmp.lt.s32.totalorder %s334, 3
        %s336 = scalar_select %p335, %s334, 3
        %s337 = smul.addr %s336, 4
        %s338 = scalar_lea.vmem %s3, %s337
        %s339 = smul.u32 2, %s15
      $region52: #{conv_res_block.5} parent=35 // pred_fallthru
        _
    $region36: #{conv_res_block.5} parent=5 // pred_fallthru
      _
    %p340 = scmp.le.s32.totalorder 1, %s15
    %p341 = scmp.lt.s32.totalorder %s15, 3
    %p342 = pnand %p340, %p341
    %p343 = pneg %p342
    // Predicated region
    $region53: #{conv_res_block.5} parent=5 // pred_check
      _
    $region54: #{conv_res_block.5} parent=5 // pred_check_branch
      %345 = sbr.rel (%p342) target = $region56
    $region55: #{conv_res_block.5} parent=5 // pred_region
      %s346 = ssub.s32 %s15, 1
      %s347 = sadd.s32 %s20, 1
      %s348 = smul.u32 %s347, 2
      %s349 = ssub.s32 %s348, 1
      %p350 = scmp.lt.s32.totalorder %s349, 7
      %s351 = scalar_select %p350, %s349, 7
      %s352 = smul.addr %s351, 4
      %s353 = scalar_lea.vmem %s0, %s352
      %p354 = pneg %p47
      %p355 = pneg %p44
      %s356 = sadd.s32 %s20, 1
      %s357 = smul.u32 2, %s356
      %p358 = scmp.lt.s32.totalorder %s357, 7
      %s359 = scalar_select %p358, %s357, 7
      %s360 = smul.addr %s359, 4
      %s361 = scalar_lea.vmem %s1, %s360
      %p362 = pneg %p75
      %p363 = pneg %p72
      %s364 = sadd.s32 %s20, 2
      %s365 = smul.u32 %s364, 2
      %p366 = scmp.lt.s32.totalorder %s365, 7
      %s367 = scalar_select %p366, %s365, 7
      %s368 = smul.addr %s367, 4
      %s369 = scalar_lea.vmem %s2, %s368
      %p370 = pneg %p105
      %p371 = pneg %p102
      %s372 = smul.u32 2, %s20
      %p373 = scmp.lt.s32.totalorder %s372, 3
      %s374 = scalar_select %p373, %s372, 3
      %s375 = smul.addr %s374, 4
      %s376 = scalar_lea.vmem %s3, %s375
      %p377 = pneg %p131
      %p378 = pneg %p128
      %p379 = pneg %p152
      %p380 = pneg %p149
      %p381 = pneg %p173
      %p382 = pneg %p170
      %p383 = pneg %p194
      %p384 = pneg %p191
      %p385 = pneg %p215
      %p386 = pneg %p212
      %p387 = pneg %p236
      %p388 = pneg %p233
      %p389 = pneg %p262
      %p390 = pneg %p259
      %s391 = smul.u32 2, %s20
      %p392 = scmp.lt.s32.totalorder %s391, 3
      %s393 = scalar_select %p392, %s391, 3
      %s394 = smul.addr %s393, 8
      %s395 = scalar_lea.vmem %s9, %s394
      %s396 = sadd.s32 %s20, 1
      %s397 = smul.u32 %s396, 2
      %s398 = ssub.s32 %s397, 1
      %p399 = scmp.lt.s32.totalorder %s398, 7
      %s400 = scalar_select %p399, %s398, 7
      %s401 = smul.addr %s400, 4
      %s402 = scalar_lea.vmem %s0, %s401
      %s403 = sadd.s32 %s20, 1
      %s404 = smul.u32 %s403, 2
      %s405 = ssub.s32 %s404, 1
      %s406 = sadd.s32 %s20, 1
      %s407 = smul.u32 2, %s406
      %p408 = scmp.lt.s32.totalorder %s407, 7
      %s409 = scalar_select %p408, %s407, 7
      %s410 = smul.addr %s409, 4
      %s411 = scalar_lea.vmem %s1, %s410
      %s412 = sadd.s32 %s20, 1
      %s413 = smul.u32 2, %s412
      %s414 = sadd.s32 %s20, 2
      %s415 = smul.u32 %s414, 2
      %p416 = scmp.lt.s32.totalorder %s415, 7
      %s417 = scalar_select %p416, %s415, 7
      %s418 = smul.addr %s417, 4
      %s419 = scalar_lea.vmem %s2, %s418
      %s420 = sadd.s32 %s20, 2
      %s421 = smul.u32 %s420, 2
      %s422 = smul.u32 2, %s20
      %p423 = scmp.lt.s32.totalorder %s422, 3
      %s424 = scalar_select %p423, %s422, 3
      %s425 = smul.addr %s424, 4
      %s426 = scalar_lea.vmem %s3, %s425
      %s427 = smul.u32 2, %s20
      %s428 = smul.u32 2, %s20
      %p429 = scmp.lt.s32.totalorder %s428, 3
      %s430 = scalar_select %p429, %s428, 3
      %s431 = smul.addr %s430, 8
      %s432 = scalar_lea.vmem %s9, %s431
      %s433 = smul.u32 2, %s20
      %v435 = vld [vmem:[%s402] sm:$0xf]
      %v436 = vld [vmem:[%s411] sm:$0xff]
      %v437 = vld [vmem:[%s419] sm:$0xf]
      %v439 = vunpack.c.l.b16 %v436
      %v440 = vunpack.c.h.b16 %v436
      %v441 = vpack.c.b16 %v439, %v439
      %v442 = vpack.c.b16 %v440, %v440
      %v443 = vld [vmem:[%s4] sm:$0xf]
      %s444 = scalar_lea.vmem %s4, 4
      %v445 = vld [vmem:[%s444] sm:$0xf]
      %447 = vrot.lane.b32.xlu0 %v435, 42
      %v448 = vpop.permute.xlu0 %447
      %449 = vrot.lane.b32.xlu0 %v441, 42
      %v450 = vpop.permute.xlu0 %449
      %451 = vrot.lane.b32.xlu0 %v442, 42
      %v452 = vpop.permute.xlu0 %451
      %vm453 = vcmask 343040
      %v454 = vsel %vm453, %v448, %v450
      %v455 = vsel %vm453, %v450, %v452
      %vm456 = vcmask 64512
      %v458 = vsel %vm456, %v445, 0
      %vm460 = vcmask 1043456
      %v462 = vsel %vm460, %v454, 0
      %v465 = vsel %vm460, %v455, 0
      %467 = vmatprep.subr.bf16.mxu0 %v465
      %468 = vmatpush1.bf16.msra.mxu0 %v462
      %469 = vmatprep.subr.bf16.mxu0 0
      %470 = vmatpush1.bf16.msra.mxu0 0
      %471 = vmatprep.subr.bf16.mxu0 0
      %472 = vmatpush1.bf16.msra.mxu0 0
      %473 = vmatprep.subr.bf16.mxu0 0
      %474 = vmatpush1.bf16.msra.mxu0 0
      %475 = vmatprep.subr.bf16.mxu0 0
      %476 = vmatpush1.bf16.msra.mxu0 0
      %477 = vmatprep.subr.bf16.mxu0 0
      %478 = vmatpush1.bf16.msra.mxu0 0
      %479 = vmatprep.subr.bf16.mxu0 0
      %480 = vmatpush1.bf16.msra.mxu0 0
      %481 = vmatprep.subr.bf16.mxu0 0
      %482 = vmatpush1.bf16.msra.mxu0 0
      %483 = vmatprep.subr.bf16.mxu0 0
      %484 = vmatpush1.bf16.msra.mxu0 0
      %485 = vmatprep.subr.bf16.mxu0 0
      %486 = vmatpush1.bf16.msra.mxu0 0
      %487 = vmatprep.subr.bf16.mxu0 0
      %488 = vmatpush1.bf16.msra.mxu0 0
      %489 = vmatprep.subr.bf16.mxu0 0
      %490 = vmatpush1.bf16.msra.mxu0 0
      %491 = vmatprep.subr.bf16.mxu0 0
      %492 = vmatpush1.bf16.msra.mxu0 0
      %493 = vmatprep.subr.bf16.mxu0 0
      %494 = vmatpush1.bf16.msra.mxu0 0
      %495 = vmatprep.subr.bf16.mxu0 0
      %496 = vmatpush1.bf16.msra.mxu0 0
      %497 = vmatprep.subr.bf16.mxu0 0
      %498 = vmatpush1.bf16.msra.mxu0 0
      %499 = vmatprep.mubr.bf16.mxu0 0
      %500 = vmatmul.mubr.bf16.gmra.mrb[0].mxu0 %v458
      %v501 = vpop.f32.mrb[0].mxu0
      %v502 = vadd.f32 0.0, %v501
      %v503 = vpop.f32.mrb[0].mxu0
      %v504 = vadd.f32 0.0, %v503
      %v505 = vpop.f32.mrb[0].mxu0
      %v506 = vpop.f32.mrb[0].mxu0
      %507 = vdwg.mxu0
      %508 = vrot.lane.b32.xlu0 %v435, 43
      %v509 = vpop.permute.xlu0 %508
      %510 = vrot.lane.b32.xlu0 %v441, 43
      %v511 = vpop.permute.xlu0 %510
      %512 = vrot.lane.b32.xlu0 %v442, 43
      %v513 = vpop.permute.xlu0 %512
      %vm514 = vcmask 351232
      %v515 = vsel %vm514, %v509, %v511
      %v516 = vsel %vm514, %v511, %v513
      %v518 = vsel %vm456, %v443, 0
      %v521 = vsel %vm460, %v515, 0
      %v524 = vsel %vm460, %v516, 0
      %526 = vmatprep.subr.bf16.mxu0 %v524
      %527 = vmatpush1.bf16.msra.mxu0 %v521
      %528 = vmatprep.subr.bf16.mxu0 0
      %529 = vmatpush1.bf16.msra.mxu0 0
      %530 = vmatprep.subr.bf16.mxu0 0
      %531 = vmatpush1.bf16.msra.mxu0 0
      %532 = vmatprep.subr.bf16.mxu0 0
      %533 = vmatpush1.bf16.msra.mxu0 0
      %534 = vmatprep.subr.bf16.mxu0 0
      %535 = vmatpush1.bf16.msra.mxu0 0
      %536 = vmatprep.subr.bf16.mxu0 0
      %537 = vmatpush1.bf16.msra.mxu0 0
      %538 = vmatprep.subr.bf16.mxu0 0
      %539 = vmatpush1.bf16.msra.mxu0 0
      %540 = vmatprep.subr.bf16.mxu0 0
      %541 = vmatpush1.bf16.msra.mxu0 0
      %542 = vmatprep.subr.bf16.mxu0 0
      %543 = vmatpush1.bf16.msra.mxu0 0
      %544 = vmatprep.subr.bf16.mxu0 0
      %545 = vmatpush1.bf16.msra.mxu0 0
      %546 = vmatprep.subr.bf16.mxu0 0
      %547 = vmatpush1.bf16.msra.mxu0 0
      %548 = vmatprep.subr.bf16.mxu0 0
      %549 = vmatpush1.bf16.msra.mxu0 0
      %550 = vmatprep.subr.bf16.mxu0 0
      %551 = vmatpush1.bf16.msra.mxu0 0
      %552 = vmatprep.subr.bf16.mxu0 0
      %553 = vmatpush1.bf16.msra.mxu0 0
      %554 = vmatprep.subr.bf16.mxu0 0
      %555 = vmatpush1.bf16.msra.mxu0 0
      %556 = vmatprep.subr.bf16.mxu0 0
      %557 = vmatpush1.bf16.msra.mxu0 0
      %558 = vmatprep.mubr.bf16.mxu0 0
      %559 = vmatmul.mubr.bf16.gmra.mrb[0].mxu0 %v518
      %v560 = vpop.f32.mrb[0].mxu0
      %v561 = vadd.f32 %v502, %v560
      %v562 = vpop.f32.mrb[0].mxu0
      %v563 = vadd.f32 %v504, %v562
      %v564 = vpop.f32.mrb[0].mxu0
      %v565 = vpop.f32.mrb[0].mxu0
      %566 = vdwg.mxu0
      %s567 = scalar_lea.vmem %s4, 8
      %v568 = vld [vmem:[%s567] sm:$0xf]
      %569 = vrot.lane.b32.xlu0 %v435, 41
      %v570 = vpop.permute.xlu0 %569
      %571 = vrot.lane.b32.xlu0 %v441, 41
      %v572 = vpop.permute.xlu0 %571
      %573 = vrot.lane.b32.xlu0 %v442, 41
      %v574 = vpop.permute.xlu0 %573
      %vm575 = vcmask 334848
      %v576 = vsel %vm575, %v570, %v572
      %v577 = vsel %vm575, %v572, %v574
      %v579 = vsel %vm456, %v568, 0
      %v582 = vsel %vm460, %v576, 0
      %v585 = vsel %vm460, %v577, 0
      %587 = vmatprep.subr.bf16.mxu0 %v585
      %588 = vmatpush1.bf16.msra.mxu0 %v582
      %589 = vmatprep.subr.bf16.mxu0 0
      %590 = vmatpush1.bf16.msra.mxu0 0
      %591 = vmatprep.subr.bf16.mxu0 0
      %592 = vmatpush1.bf16.msra.mxu0 0
      %593 = vmatprep.subr.bf16.mxu0 0
      %594 = vmatpush1.bf16.msra.mxu0 0
      %595 = vmatprep.subr.bf16.mxu0 0
      %596 = vmatpush1.bf16.msra.mxu0 0
      %597 = vmatprep.subr.bf16.mxu0 0
      %598 = vmatpush1.bf16.msra.mxu0 0
      %599 = vmatprep.subr.bf16.mxu0 0
      %600 = vmatpush1.bf16.msra.mxu0 0
      %601 = vmatprep.subr.bf16.mxu0 0
      %602 = vmatpush1.bf16.msra.mxu0 0
      %603 = vmatprep.subr.bf16.mxu0 0
      %604 = vmatpush1.bf16.msra.mxu0 0
      %605 = vmatprep.subr.bf16.mxu0 0
      %606 = vmatpush1.bf16.msra.mxu0 0
      %607 = vmatprep.subr.bf16.mxu0 0
      %608 = vmatpush1.bf16.msra.mxu0 0
      %609 = vmatprep.subr.bf16.mxu0 0
      %610 = vmatpush1.bf16.msra.mxu0 0
      %611 = vmatprep.subr.bf16.mxu0 0
      %612 = vmatpush1.bf16.msra.mxu0 0
      %613 = vmatprep.subr.bf16.mxu0 0
      %614 = vmatpush1.bf16.msra.mxu0 0
      %615 = vmatprep.subr.bf16.mxu0 0
      %616 = vmatpush1.bf16.msra.mxu0 0
      %617 = vmatprep.subr.bf16.mxu0 0
      %618 = vmatpush1.bf16.msra.mxu0 0
      %619 = vmatprep.mubr.bf16.mxu0 0
      %620 = vmatmul.mubr.bf16.gmra.mrb[0].mxu0 %v579
      %v621 = vpop.f32.mrb[0].mxu0
      %v622 = vadd.f32 0.0, %v621
      %v623 = vpop.f32.mrb[0].mxu0
      %v624 = vadd.f32 0.0, %v623
      %v625 = vpop.f32.mrb[0].mxu0
      %v626 = vpop.f32.mrb[0].mxu0
      %627 = vdwg.mxu0
      %v628 = vadd.f32 %v561, %v622
      %v629 = vadd.f32 %v563, %v624
      %s630 = scalar_lea.vmem %s4, 12
      %v631 = vld [vmem:[%s630] sm:$0xf]
      %632 = vrot.lane.b32.xlu0 %v435, 37
      %v633 = vpop.permute.xlu0 %632
      %634 = vrot.lane.b32.xlu0 %v441, 37
      %v635 = vpop.permute.xlu0 %634
      %636 = vrot.lane.b32.xlu0 %v442, 37
      %v637 = vpop.permute.xlu0 %636
      %vm638 = vcmask 302080
      %v639 = vsel %vm638, %v633, %v635
      %v640 = vsel %vm638, %v635, %v637
      %v642 = vsel %vm456, %v631, 0
      %v645 = vsel %vm460, %v639, 0
      %v648 = vsel %vm460, %v640, 0
      %650 = vmatprep.subr.bf16.mxu0 %v648
      %651 = vmatpush1.bf16.msra.mxu0 %v645
      %652 = vmatprep.subr.bf16.mxu0 0
      %653 = vmatpush1.bf16.msra.mxu0 0
      %654 = vmatprep.subr.bf16.mxu0 0
      %655 = vmatpush1.bf16.msra.mxu0 0
      %656 = vmatprep.subr.bf16.mxu0 0
      %657 = vmatpush1.bf16.msra.mxu0 0
      %658 = vmatprep.subr.bf16.mxu0 0
      %659 = vmatpush1.bf16.msra.mxu0 0
      %660 = vmatprep.subr.bf16.mxu0 0
      %661 = vmatpush1.bf16.msra.mxu0 0
      %662 = vmatprep.subr.bf16.mxu0 0
      %663 = vmatpush1.bf16.msra.mxu0 0
      %664 = vmatprep.subr.bf16.mxu0 0
      %665 = vmatpush1.bf16.msra.mxu0 0
      %666 = vmatprep.subr.bf16.mxu0 0
      %667 = vmatpush1.bf16.msra.mxu0 0
      %668 = vmatprep.subr.bf16.mxu0 0
      %669 = vmatpush1.bf16.msra.mxu0 0
      %670 = vmatprep.subr.bf16.mxu0 0
      %671 = vmatpush1.bf16.msra.mxu0 0
      %672 = vmatprep.subr.bf16.mxu0 0
      %673 = vmatpush1.bf16.msra.mxu0 0
      %674 = vmatprep.subr.bf16.mxu0 0
      %675 = vmatpush1.bf16.msra.mxu0 0
      %676 = vmatprep.subr.bf16.mxu0 0
      %677 = vmatpush1.bf16.msra.mxu0 0
      %678 = vmatprep.subr.bf16.mxu0 0
      %679 = vmatpush1.bf16.msra.mxu0 0
      %680 = vmatprep.subr.bf16.mxu0 0
      %681 = vmatpush1.bf16.msra.mxu0 0
      %682 = vmatprep.mubr.bf16.mxu0 0
      %683 = vmatmul.mubr.bf16.gmra.mrb[0].mxu0 %v642
      %v684 = vpop.f32.mrb[0].mxu0
      %v685 = vadd.f32 0.0, %v684
      %v686 = vpop.f32.mrb[0].mxu0
      %v687 = vadd.f32 0.0, %v686
      %v688 = vpop.f32.mrb[0].mxu0
      %v689 = vpop.f32.mrb[0].mxu0
      %690 = vdwg.mxu0
      %v691 = vadd.f32 %v628, %v685
      %v692 = vadd.f32 %v629, %v687
      %s693 = scalar_lea.vmem %s4, 16
      %v694 = vld [vmem:[%s693] sm:$0xf]
      %695 = vrot.lane.b32.xlu0 %v435, 36
      %v696 = vpop.permute.xlu0 %695
      %697 = vrot.lane.b32.xlu0 %v441, 36
      %v698 = vpop.permute.xlu0 %697
      %699 = vrot.lane.b32.xlu0 %v442, 36
      %v700 = vpop.permute.xlu0 %699
      %vm701 = vcmask 293888
      %v702 = vsel %vm701, %v696, %v698
      %v703 = vsel %vm701, %v698, %v700
      %v705 = vsel %vm456, %v694, 0
      %v708 = vsel %vm460, %v702, 0
      %v711 = vsel %vm460, %v703, 0
      %713 = vmatprep.subr.bf16.mxu0 %v711
      %714 = vmatpush1.bf16.msra.mxu0 %v708
      %715 = vmatprep.subr.bf16.mxu0 0
      %716 = vmatpush1.bf16.msra.mxu0 0
      %717 = vmatprep.subr.bf16.mxu0 0
      %718 = vmatpush1.bf16.msra.mxu0 0
      %719 = vmatprep.subr.bf16.mxu0 0
      %720 = vmatpush1.bf16.msra.mxu0 0
      %721 = vmatprep.subr.bf16.mxu0 0
      %722 = vmatpush1.bf16.msra.mxu0 0
      %723 = vmatprep.subr.bf16.mxu0 0
      %724 = vmatpush1.bf16.msra.mxu0 0
      %725 = vmatprep.subr.bf16.mxu0 0
      %726 = vmatpush1.bf16.msra.mxu0 0
      %727 = vmatprep.subr.bf16.mxu0 0
      %728 = vmatpush1.bf16.msra.mxu0 0
      %729 = vmatprep.subr.bf16.mxu0 0
      %730 = vmatpush1.bf16.msra.mxu0 0
      %731 = vmatprep.subr.bf16.mxu0 0
      %732 = vmatpush1.bf16.msra.mxu0 0
      %733 = vmatprep.subr.bf16.mxu0 0
      %734 = vmatpush1.bf16.msra.mxu0 0
      %735 = vmatprep.subr.bf16.mxu0 0
      %736 = vmatpush1.bf16.msra.mxu0 0
      %737 = vmatprep.subr.bf16.mxu0 0
      %738 = vmatpush1.bf16.msra.mxu0 0
      %739 = vmatprep.subr.bf16.mxu0 0
      %740 = vmatpush1.bf16.msra.mxu0 0
      %741 = vmatprep.subr.bf16.mxu0 0
      %742 = vmatpush1.bf16.msra.mxu0 0
      %743 = vmatprep.subr.bf16.mxu0 0
      %744 = vmatpush1.bf16.msra.mxu0 0
      %745 = vmatprep.mubr.bf16.mxu0 0
      %746 = vmatmul.mubr.bf16.gmra.mrb[0].mxu0 %v705
      %v747 = vpop.f32.mrb[0].mxu0
      %v748 = vadd.f32 0.0, %v747
      %v749 = vpop.f32.mrb[0].mxu0
      %v750 = vadd.f32 0.0, %v749
      %v751 = vpop.f32.mrb[0].mxu0
      %v752 = vpop.f32.mrb[0].mxu0
      %753 = vdwg.mxu0
      %v754 = vadd.f32 %v691, %v748
      %v755 = vadd.f32 %v692, %v750
      %s756 = scalar_lea.vmem %s4, 20
      %v757 = vld [vmem:[%s756] sm:$0xf]
      %758 = vrot.lane.b32.xlu0 %v435, 35
      %v759 = vpop.permute.xlu0 %758
      %760 = vrot.lane.b32.xlu0 %v441, 35
      %v761 = vpop.permute.xlu0 %760
      %762 = vrot.lane.b32.xlu0 %v442, 35
      %v763 = vpop.permute.xlu0 %762
      %vm764 = vcmask 285696
      %v765 = vsel %vm764, %v759, %v761
      %v766 = vsel %vm764, %v761, %v763
      %v768 = vsel %vm456, %v757, 0
      %v771 = vsel %vm460, %v765, 0
      %v774 = vsel %vm460, %v766, 0
      %776 = vmatprep.subr.bf16.mxu0 %v774
      %777 = vmatpush1.bf16.msra.mxu0 %v771
      %778 = vmatprep.subr.bf16.mxu0 0
      %779 = vmatpush1.bf16.msra.mxu0 0
      %780 = vmatprep.subr.bf16.mxu0 0
      %781 = vmatpush1.bf16.msra.mxu0 0
      %782 = vmatprep.subr.bf16.mxu0 0
      %783 = vmatpush1.bf16.msra.mxu0 0
      %784 = vmatprep.subr.bf16.mxu0 0
      %785 = vmatpush1.bf16.msra.mxu0 0
      %786 = vmatprep.subr.bf16.mxu0 0
      %787 = vmatpush1.bf16.msra.mxu0 0
      %788 = vmatprep.subr.bf16.mxu0 0
      %789 = vmatpush1.bf16.msra.mxu0 0
      %790 = vmatprep.subr.bf16.mxu0 0
      %791 = vmatpush1.bf16.msra.mxu0 0
      %792 = vmatprep.subr.bf16.mxu0 0
      %793 = vmatpush1.bf16.msra.mxu0 0
      %794 = vmatprep.subr.bf16.mxu0 0
      %795 = vmatpush1.bf16.msra.mxu0 0
      %796 = vmatprep.subr.bf16.mxu0 0
      %797 = vmatpush1.bf16.msra.mxu0 0
      %798 = vmatprep.subr.bf16.mxu0 0
      %799 = vmatpush1.bf16.msra.mxu0 0
      %800 = vmatprep.subr.bf16.mxu0 0
      %801 = vmatpush1.bf16.msra.mxu0 0
      %802 = vmatprep.subr.bf16.mxu0 0
      %803 = vmatpush1.bf16.msra.mxu0 0
      %804 = vmatprep.subr.bf16.mxu0 0
      %805 = vmatpush1.bf16.msra.mxu0 0
      %806 = vmatprep.subr.bf16.mxu0 0
      %807 = vmatpush1.bf16.msra.mxu0 0
      %808 = vmatprep.mubr.bf16.mxu0 0
      %809 = vmatmul.mubr.bf16.gmra.mrb[0].mxu0 %v768
      %v810 = vpop.f32.mrb[0].mxu0
      %v811 = vadd.f32 0.0, %v810
      %v812 = vpop.f32.mrb[0].mxu0
      %v813 = vadd.f32 0.0, %v812
      %v814 = vpop.f32.mrb[0].mxu0
      %v815 = vpop.f32.mrb[0].mxu0
      %816 = vdwg.mxu0
      %v817 = vadd.f32 %v754, %v811
      %v818 = vadd.f32 %v755, %v813
      %s819 = scalar_lea.vmem %s4, 24
      %v820 = vld [vmem:[%s819] sm:$0xf]
      %821 = vrot.lane.b32.xlu0 %v435, 31
      %v822 = vpop.permute.xlu0 %821
      %823 = vrot.lane.b32.xlu0 %v441, 31
      %v824 = vpop.permute.xlu0 %823
      %825 = vrot.lane.b32.xlu0 %v442, 31
      %v826 = vpop.permute.xlu0 %825
      %vm827 = vcmask 252928
      %v828 = vsel %vm827, %v822, %v824
      %v829 = vsel %vm827, %v824, %v826
      %v831 = vsel %vm456, %v820, 0
      %v834 = vsel %vm460, %v828, 0
      %v837 = vsel %vm460, %v829, 0
      %839 = vmatprep.subr.bf16.mxu0 %v837
      %840 = vmatpush1.bf16.msra.mxu0 %v834
      %841 = vmatprep.subr.bf16.mxu0 0
      %842 = vmatpush1.bf16.msra.mxu0 0
      %843 = vmatprep.subr.bf16.mxu0 0
      %844 = vmatpush1.bf16.msra.mxu0 0
      %845 = vmatprep.subr.bf16.mxu0 0
      %846 = vmatpush1.bf16.msra.mxu0 0
      %847 = vmatprep.subr.bf16.mxu0 0
      %848 = vmatpush1.bf16.msra.mxu0 0
      %849 = vmatprep.subr.bf16.mxu0 0
      %850 = vmatpush1.bf16.msra.mxu0 0
      %851 = vmatprep.subr.bf16.mxu0 0
      %852 = vmatpush1.bf16.msra.mxu0 0
      %853 = vmatprep.subr.bf16.mxu0 0
      %854 = vmatpush1.bf16.msra.mxu0 0
      %855 = vmatprep.subr.bf16.mxu0 0
      %856 = vmatpush1.bf16.msra.mxu0 0
      %857 = vmatprep.subr.bf16.mxu0 0
      %858 = vmatpush1.bf16.msra.mxu0 0
      %859 = vmatprep.subr.bf16.mxu0 0
      %860 = vmatpush1.bf16.msra.mxu0 0
      %861 = vmatprep.subr.bf16.mxu0 0
      %862 = vmatpush1.bf16.msra.mxu0 0
      %863 = vmatprep.subr.bf16.mxu0 0
      %864 = vmatpush1.bf16.msra.mxu0 0
      %865 = vmatprep.subr.bf16.mxu0 0
      %866 = vmatpush1.bf16.msra.mxu0 0
      %867 = vmatprep.subr.bf16.mxu0 0
      %868 = vmatpush1.bf16.msra.mxu0 0
      %869 = vmatprep.subr.bf16.mxu0 0
      %870 = vmatpush1.bf16.msra.mxu0 0
      %871 = vmatprep.mubr.bf16.mxu0 0
      %872 = vmatmul.mubr.bf16.gmra.mrb[0].mxu0 %v831
      %v873 = vpop.f32.mrb[0].mxu0
      %v874 = vadd.f32 0.0, %v873
      %v875 = vpop.f32.mrb[0].mxu0
      %v876 = vadd.f32 0.0, %v875
      %v877 = vpop.f32.mrb[0].mxu0
      %v878 = vpop.f32.mrb[0].mxu0
      %879 = vdwg.mxu0
      %v880 = vadd.f32 %v817, %v874
      %v881 = vadd.f32 %v818, %v876
      %s882 = scalar_lea.vmem %s4, 28
      %v883 = vld [vmem:[%s882] sm:$0xf]
      %884 = vrot.lane.b32.xlu0 %v435, 30
      %v885 = vpop.permute.xlu0 %884
      %886 = vrot.lane.b32.xlu0 %v441, 30
      %v887 = vpop.permute.xlu0 %886
      %888 = vrot.lane.b32.xlu0 %v442, 30
      %v889 = vpop.permute.xlu0 %888
      %vm890 = vcmask 244736
      %v891 = vsel %vm890, %v885, %v887
      %v892 = vsel %vm890, %v887, %v889
      %v894 = vsel %vm456, %v883, 0
      %v897 = vsel %vm460, %v891, 0
      %v900 = vsel %vm460, %v892, 0
      %902 = vmatprep.subr.bf16.mxu0 %v900
      %903 = vmatpush1.bf16.msra.mxu0 %v897
      %904 = vmatprep.subr.bf16.mxu0 0
      %905 = vmatpush1.bf16.msra.mxu0 0
      %906 = vmatprep.subr.bf16.mxu0 0
      %907 = vmatpush1.bf16.msra.mxu0 0
      %908 = vmatprep.subr.bf16.mxu0 0
      %909 = vmatpush1.bf16.msra.mxu0 0
      %910 = vmatprep.subr.bf16.mxu0 0
      %911 = vmatpush1.bf16.msra.mxu0 0
      %912 = vmatprep.subr.bf16.mxu0 0
      %913 = vmatpush1.bf16.msra.mxu0 0
      %914 = vmatprep.subr.bf16.mxu0 0
      %915 = vmatpush1.bf16.msra.mxu0 0
      %916 = vmatprep.subr.bf16.mxu0 0
      %917 = vmatpush1.bf16.msra.mxu0 0
      %918 = vmatprep.subr.bf16.mxu0 0
      %919 = vmatpush1.bf16.msra.mxu0 0
      %920 = vmatprep.subr.bf16.mxu0 0
      %921 = vmatpush1.bf16.msra.mxu0 0
      %922 = vmatprep.subr.bf16.mxu0 0
      %923 = vmatpush1.bf16.msra.mxu0 0
      %924 = vmatprep.subr.bf16.mxu0 0
      %925 = vmatpush1.bf16.msra.mxu0 0
      %926 = vmatprep.subr.bf16.mxu0 0
      %927 = vmatpush1.bf16.msra.mxu0 0
      %928 = vmatprep.subr.bf16.mxu0 0
      %929 = vmatpush1.bf16.msra.mxu0 0
      %930 = vmatprep.subr.bf16.mxu0 0
      %931 = vmatpush1.bf16.msra.mxu0 0
      %932 = vmatprep.subr.bf16.mxu0 0
      %933 = vmatpush1.bf16.msra.mxu0 0
      %934 = vmatprep.mubr.bf16.mxu0 0
      %935 = vmatmul.mubr.bf16.gmra.mrb[0].mxu0 %v894
      %v936 = vpop.f32.mrb[0].mxu0
      %v937 = vadd.f32 0.0, %v936
      %v938 = vpop.f32.mrb[0].mxu0
      %v939 = vadd.f32 0.0, %v938
      %v940 = vpop.f32.mrb[0].mxu0
      %v941 = vpop.f32.mrb[0].mxu0
      %942 = vdwg.mxu0
      %v943 = vadd.f32 %v880, %v937
      %v944 = vadd.f32 %v881, %v939
      %s945 = scalar_lea.vmem %s4, 32
      %v946 = vld [vmem:[%s945] sm:$0xf]
      %947 = vrot.lane.b32.xlu0 %v435, 29
      %v948 = vpop.permute.xlu0 %947
      %949 = vrot.lane.b32.xlu0 %v441, 29
      %v950 = vpop.permute.xlu0 %949
      %951 = vrot.lane.b32.xlu0 %v442, 29
      %v952 = vpop.permute.xlu0 %951
      %vm953 = vcmask 236544
      %v954 = vsel %vm953, %v948, %v950
      %v955 = vsel %vm953, %v950, %v952
      %v957 = vsel %vm456, %v946, 0
      %v960 = vsel %vm460, %v954, 0
      %v963 = vsel %vm460, %v955, 0
      %965 = vmatprep.subr.bf16.mxu0 %v963
      %966 = vmatpush1.bf16.msra.mxu0 %v960
      %967 = vmatprep.subr.bf16.mxu0 0
      %968 = vmatpush1.bf16.msra.mxu0 0
      %969 = vmatprep.subr.bf16.mxu0 0
      %970 = vmatpush1.bf16.msra.mxu0 0
      %971 = vmatprep.subr.bf16.mxu0 0
      %972 = vmatpush1.bf16.msra.mxu0 0
      %973 = vmatprep.subr.bf16.mxu0 0
      %974 = vmatpush1.bf16.msra.mxu0 0
      %975 = vmatprep.subr.bf16.mxu0 0
      %976 = vmatpush1.bf16.msra.mxu0 0
      %977 = vmatprep.subr.bf16.mxu0 0
      %978 = vmatpush1.bf16.msra.mxu0 0
      %979 = vmatprep.subr.bf16.mxu0 0
      %980 = vmatpush1.bf16.msra.mxu0 0
      %981 = vmatprep.subr.bf16.mxu0 0
      %982 = vmatpush1.bf16.msra.mxu0 0
      %983 = vmatprep.subr.bf16.mxu0 0
      %984 = vmatpush1.bf16.msra.mxu0 0
      %985 = vmatprep.subr.bf16.mxu0 0
      %986 = vmatpush1.bf16.msra.mxu0 0
      %987 = vmatprep.subr.bf16.mxu0 0
      %988 = vmatpush1.bf16.msra.mxu0 0
      %989 = vmatprep.subr.bf16.mxu0 0
      %990 = vmatpush1.bf16.msra.mxu0 0
      %991 = vmatprep.subr.bf16.mxu0 0
      %992 = vmatpush1.bf16.msra.mxu0 0
      %993 = vmatprep.subr.bf16.mxu0 0
      %994 = vmatpush1.bf16.msra.mxu0 0
      %995 = vmatprep.subr.bf16.mxu0 0
      %996 = vmatpush1.bf16.msra.mxu0 0
      %997 = vmatprep.mubr.bf16.mxu0 0
      %998 = vmatmul.mubr.bf16.gmra.mrb[0].mxu0 %v957
      %v999 = vpop.f32.mrb[0].mxu0
      %v1000 = vadd.f32 0.0, %v999
      %v1001 = vpop.f32.mrb[0].mxu0
      %v1002 = vadd.f32 0.0, %v1001
      %v1003 = vpop.f32.mrb[0].mxu0
      %v1004 = vpop.f32.mrb[0].mxu0
      %1005 = vdwg.mxu0
      %v1006 = vadd.f32 %v943, %v1000
      %v1007 = vadd.f32 %v944, %v1002
      %s1008 = scalar_lea.vmem %s4, 36
      %v1009 = vld [vmem:[%s1008] sm:$0xf]
      %1010 = vrot.lane.b32.xlu0 %v435, 7
      %v1011 = vpop.permute.xlu0 %1010
      %1012 = vrot.lane.b32.xlu0 %v441, 7
      %v1013 = vpop.permute.xlu0 %1012
      %1014 = vrot.lane.b32.xlu0 %v442, 7
      %v1015 = vpop.permute.xlu0 %1014
      %vm1016 = vcmask 56320
      %v1017 = vsel %vm1016, %v1011, %v1013
      %v1018 = vsel %vm1016, %v1013, %v1015
      %v1020 = vsel %vm456, %v1009, 0
      %v1023 = vsel %vm460, %v1017, 0
      %v1026 = vsel %vm460, %v1018, 0
      %1028 = vmatprep.subr.bf16.mxu0 %v1026
      %1029 = vmatpush1.bf16.msra.mxu0 %v1023
      %1030 = vmatprep.subr.bf16.mxu0 0
      %1031 = vmatpush1.bf16.msra.mxu0 0
      %1032 = vmatprep.subr.bf16.mxu0 0
      %1033 = vmatpush1.bf16.msra.mxu0 0
      %1034 = vmatprep.subr.bf16.mxu0 0
      %1035 = vmatpush1.bf16.msra.mxu0 0
      %1036 = vmatprep.subr.bf16.mxu0 0
      %1037 = vmatpush1.bf16.msra.mxu0 0
      %1038 = vmatprep.subr.bf16.mxu0 0
      %1039 = vmatpush1.bf16.msra.mxu0 0
      %1040 = vmatprep.subr.bf16.mxu0 0
      %1041 = vmatpush1.bf16.msra.mxu0 0
      %1042 = vmatprep.subr.bf16.mxu0 0
      %1043 = vmatpush1.bf16.msra.mxu0 0
      %1044 = vmatprep.subr.bf16.mxu0 0
      %1045 = vmatpush1.bf16.msra.mxu0 0
      %1046 = vmatprep.subr.bf16.mxu0 0
      %1047 = vmatpush1.bf16.msra.mxu0 0
      %1048 = vmatprep.subr.bf16.mxu0 0
      %1049 = vmatpush1.bf16.msra.mxu0 0
      %1050 = vmatprep.subr.bf16.mxu0 0
      %1051 = vmatpush1.bf16.msra.mxu0 0
      %1052 = vmatprep.subr.bf16.mxu0 0
      %1053 = vmatpush1.bf16.msra.mxu0 0
      %1054 = vmatprep.subr.bf16.mxu0 0
      %1055 = vmatpush1.bf16.msra.mxu0 0
      %1056 = vmatprep.subr.bf16.mxu0 0
      %1057 = vmatpush1.bf16.msra.mxu0 0
      %1058 = vmatprep.subr.bf16.mxu0 0
      %1059 = vmatpush1.bf16.msra.mxu0 0
      %1060 = vmatprep.mubr.bf16.mxu0 0
      %1061 = vmatmul.mubr.bf16.gmra.mrb[0].mxu0 %v1020
      %v1062 = vpop.f32.mrb[0].mxu0
      %v1063 = vadd.f32 0.0, %v1062
      %v1064 = vpop.f32.mrb[0].mxu0
      %v1065 = vadd.f32 0.0, %v1064
      %v1066 = vpop.f32.mrb[0].mxu0
      %v1067 = vpop.f32.mrb[0].mxu0
      %1068 = vdwg.mxu0
      %v1069 = vadd.f32 %v1006, %v1063
      %v1070 = vadd.f32 %v1007, %v1065
      %s1071 = scalar_lea.vmem %s4, 40
      %v1072 = vld [vmem:[%s1071] sm:$0xf]
      %1073 = vrot.lane.b32.xlu0 %v435, 6
      %v1074 = vpop.permute.xlu0 %1073
      %1075 = vrot.lane.b32.xlu0 %v441, 6
      %v1076 = vpop.permute.xlu0 %1075
      %1077 = vrot.lane.b32.xlu0 %v442, 6
      %v1078 = vpop.permute.xlu0 %1077
      %vm1079 = vcmask 48128
      %v1080 = vsel %vm1079, %v1074, %v1076
      %v1081 = vsel %vm1079, %v1076, %v1078
      %v1083 = vsel %vm456, %v1072, 0
      %v1086 = vsel %vm460, %v1080, 0
      %v1089 = vsel %vm460, %v1081, 0
      %1091 = vmatprep.subr.bf16.mxu0 %v1089
      %1092 = vmatpush1.bf16.msra.mxu0 %v1086
      %1093 = vmatprep.subr.bf16.mxu0 0
      %1094 = vmatpush1.bf16.msra.mxu0 0
      %1095 = vmatprep.subr.bf16.mxu0 0
      %1096 = vmatpush1.bf16.msra.mxu0 0
      %1097 = vmatprep.subr.bf16.mxu0 0
      %1098 = vmatpush1.bf16.msra.mxu0 0
      %1099 = vmatprep.subr.bf16.mxu0 0
      %1100 = vmatpush1.bf16.msra.mxu0 0
      %1101 = vmatprep.subr.bf16.mxu0 0
      %1102 = vmatpush1.bf16.msra.mxu0 0
      %1103 = vmatprep.subr.bf16.mxu0 0
      %1104 = vmatpush1.bf16.msra.mxu0 0
      %1105 = vmatprep.subr.bf16.mxu0 0
      %1106 = vmatpush1.bf16.msra.mxu0 0
      %1107 = vmatprep.subr.bf16.mxu0 0
      %1108 = vmatpush1.bf16.msra.mxu0 0
      %1109 = vmatprep.subr.bf16.mxu0 0
      %1110 = vmatpush1.bf16.msra.mxu0 0
      %1111 = vmatprep.subr.bf16.mxu0 0
      %1112 = vmatpush1.bf16.msra.mxu0 0
      %1113 = vmatprep.subr.bf16.mxu0 0
      %1114 = vmatpush1.bf16.msra.mxu0 0
      %1115 = vmatprep.subr.bf16.mxu0 0
      %1116 = vmatpush1.bf16.msra.mxu0 0
      %1117 = vmatprep.subr.bf16.mxu0 0
      %1118 = vmatpush1.bf16.msra.mxu0 0
      %1119 = vmatprep.subr.bf16.mxu0 0
      %1120 = vmatpush1.bf16.msra.mxu0 0
      %1121 = vmatprep.subr.bf16.mxu0 0
      %1122 = vmatpush1.bf16.msra.mxu0 0
      %1123 = vmatprep.mubr.bf16.mxu0 0
      %1124 = vmatmul.mubr.bf16.gmra.mrb[0].mxu0 %v1083
      %v1125 = vpop.f32.mrb[0].mxu0
      %v1126 = vadd.f32 0.0, %v1125
      %v1127 = vpop.f32.mrb[0].mxu0
      %v1128 = vadd.f32 0.0, %v1127
      %v1129 = vpop.f32.mrb[0].mxu0
      %v1130 = vpop.f32.mrb[0].mxu0
      %1131 = vdwg.mxu0
      %v1132 = vadd.f32 %v1069, %v1126
      %v1133 = vadd.f32 %v1070, %v1128
      %s1134 = scalar_lea.vmem %s4, 44
      %v1135 = vld [vmem:[%s1134] sm:$0xf]
      %1136 = vrot.lane.b32.xlu0 %v435, 5
      %v1137 = vpop.permute.xlu0 %1136
      %1138 = vrot.lane.b32.xlu0 %v441, 5
      %v1139 = vpop.permute.xlu0 %1138
      %1140 = vrot.lane.b32.xlu0 %v442, 5
      %v1141 = vpop.permute.xlu0 %1140
      %vm1142 = vcmask 39936
      %v1143 = vsel %vm1142, %v1137, %v1139
      %v1144 = vsel %vm1142, %v1139, %v1141
      %v1146 = vsel %vm456, %v1135, 0
      %v1149 = vsel %vm460, %v1143, 0
      %v1152 = vsel %vm460, %v1144, 0
      %1154 = vmatprep.subr.bf16.mxu0 %v1152
      %1155 = vmatpush1.bf16.msra.mxu0 %v1149
      %1156 = vmatprep.subr.bf16.mxu0 0
      %1157 = vmatpush1.bf16.msra.mxu0 0
      %1158 = vmatprep.subr.bf16.mxu0 0
      %1159 = vmatpush1.bf16.msra.mxu0 0
      %1160 = vmatprep.subr.bf16.mxu0 0
      %1161 = vmatpush1.bf16.msra.mxu0 0
      %1162 = vmatprep.subr.bf16.mxu0 0
      %1163 = vmatpush1.bf16.msra.mxu0 0
      %1164 = vmatprep.subr.bf16.mxu0 0
      %1165 = vmatpush1.bf16.msra.mxu0 0
      %1166 = vmatprep.subr.bf16.mxu0 0
      %1167 = vmatpush1.bf16.msra.mxu0 0
      %1168 = vmatprep.subr.bf16.mxu0 0
      %1169 = vmatpush1.bf16.msra.mxu0 0
      %1170 = vmatprep.subr.bf16.mxu0 0
      %1171 = vmatpush1.bf16.msra.mxu0 0
      %1172 = vmatprep.subr.bf16.mxu0 0
      %1173 = vmatpush1.bf16.msra.mxu0 0
      %1174 = vmatprep.subr.bf16.mxu0 0
      %1175 = vmatpush1.bf16.msra.mxu0 0
      %1176 = vmatprep.subr.bf16.mxu0 0
      %1177 = vmatpush1.bf16.msra.mxu0 0
      %1178 = vmatprep.subr.bf16.mxu0 0
      %1179 = vmatpush1.bf16.msra.mxu0 0
      %1180 = vmatprep.subr.bf16.mxu0 0
      %1181 = vmatpush1.bf16.msra.mxu0 0
      %1182 = vmatprep.subr.bf16.mxu0 0
      %1183 = vmatpush1.bf16.msra.mxu0 0
      %1184 = vmatprep.subr.bf16.mxu0 0
      %1185 = vmatpush1.bf16.msra.mxu0 0
      %1186 = vmatprep.mubr.bf16.mxu0 0
      %1187 = vmatmul.mubr.bf16.gmra.mrb[0].mxu0 %v1146
      %v1188 = vpop.f32.mrb[0].mxu0
      %v1189 = vadd.f32 0.0, %v1188
      %v1190 = vpop.f32.mrb[0].mxu0
      %v1191 = vadd.f32 0.0, %v1190
      %v1192 = vpop.f32.mrb[0].mxu0
      %v1193 = vpop.f32.mrb[0].mxu0
      %1194 = vdwg.mxu0
      %v1195 = vadd.f32 %v1132, %v1189
      %v1196 = vadd.f32 %v1133, %v1191
      %s1197 = scalar_lea.vmem %s4, 48
      %v1198 = vld [vmem:[%s1197] sm:$0xf]
      %1199 = vrot.lane.b32.xlu0 %v435, 1
      %v1200 = vpop.permute.xlu0 %1199
      %1201 = vrot.lane.b32.xlu0 %v441, 1
      %v1202 = vpop.permute.xlu0 %1201
      %1203 = vrot.lane.b32.xlu0 %v442, 1
      %v1204 = vpop.permute.xlu0 %1203
      %vm1205 = vcmask 7168
      %v1206 = vsel %vm1205, %v1200, %v1202
      %v1207 = vsel %vm1205, %v1202, %v1204
      %v1209 = vsel %vm456, %v1198, 0
      %v1212 = vsel %vm460, %v1206, 0
      %v1215 = vsel %vm460, %v1207, 0
      %1217 = vmatprep.subr.bf16.mxu0 %v1215
      %1218 = vmatpush1.bf16.msra.mxu0 %v1212
      %1219 = vmatprep.subr.bf16.mxu0 0
      %1220 = vmatpush1.bf16.msra.mxu0 0
      %1221 = vmatprep.subr.bf16.mxu0 0
      %1222 = vmatpush1.bf16.msra.mxu0 0
      %1223 = vmatprep.subr.bf16.mxu0 0
      %1224 = vmatpush1.bf16.msra.mxu0 0
      %1225 = vmatprep.subr.bf16.mxu0 0
      %1226 = vmatpush1.bf16.msra.mxu0 0
      %1227 = vmatprep.subr.bf16.mxu0 0
      %1228 = vmatpush1.bf16.msra.mxu0 0
      %1229 = vmatprep.subr.bf16.mxu0 0
      %1230 = vmatpush1.bf16.msra.mxu0 0
      %1231 = vmatprep.subr.bf16.mxu0 0
      %1232 = vmatpush1.bf16.msra.mxu0 0
      %1233 = vmatprep.subr.bf16.mxu0 0
      %1234 = vmatpush1.bf16.msra.mxu0 0
      %1235 = vmatprep.subr.bf16.mxu0 0
      %1236 = vmatpush1.bf16.msra.mxu0 0
      %1237 = vmatprep.subr.bf16.mxu0 0
      %1238 = vmatpush1.bf16.msra.mxu0 0
      %1239 = vmatprep.subr.bf16.mxu0 0
      %1240 = vmatpush1.bf16.msra.mxu0 0
      %1241 = vmatprep.subr.bf16.mxu0 0
      %1242 = vmatpush1.bf16.msra.mxu0 0
      %1243 = vmatprep.subr.bf16.mxu0 0
      %1244 = vmatpush1.bf16.msra.mxu0 0
      %1245 = vmatprep.subr.bf16.mxu0 0
      %1246 = vmatpush1.bf16.msra.mxu0 0
      %1247 = vmatprep.subr.bf16.mxu0 0
      %1248 = vmatpush1.bf16.msra.mxu0 0
      %1249 = vmatprep.mubr.bf16.mxu0 0
      %1250 = vmatmul.mubr.bf16.gmra.mrb[0].mxu0 %v1209
      %v1251 = vpop.f32.mrb[0].mxu0
      %v1252 = vadd.f32 0.0, %v1251
      %v1253 = vpop.f32.mrb[0].mxu0
      %v1254 = vadd.f32 0.0, %v1253
      %v1255 = vpop.f32.mrb[0].mxu0
      %v1256 = vpop.f32.mrb[0].mxu0
      %1257 = vdwg.mxu0
      %v1258 = vadd.f32 %v1195, %v1252
      %v1259 = vadd.f32 %v1196, %v1254
      %s1260 = scalar_lea.vmem %s4, 52
      %v1261 = vld [vmem:[%s1260] sm:$0xf]
      %v1263 = vsel %vm456, %v1261, 0
      %v1266 = vsel %vm460, %v441, 0
      %v1269 = vsel %vm460, %v442, 0
      %1271 = vmatprep.subr.bf16.mxu0 %v1269
      %1272 = vmatpush1.bf16.msra.mxu0 %v1266
      %1273 = vmatprep.subr.bf16.mxu0 0
      %1274 = vmatpush1.bf16.msra.mxu0 0
      %1275 = vmatprep.subr.bf16.mxu0 0
      %1276 = vmatpush1.bf16.msra.mxu0 0
      %1277 = vmatprep.subr.bf16.mxu0 0
      %1278 = vmatpush1.bf16.msra.mxu0 0
      %1279 = vmatprep.subr.bf16.mxu0 0
      %1280 = vmatpush1.bf16.msra.mxu0 0
      %1281 = vmatprep.subr.bf16.mxu0 0
      %1282 = vmatpush1.bf16.msra.mxu0 0
      %1283 = vmatprep.subr.bf16.mxu0 0
      %1284 = vmatpush1.bf16.msra.mxu0 0
      %1285 = vmatprep.subr.bf16.mxu0 0
      %1286 = vmatpush1.bf16.msra.mxu0 0
      %1287 = vmatprep.subr.bf16.mxu0 0
      %1288 = vmatpush1.bf16.msra.mxu0 0
      %1289 = vmatprep.subr.bf16.mxu0 0
      %1290 = vmatpush1.bf16.msra.mxu0 0
      %1291 = vmatprep.subr.bf16.mxu0 0
      %1292 = vmatpush1.bf16.msra.mxu0 0
      %1293 = vmatprep.subr.bf16.mxu0 0
      %1294 = vmatpush1.bf16.msra.mxu0 0
      %1295 = vmatprep.subr.bf16.mxu0 0
      %1296 = vmatpush1.bf16.msra.mxu0 0
      %1297 = vmatprep.subr.bf16.mxu0 0
      %1298 = vmatpush1.bf16.msra.mxu0 0
      %1299 = vmatprep.subr.bf16.mxu0 0
      %1300 = vmatpush1.bf16.msra.mxu0 0
      %1301 = vmatprep.subr.bf16.mxu0 0
      %1302 = vmatpush1.bf16.msra.mxu0 0
      %1303 = vmatprep.mubr.bf16.mxu0 0
      %1304 = vmatmul.mubr.bf16.gmra.mrb[0].mxu0 %v1263
      %v1305 = vpop.f32.mrb[0].mxu0
      %v1306 = vadd.f32 0.0, %v1305
      %v1307 = vpop.f32.mrb[0].mxu0
      %v1308 = vadd.f32 0.0, %v1307
      %v1309 = vpop.f32.mrb[0].mxu0
      %v1310 = vpop.f32.mrb[0].mxu0
      %1311 = vdwg.mxu0
      %v1312 = vadd.f32 %v1258, %v1306
      %v1313 = vadd.f32 %v1259, %v1308
      %s1314 = scalar_lea.vmem %s4, 56
      %v1315 = vld [vmem:[%s1314] sm:$0xf]
      %1317 = vrot.lane.b32.xlu0 %v441, 127
      %v1318 = vpop.permute.xlu0 %1317
      %1319 = vrot.lane.b32.xlu0 %v442, 127
      %v1320 = vpop.permute.xlu0 %1319
      %1321 = vrot.lane.b32.xlu0 %v437, 127
      %v1322 = vpop.permute.xlu0 %1321
      %vm1323 = vcmask 1039360
      %v1324 = vsel %vm1323, %v1318, %v1320
      %v1325 = vsel %vm1323, %v1320, %v1322
      %v1327 = vsel %vm456, %v1315, 0
      %v1330 = vsel %vm460, %v1324, 0
      %v1333 = vsel %vm460, %v1325, 0
      %1335 = vmatprep.subr.bf16.mxu0 %v1333
      %1336 = vmatpush1.bf16.msra.mxu0 %v1330
      %1337 = vmatprep.subr.bf16.mxu0 0
      %1338 = vmatpush1.bf16.msra.mxu0 0
      %1339 = vmatprep.subr.bf16.mxu0 0
      %1340 = vmatpush1.bf16.msra.mxu0 0
      %1341 = vmatprep.subr.bf16.mxu0 0
      %1342 = vmatpush1.bf16.msra.mxu0 0
      %1343 = vmatprep.subr.bf16.mxu0 0
      %1344 = vmatpush1.bf16.msra.mxu0 0
      %1345 = vmatprep.subr.bf16.mxu0 0
      %1346 = vmatpush1.bf16.msra.mxu0 0
      %1347 = vmatprep.subr.bf16.mxu0 0
      %1348 = vmatpush1.bf16.msra.mxu0 0
      %1349 = vmatprep.subr.bf16.mxu0 0
      %1350 = vmatpush1.bf16.msra.mxu0 0
      %1351 = vmatprep.subr.bf16.mxu0 0
      %1352 = vmatpush1.bf16.msra.mxu0 0
      %1353 = vmatprep.subr.bf16.mxu0 0
      %1354 = vmatpush1.bf16.msra.mxu0 0
      %1355 = vmatprep.subr.bf16.mxu0 0
      %1356 = vmatpush1.bf16.msra.mxu0 0
      %1357 = vmatprep.subr.bf16.mxu0 0
      %1358 = vmatpush1.bf16.msra.mxu0 0
      %1359 = vmatprep.subr.bf16.mxu0 0
      %1360 = vmatpush1.bf16.msra.mxu0 0
      %1361 = vmatprep.subr.bf16.mxu0 0
      %1362 = vmatpush1.bf16.msra.mxu0 0
      %1363 = vmatprep.subr.bf16.mxu0 0
      %1364 = vmatpush1.bf16.msra.mxu0 0
      %1365 = vmatprep.subr.bf16.mxu0 0
      %1366 = vmatpush1.bf16.msra.mxu0 0
      %1367 = vmatprep.mubr.bf16.mxu0 0
      %1368 = vmatmul.mubr.bf16.gmra.mrb[0].mxu0 %v1327
      %v1369 = vpop.f32.mrb[0].mxu0
      %v1370 = vadd.f32 0.0, %v1369
      %v1371 = vpop.f32.mrb[0].mxu0
      %v1372 = vadd.f32 0.0, %v1371
      %v1373 = vpop.f32.mrb[0].mxu0
      %v1374 = vpop.f32.mrb[0].mxu0
      %1375 = vdwg.mxu0
      %v1376 = vadd.f32 %v1312, %v1370
      %v1377 = vadd.f32 %v1313, %v1372
      %s1378 = scalar_lea.vmem %s4, 60
      %v1379 = vld [vmem:[%s1378] sm:$0xf]
      %1380 = vrot.lane.b32.xlu0 %v441, 123
      %v1381 = vpop.permute.xlu0 %1380
      %1382 = vrot.lane.b32.xlu0 %v442, 123
      %v1383 = vpop.permute.xlu0 %1382
      %1384 = vrot.lane.b32.xlu0 %v437, 123
      %v1385 = vpop.permute.xlu0 %1384
      %vm1386 = vcmask 1006592
      %v1387 = vsel %vm1386, %v1381, %v1383
      %v1388 = vsel %vm1386, %v1383, %v1385
      %v1390 = vsel %vm456, %v1379, 0
      %v1393 = vsel %vm460, %v1387, 0
      %v1396 = vsel %vm460, %v1388, 0
      %1398 = vmatprep.subr.bf16.mxu0 %v1396
      %1399 = vmatpush1.bf16.msra.mxu0 %v1393
      %1400 = vmatprep.subr.bf16.mxu0 0
      %1401 = vmatpush1.bf16.msra.mxu0 0
      %1402 = vmatprep.subr.bf16.mxu0 0
      %1403 = vmatpush1.bf16.msra.mxu0 0
      %1404 = vmatprep.subr.bf16.mxu0 0
      %1405 = vmatpush1.bf16.msra.mxu0 0
      %1406 = vmatprep.subr.bf16.mxu0 0
      %1407 = vmatpush1.bf16.msra.mxu0 0
      %1408 = vmatprep.subr.bf16.mxu0 0
      %1409 = vmatpush1.bf16.msra.mxu0 0
      %1410 = vmatprep.subr.bf16.mxu0 0
      %1411 = vmatpush1.bf16.msra.mxu0 0
      %1412 = vmatprep.subr.bf16.mxu0 0
      %1413 = vmatpush1.bf16.msra.mxu0 0
      %1414 = vmatprep.subr.bf16.mxu0 0
      %1415 = vmatpush1.bf16.msra.mxu0 0
      %1416 = vmatprep.subr.bf16.mxu0 0
      %1417 = vmatpush1.bf16.msra.mxu0 0
      %1418 = vmatprep.subr.bf16.mxu0 0
      %1419 = vmatpush1.bf16.msra.mxu0 0
      %1420 = vmatprep.subr.bf16.mxu0 0
      %1421 = vmatpush1.bf16.msra.mxu0 0
      %1422 = vmatprep.subr.bf16.mxu0 0
      %1423 = vmatpush1.bf16.msra.mxu0 0
      %1424 = vmatprep.subr.bf16.mxu0 0
      %1425 = vmatpush1.bf16.msra.mxu0 0
      %1426 = vmatprep.subr.bf16.mxu0 0
      %1427 = vmatpush1.bf16.msra.mxu0 0
      %1428 = vmatprep.subr.bf16.mxu0 0
      %1429 = vmatpush1.bf16.msra.mxu0 0
      %1430 = vmatprep.mubr.bf16.mxu0 0
      %1431 = vmatmul.mubr.bf16.gmra.mrb[0].mxu0 %v1390
      %v1432 = vpop.f32.mrb[0].mxu0
      %v1433 = vadd.f32 0.0, %v1432
      %v1434 = vpop.f32.mrb[0].mxu0
      %v1435 = vadd.f32 0.0, %v1434
      %v1436 = vpop.f32.mrb[0].mxu0
      %v1437 = vpop.f32.mrb[0].mxu0
      %1438 = vdwg.mxu0
      %v1439 = vadd.f32 %v1376, %v1433
      %v1440 = vadd.f32 %v1377, %v1435
      %s1441 = scalar_lea.vmem %s4, 64
      %v1442 = vld [vmem:[%s1441] sm:$0xf]
      %1443 = vrot.lane.b32.xlu0 %v441, 122
      %v1444 = vpop.permute.xlu0 %1443
      %1445 = vrot.lane.b32.xlu0 %v442, 122
      %v1446 = vpop.permute.xlu0 %1445
      %1447 = vrot.lane.b32.xlu0 %v437, 122
      %v1448 = vpop.permute.xlu0 %1447
      %vm1449 = vcmask 998400
      %v1450 = vsel %vm1449, %v1444, %v1446
      %v1451 = vsel %vm1449, %v1446, %v1448
      %v1453 = vsel %vm456, %v1442, 0
      %v1456 = vsel %vm460, %v1450, 0
      %v1459 = vsel %vm460, %v1451, 0
      %1461 = vmatprep.subr.bf16.mxu0 %v1459
      %1462 = vmatpush1.bf16.msra.mxu0 %v1456
      %1463 = vmatprep.subr.bf16.mxu0 0
      %1464 = vmatpush1.bf16.msra.mxu0 0
      %1465 = vmatprep.subr.bf16.mxu0 0
      %1466 = vmatpush1.bf16.msra.mxu0 0
      %1467 = vmatprep.subr.bf16.mxu0 0
      %1468 = vmatpush1.bf16.msra.mxu0 0
      %1469 = vmatprep.subr.bf16.mxu0 0
      %1470 = vmatpush1.bf16.msra.mxu0 0
      %1471 = vmatprep.subr.bf16.mxu0 0
      %1472 = vmatpush1.bf16.msra.mxu0 0
      %1473 = vmatprep.subr.bf16.mxu0 0
      %1474 = vmatpush1.bf16.msra.mxu0 0
      %1475 = vmatprep.subr.bf16.mxu0 0
      %1476 = vmatpush1.bf16.msra.mxu0 0
      %1477 = vmatprep.subr.bf16.mxu0 0
      %1478 = vmatpush1.bf16.msra.mxu0 0
      %1479 = vmatprep.subr.bf16.mxu0 0
      %1480 = vmatpush1.bf16.msra.mxu0 0
      %1481 = vmatprep.subr.bf16.mxu0 0
      %1482 = vmatpush1.bf16.msra.mxu0 0
      %1483 = vmatprep.subr.bf16.mxu0 0
      %1484 = vmatpush1.bf16.msra.mxu0 0
      %1485 = vmatprep.subr.bf16.mxu0 0
      %1486 = vmatpush1.bf16.msra.mxu0 0
      %1487 = vmatprep.subr.bf16.mxu0 0
      %1488 = vmatpush1.bf16.msra.mxu0 0
      %1489 = vmatprep.subr.bf16.mxu0 0
      %1490 = vmatpush1.bf16.msra.mxu0 0
      %1491 = vmatprep.subr.bf16.mxu0 0
      %1492 = vmatpush1.bf16.msra.mxu0 0
      %1493 = vmatprep.mubr.bf16.mxu0 0
      %1494 = vmatmul.mubr.bf16.gmra.mrb[0].mxu0 %v1453
      %v1495 = vpop.f32.mrb[0].mxu0
      %v1496 = vadd.f32 0.0, %v1495
      %v1497 = vpop.f32.mrb[0].mxu0
      %v1498 = vadd.f32 0.0, %v1497
      %v1499 = vpop.f32.mrb[0].mxu0
      %v1500 = vpop.f32.mrb[0].mxu0
      %1501 = vdwg.mxu0
      %v1502 = vadd.f32 %v1439, %v1496
      %v1503 = vadd.f32 %v1440, %v1498
      %s1504 = scalar_lea.vmem %s4, 68
      %v1505 = vld [vmem:[%s1504] sm:$0xf]
      %1506 = vrot.lane.b32.xlu0 %v441, 121
      %v1507 = vpop.permute.xlu0 %1506
      %1508 = vrot.lane.b32.xlu0 %v442, 121
      %v1509 = vpop.permute.xlu0 %1508
      %1510 = vrot.lane.b32.xlu0 %v437, 121
      %v1511 = vpop.permute.xlu0 %1510
      %vm1512 = vcmask 990208
      %v1513 = vsel %vm1512, %v1507, %v1509
      %v1514 = vsel %vm1512, %v1509, %v1511
      %v1516 = vsel %vm456, %v1505, 0
      %v1519 = vsel %vm460, %v1513, 0
      %v1522 = vsel %vm460, %v1514, 0
      %1524 = vmatprep.subr.bf16.mxu0 %v1522
      %1525 = vmatpush1.bf16.msra.mxu0 %v1519
      %1526 = vmatprep.subr.bf16.mxu0 0
      %1527 = vmatpush1.bf16.msra.mxu0 0
      %1528 = vmatprep.subr.bf16.mxu0 0
      %1529 = vmatpush1.bf16.msra.mxu0 0
      %1530 = vmatprep.subr.bf16.mxu0 0
      %1531 = vmatpush1.bf16.msra.mxu0 0
      %1532 = vmatprep.subr.bf16.mxu0 0
      %1533 = vmatpush1.bf16.msra.mxu0 0
      %1534 = vmatprep.subr.bf16.mxu0 0
      %1535 = vmatpush1.bf16.msra.mxu0 0
      %1536 = vmatprep.subr.bf16.mxu0 0
      %1537 = vmatpush1.bf16.msra.mxu0 0
      %1538 = vmatprep.subr.bf16.mxu0 0
      %1539 = vmatpush1.bf16.msra.mxu0 0
      %1540 = vmatprep.subr.bf16.mxu0 0
      %1541 = vmatpush1.bf16.msra.mxu0 0
      %1542 = vmatprep.subr.bf16.mxu0 0
      %1543 = vmatpush1.bf16.msra.mxu0 0
      %1544 = vmatprep.subr.bf16.mxu0 0
      %1545 = vmatpush1.bf16.msra.mxu0 0
      %1546 = vmatprep.subr.bf16.mxu0 0
      %1547 = vmatpush1.bf16.msra.mxu0 0
      %1548 = vmatprep.subr.bf16.mxu0 0
      %1549 = vmatpush1.bf16.msra.mxu0 0
      %1550 = vmatprep.subr.bf16.mxu0 0
      %1551 = vmatpush1.bf16.msra.mxu0 0
      %1552 = vmatprep.subr.bf16.mxu0 0
      %1553 = vmatpush1.bf16.msra.mxu0 0
      %1554 = vmatprep.subr.bf16.mxu0 0
      %1555 = vmatpush1.bf16.msra.mxu0 0
      %1556 = vmatprep.mubr.bf16.mxu0 0
      %1557 = vmatmul.mubr.bf16.gmra.mrb[0].mxu0 %v1516
      %v1558 = vpop.f32.mrb[0].mxu0
      %v1559 = vadd.f32 0.0, %v1558
      %v1560 = vpop.f32.mrb[0].mxu0
      %v1561 = vadd.f32 0.0, %v1560
      %v1562 = vpop.f32.mrb[0].mxu0
      %v1563 = vpop.f32.mrb[0].mxu0
      %1564 = vdwg.mxu0
      %v1565 = vadd.f32 %v1502, %v1559
      %v1566 = vadd.f32 %v1503, %v1561
      %s1567 = scalar_lea.vmem %s4, 72
      %v1568 = vld [vmem:[%s1567] sm:$0xf]
      %1569 = vrot.lane.b32.xlu0 %v441, 99
      %v1570 = vpop.permute.xlu0 %1569
      %1571 = vrot.lane.b32.xlu0 %v442, 99
      %v1572 = vpop.permute.xlu0 %1571
      %1573 = vrot.lane.b32.xlu0 %v437, 99
      %v1574 = vpop.permute.xlu0 %1573
      %vm1575 = vcmask 809984
      %v1576 = vsel %vm1575, %v1570, %v1572
      %v1577 = vsel %vm1575, %v1572, %v1574
      %v1579 = vsel %vm456, %v1568, 0
      %v1582 = vsel %vm460, %v1576, 0
      %v1585 = vsel %vm460, %v1577, 0
      %1587 = vmatprep.subr.bf16.mxu0 %v1585
      %1588 = vmatpush1.bf16.msra.mxu0 %v1582
      %1589 = vmatprep.subr.bf16.mxu0 0
      %1590 = vmatpush1.bf16.msra.mxu0 0
      %1591 = vmatprep.subr.bf16.mxu0 0
      %1592 = vmatpush1.bf16.msra.mxu0 0
      %1593 = vmatprep.subr.bf16.mxu0 0
      %1594 = vmatpush1.bf16.msra.mxu0 0
      %1595 = vmatprep.subr.bf16.mxu0 0
      %1596 = vmatpush1.bf16.msra.mxu0 0
      %1597 = vmatprep.subr.bf16.mxu0 0
      %1598 = vmatpush1.bf16.msra.mxu0 0
      %1599 = vmatprep.subr.bf16.mxu0 0
      %1600 = vmatpush1.bf16.msra.mxu0 0
      %1601 = vmatprep.subr.bf16.mxu0 0
      %1602 = vmatpush1.bf16.msra.mxu0 0
      %1603 = vmatprep.subr.bf16.mxu0 0
      %1604 = vmatpush1.bf16.msra.mxu0 0
      %1605 = vmatprep.subr.bf16.mxu0 0
      %1606 = vmatpush1.bf16.msra.mxu0 0
      %1607 = vmatprep.subr.bf16.mxu0 0
      %1608 = vmatpush1.bf16.msra.mxu0 0
      %1609 = vmatprep.subr.bf16.mxu0 0
      %1610 = vmatpush1.bf16.msra.mxu0 0
      %1611 = vmatprep.subr.bf16.mxu0 0
      %1612 = vmatpush1.bf16.msra.mxu0 0
      %1613 = vmatprep.subr.bf16.mxu0 0
      %1614 = vmatpush1.bf16.msra.mxu0 0
      %1615 = vmatprep.subr.bf16.mxu0 0
      %1616 = vmatpush1.bf16.msra.mxu0 0
      %1617 = vmatprep.subr.bf16.mxu0 0
      %1618 = vmatpush1.bf16.msra.mxu0 0
      %1619 = vmatprep.mubr.bf16.mxu0 0
      %1620 = vmatmul.mubr.bf16.gmra.mrb[0].mxu0 %v1579
      %v1621 = vpop.f32.mrb[0].mxu0
      %v1622 = vadd.f32 0.0, %v1621
      %v1623 = vpop.f32.mrb[0].mxu0
      %v1624 = vadd.f32 0.0, %v1623
      %v1625 = vpop.f32.mrb[0].mxu0
      %v1626 = vpop.f32.mrb[0].mxu0
      %1627 = vdwg.mxu0
      %v1628 = vadd.f32 %v1565, %v1622
      %v1629 = vadd.f32 %v1566, %v1624
      %s1630 = scalar_lea.vmem %s4, 76
      %v1631 = vld [vmem:[%s1630] sm:$0xf]
      %1632 = vrot.lane.b32.xlu0 %v441, 98
      %v1633 = vpop.permute.xlu0 %1632
      %1634 = vrot.lane.b32.xlu0 %v442, 98
      %v1635 = vpop.permute.xlu0 %1634
      %1636 = vrot.lane.b32.xlu0 %v437, 98
      %v1637 = vpop.permute.xlu0 %1636
      %vm1638 = vcmask 801792
      %v1639 = vsel %vm1638, %v1633, %v1635
      %v1640 = vsel %vm1638, %v1635, %v1637
      %v1642 = vsel %vm456, %v1631, 0
      %v1645 = vsel %vm460, %v1639, 0
      %v1648 = vsel %vm460, %v1640, 0
      %1650 = vmatprep.subr.bf16.mxu0 %v1648
      %1651 = vmatpush1.bf16.msra.mxu0 %v1645
      %1652 = vmatprep.subr.bf16.mxu0 0
      %1653 = vmatpush1.bf16.msra.mxu0 0
      %1654 = vmatprep.subr.bf16.mxu0 0
      %1655 = vmatpush1.bf16.msra.mxu0 0
      %1656 = vmatprep.subr.bf16.mxu0 0
      %1657 = vmatpush1.bf16.msra.mxu0 0
      %1658 = vmatprep.subr.bf16.mxu0 0
      %1659 = vmatpush1.bf16.msra.mxu0 0
      %1660 = vmatprep.subr.bf16.mxu0 0
      %1661 = vmatpush1.bf16.msra.mxu0 0
      %1662 = vmatprep.subr.bf16.mxu0 0
      %1663 = vmatpush1.bf16.msra.mxu0 0
      %1664 = vmatprep.subr.bf16.mxu0 0
      %1665 = vmatpush1.bf16.msra.mxu0 0
      %1666 = vmatprep.subr.bf16.mxu0 0
      %1667 = vmatpush1.bf16.msra.mxu0 0
      %1668 = vmatprep.subr.bf16.mxu0 0
      %1669 = vmatpush1.bf16.msra.mxu0 0
      %1670 = vmatprep.subr.bf16.mxu0 0
      %1671 = vmatpush1.bf16.msra.mxu0 0
      %1672 = vmatprep.subr.bf16.mxu0 0
      %1673 = vmatpush1.bf16.msra.mxu0 0
      %1674 = vmatprep.subr.bf16.mxu0 0
      %1675 = vmatpush1.bf16.msra.mxu0 0
      %1676 = vmatprep.subr.bf16.mxu0 0
      %1677 = vmatpush1.bf16.msra.mxu0 0
      %1678 = vmatprep.subr.bf16.mxu0 0
      %1679 = vmatpush1.bf16.msra.mxu0 0
      %1680 = vmatprep.subr.bf16.mxu0 0
      %1681 = vmatpush1.bf16.msra.mxu0 0
      %1682 = vmatprep.mubr.bf16.mxu0 0
      %1683 = vmatmul.mubr.bf16.gmra.mrb[0].mxu0 %v1642
      %v1684 = vpop.f32.mrb[0].mxu0
      %v1685 = vadd.f32 0.0, %v1684
      %v1686 = vpop.f32.mrb[0].mxu0
      %v1687 = vadd.f32 0.0, %v1686
      %v1688 = vpop.f32.mrb[0].mxu0
      %v1689 = vpop.f32.mrb[0].mxu0
      %1690 = vdwg.mxu0
      %v1691 = vadd.f32 %v1628, %v1685
      %v1692 = vadd.f32 %v1629, %v1687
      %s1693 = scalar_lea.vmem %s4, 80
      %v1694 = vld [vmem:[%s1693] sm:$0xf]
      %1695 = vrot.lane.b32.xlu0 %v441, 97
      %v1696 = vpop.permute.xlu0 %1695
      %1697 = vrot.lane.b32.xlu0 %v442, 97
      %v1698 = vpop.permute.xlu0 %1697
      %1699 = vrot.lane.b32.xlu0 %v437, 97
      %v1700 = vpop.permute.xlu0 %1699
      %vm1701 = vcmask 793600
      %v1702 = vsel %vm1701, %v1696, %v1698
      %v1703 = vsel %vm1701, %v1698, %v1700
      %v1705 = vsel %vm456, %v1694, 0
      %v1708 = vsel %vm460, %v1702, 0
      %v1711 = vsel %vm460, %v1703, 0
      %1713 = vmatprep.subr.bf16.mxu0 %v1711
      %1714 = vmatpush1.bf16.msra.mxu0 %v1708
      %1715 = vmatprep.subr.bf16.mxu0 0
      %1716 = vmatpush1.bf16.msra.mxu0 0
      %1717 = vmatprep.subr.bf16.mxu0 0
      %1718 = vmatpush1.bf16.msra.mxu0 0
      %1719 = vmatprep.subr.bf16.mxu0 0
      %1720 = vmatpush1.bf16.msra.mxu0 0
      %1721 = vmatprep.subr.bf16.mxu0 0
      %1722 = vmatpush1.bf16.msra.mxu0 0
      %1723 = vmatprep.subr.bf16.mxu0 0
      %1724 = vmatpush1.bf16.msra.mxu0 0
      %1725 = vmatprep.subr.bf16.mxu0 0
      %1726 = vmatpush1.bf16.msra.mxu0 0
      %1727 = vmatprep.subr.bf16.mxu0 0
      %1728 = vmatpush1.bf16.msra.mxu0 0
      %1729 = vmatprep.subr.bf16.mxu0 0
      %1730 = vmatpush1.bf16.msra.mxu0 0
      %1731 = vmatprep.subr.bf16.mxu0 0
      %1732 = vmatpush1.bf16.msra.mxu0 0
      %1733 = vmatprep.subr.bf16.mxu0 0
      %1734 = vmatpush1.bf16.msra.mxu0 0
      %1735 = vmatprep.subr.bf16.mxu0 0
      %1736 = vmatpush1.bf16.msra.mxu0 0
      %1737 = vmatprep.subr.bf16.mxu0 0
      %1738 = vmatpush1.bf16.msra.mxu0 0
      %1739 = vmatprep.subr.bf16.mxu0 0
      %1740 = vmatpush1.bf16.msra.mxu0 0
      %1741 = vmatprep.subr.bf16.mxu0 0
      %1742 = vmatpush1.bf16.msra.mxu0 0
      %1743 = vmatprep.subr.bf16.mxu0 0
      %1744 = vmatpush1.bf16.msra.mxu0 0
      %1745 = vmatprep.mubr.bf16.mxu0 0
      %1746 = vmatmul.mubr.bf16.gmra.mrb[0].mxu0 %v1705
      %v1747 = vpop.f32.mrb[0].mxu0
      %v1748 = vadd.f32 0.0, %v1747
      %v1749 = vpop.f32.mrb[0].mxu0
      %v1750 = vadd.f32 0.0, %v1749
      %v1751 = vpop.f32.mrb[0].mxu0
      %v1752 = vpop.f32.mrb[0].mxu0
      %1753 = vdwg.mxu0
      %v1754 = vadd.f32 %v1691, %v1748
      %v1755 = vadd.f32 %v1692, %v1750
      %s1756 = scalar_lea.vmem %s4, 84
      %v1757 = vld [vmem:[%s1756] sm:$0xf]
      %1758 = vrot.lane.b32.xlu0 %v441, 93
      %v1759 = vpop.permute.xlu0 %1758
      %1760 = vrot.lane.b32.xlu0 %v442, 93
      %v1761 = vpop.permute.xlu0 %1760
      %1762 = vrot.lane.b32.xlu0 %v437, 93
      %v1763 = vpop.permute.xlu0 %1762
      %vm1764 = vcmask 760832
      %v1765 = vsel %vm1764, %v1759, %v1761
      %v1766 = vsel %vm1764, %v1761, %v1763
      %v1768 = vsel %vm456, %v1757, 0
      %v1771 = vsel %vm460, %v1765, 0
      %v1774 = vsel %vm460, %v1766, 0
      %1776 = vmatprep.subr.bf16.mxu0 %v1774
      %1777 = vmatpush1.bf16.msra.mxu0 %v1771
      %1778 = vmatprep.subr.bf16.mxu0 0
      %1779 = vmatpush1.bf16.msra.mxu0 0
      %1780 = vmatprep.subr.bf16.mxu0 0
      %1781 = vmatpush1.bf16.msra.mxu0 0
      %1782 = vmatprep.subr.bf16.mxu0 0
      %1783 = vmatpush1.bf16.msra.mxu0 0
      %1784 = vmatprep.subr.bf16.mxu0 0
      %1785 = vmatpush1.bf16.msra.mxu0 0
      %1786 = vmatprep.subr.bf16.mxu0 0
      %1787 = vmatpush1.bf16.msra.mxu0 0
      %1788 = vmatprep.subr.bf16.mxu0 0
      %1789 = vmatpush1.bf16.msra.mxu0 0
      %1790 = vmatprep.subr.bf16.mxu0 0
      %1791 = vmatpush1.bf16.msra.mxu0 0
      %1792 = vmatprep.subr.bf16.mxu0 0
      %1793 = vmatpush1.bf16.msra.mxu0 0
      %1794 = vmatprep.subr.bf16.mxu0 0
      %1795 = vmatpush1.bf16.msra.mxu0 0
      %1796 = vmatprep.subr.bf16.mxu0 0
      %1797 = vmatpush1.bf16.msra.mxu0 0
      %1798 = vmatprep.subr.bf16.mxu0 0
      %1799 = vmatpush1.bf16.msra.mxu0 0
      %1800 = vmatprep.subr.bf16.mxu0 0
      %1801 = vmatpush1.bf16.msra.mxu0 0
      %1802 = vmatprep.subr.bf16.mxu0 0
      %1803 = vmatpush1.bf16.msra.mxu0 0
      %1804 = vmatprep.subr.bf16.mxu0 0
      %1805 = vmatpush1.bf16.msra.mxu0 0
      %1806 = vmatprep.subr.bf16.mxu0 0
      %1807 = vmatpush1.bf16.msra.mxu0 0
      %1808 = vmatprep.mubr.bf16.mxu0 0
      %1809 = vmatmul.mubr.bf16.gmra.mrb[0].mxu0 %v1768
      %v1810 = vpop.f32.mrb[0].mxu0
      %v1811 = vadd.f32 0.0, %v1810
      %v1812 = vpop.f32.mrb[0].mxu0
      %v1813 = vadd.f32 0.0, %v1812
      %v1814 = vpop.f32.mrb[0].mxu0
      %v1815 = vpop.f32.mrb[0].mxu0
      %1816 = vdwg.mxu0
      %v1817 = vadd.f32 %v1754, %v1811
      %v1818 = vadd.f32 %v1755, %v1813
      %s1819 = scalar_lea.vmem %s4, 88
      %v1820 = vld [vmem:[%s1819] sm:$0xf]
      %1821 = vrot.lane.b32.xlu0 %v441, 92
      %v1822 = vpop.permute.xlu0 %1821
      %1823 = vrot.lane.b32.xlu0 %v442, 92
      %v1824 = vpop.permute.xlu0 %1823
      %1825 = vrot.lane.b32.xlu0 %v437, 92
      %v1826 = vpop.permute.xlu0 %1825
      %vm1827 = vcmask 752640
      %v1828 = vsel %vm1827, %v1822, %v1824
      %v1829 = vsel %vm1827, %v1824, %v1826
      %v1831 = vsel %vm456, %v1820, 0
      %v1834 = vsel %vm460, %v1828, 0
      %v1837 = vsel %vm460, %v1829, 0
      %1839 = vmatprep.subr.bf16.mxu0 %v1837
      %1840 = vmatpush1.bf16.msra.mxu0 %v1834
      %1841 = vmatprep.subr.bf16.mxu0 0
      %1842 = vmatpush1.bf16.msra.mxu0 0
      %1843 = vmatprep.subr.bf16.mxu0 0
      %1844 = vmatpush1.bf16.msra.mxu0 0
      %1845 = vmatprep.subr.bf16.mxu0 0
      %1846 = vmatpush1.bf16.msra.mxu0 0
      %1847 = vmatprep.subr.bf16.mxu0 0
      %1848 = vmatpush1.bf16.msra.mxu0 0
      %1849 = vmatprep.subr.bf16.mxu0 0
      %1850 = vmatpush1.bf16.msra.mxu0 0
      %1851 = vmatprep.subr.bf16.mxu0 0
      %1852 = vmatpush1.bf16.msra.mxu0 0
      %1853 = vmatprep.subr.bf16.mxu0 0
      %1854 = vmatpush1.bf16.msra.mxu0 0
      %1855 = vmatprep.subr.bf16.mxu0 0
      %1856 = vmatpush1.bf16.msra.mxu0 0
      %1857 = vmatprep.subr.bf16.mxu0 0
      %1858 = vmatpush1.bf16.msra.mxu0 0
      %1859 = vmatprep.subr.bf16.mxu0 0
      %1860 = vmatpush1.bf16.msra.mxu0 0
      %1861 = vmatprep.subr.bf16.mxu0 0
      %1862 = vmatpush1.bf16.msra.mxu0 0
      %1863 = vmatprep.subr.bf16.mxu0 0
      %1864 = vmatpush1.bf16.msra.mxu0 0
      %1865 = vmatprep.subr.bf16.mxu0 0
      %1866 = vmatpush1.bf16.msra.mxu0 0
      %1867 = vmatprep.subr.bf16.mxu0 0
      %1868 = vmatpush1.bf16.msra.mxu0 0
      %1869 = vmatprep.subr.bf16.mxu0 0
      %1870 = vmatpush1.bf16.msra.mxu0 0
      %1871 = vmatprep.mubr.bf16.mxu0 0
      %1872 = vmatmul.mubr.bf16.gmra.mrb[0].mxu0 %v1831
      %v1873 = vpop.f32.mrb[0].mxu0
      %v1874 = vadd.f32 0.0, %v1873
      %v1875 = vpop.f32.mrb[0].mxu0
      %v1876 = vadd.f32 0.0, %v1875
      %v1877 = vpop.f32.mrb[0].mxu0
      %v1878 = vpop.f32.mrb[0].mxu0
      %1879 = vdwg.mxu0
      %v1880 = vadd.f32 %v1817, %v1874
      %v1881 = vadd.f32 %v1818, %v1876
      %s1882 = scalar_lea.vmem %s4, 92
      %v1883 = vld [vmem:[%s1882] sm:$0xf]
      %1884 = vrot.lane.b32.xlu0 %v441, 91
      %v1885 = vpop.permute.xlu0 %1884
      %1886 = vrot.lane.b32.xlu0 %v442, 91
      %v1887 = vpop.permute.xlu0 %1886
      %1888 = vrot.lane.b32.xlu0 %v437, 91
      %v1889 = vpop.permute.xlu0 %1888
      %vm1890 = vcmask 744448
      %v1891 = vsel %vm1890, %v1885, %v1887
      %v1892 = vsel %vm1890, %v1887, %v1889
      %v1894 = vsel %vm456, %v1883, 0
      %v1897 = vsel %vm460, %v1891, 0
      %v1900 = vsel %vm460, %v1892, 0
      %1902 = vmatprep.subr.bf16.mxu0 %v1900
      %1903 = vmatpush1.bf16.msra.mxu0 %v1897
      %1904 = vmatprep.subr.bf16.mxu0 0
      %1905 = vmatpush1.bf16.msra.mxu0 0
      %1906 = vmatprep.subr.bf16.mxu0 0
      %1907 = vmatpush1.bf16.msra.mxu0 0
      %1908 = vmatprep.subr.bf16.mxu0 0
      %1909 = vmatpush1.bf16.msra.mxu0 0
      %1910 = vmatprep.subr.bf16.mxu0 0
      %1911 = vmatpush1.bf16.msra.mxu0 0
      %1912 = vmatprep.subr.bf16.mxu0 0
      %1913 = vmatpush1.bf16.msra.mxu0 0
      %1914 = vmatprep.subr.bf16.mxu0 0
      %1915 = vmatpush1.bf16.msra.mxu0 0
      %1916 = vmatprep.subr.bf16.mxu0 0
      %1917 = vmatpush1.bf16.msra.mxu0 0
      %1918 = vmatprep.subr.bf16.mxu0 0
      %1919 = vmatpush1.bf16.msra.mxu0 0
      %1920 = vmatprep.subr.bf16.mxu0 0
      %1921 = vmatpush1.bf16.msra.mxu0 0
      %1922 = vmatprep.subr.bf16.mxu0 0
      %1923 = vmatpush1.bf16.msra.mxu0 0
      %1924 = vmatprep.subr.bf16.mxu0 0
      %1925 = vmatpush1.bf16.msra.mxu0 0
      %1926 = vmatprep.subr.bf16.mxu0 0
      %1927 = vmatpush1.bf16.msra.mxu0 0
      %1928 = vmatprep.subr.bf16.mxu0 0
      %1929 = vmatpush1.bf16.msra.mxu0 0
      %1930 = vmatprep.subr.bf16.mxu0 0
      %1931 = vmatpush1.bf16.msra.mxu0 0
      %1932 = vmatprep.subr.bf16.mxu0 0
      %1933 = vmatpush1.bf16.msra.mxu0 0
      %1934 = vmatprep.mubr.bf16.mxu0 0
      %1935 = vmatmul.mubr.bf16.gmra.mrb[0].mxu0 %v1894
      %v1936 = vpop.f32.mrb[0].mxu0
      %v1937 = vadd.f32 0.0, %v1936
      %v1938 = vpop.f32.mrb[0].mxu0
      %v1939 = vadd.f32 0.0, %v1938
      %v1940 = vpop.f32.mrb[0].mxu0
      %v1941 = vpop.f32.mrb[0].mxu0
      %1942 = vdwg.mxu0
      %v1943 = vadd.f32 %v1880, %v1937
      %v1944 = vadd.f32 %v1881, %v1939
      %s1945 = scalar_lea.vmem %s4, 96
      %v1946 = vld [vmem:[%s1945] sm:$0xf]
      %1947 = vrot.lane.b32.xlu0 %v441, 87
      %v1948 = vpop.permute.xlu0 %1947
      %1949 = vrot.lane.b32.xlu0 %v442, 87
      %v1950 = vpop.permute.xlu0 %1949
      %1951 = vrot.lane.b32.xlu0 %v437, 87
      %v1952 = vpop.permute.xlu0 %1951
      %vm1953 = vcmask 711680
      %v1954 = vsel %vm1953, %v1948, %v1950
      %v1955 = vsel %vm1953, %v1950, %v1952
      %v1957 = vsel %vm456, %v1946, 0
      %v1960 = vsel %vm460, %v1954, 0
      %v1963 = vsel %vm460, %v1955, 0
      %1965 = vmatprep.subr.bf16.mxu0 %v1963
      %1966 = vmatpush1.bf16.msra.mxu0 %v1960
      %1967 = vmatprep.subr.bf16.mxu0 0
      %1968 = vmatpush1.bf16.msra.mxu0 0
      %1969 = vmatprep.subr.bf16.mxu0 0
      %1970 = vmatpush1.bf16.msra.mxu0 0
      %1971 = vmatprep.subr.bf16.mxu0 0
      %1972 = vmatpush1.bf16.msra.mxu0 0
      %1973 = vmatprep.subr.bf16.mxu0 0
      %1974 = vmatpush1.bf16.msra.mxu0 0
      %1975 = vmatprep.subr.bf16.mxu0 0
      %1976 = vmatpush1.bf16.msra.mxu0 0
      %1977 = vmatprep.subr.bf16.mxu0 0
      %1978 = vmatpush1.bf16.msra.mxu0 0
      %1979 = vmatprep.subr.bf16.mxu0 0
      %1980 = vmatpush1.bf16.msra.mxu0 0
      %1981 = vmatprep.subr.bf16.mxu0 0
      %1982 = vmatpush1.bf16.msra.mxu0 0
      %1983 = vmatprep.subr.bf16.mxu0 0
      %1984 = vmatpush1.bf16.msra.mxu0 0
      %1985 = vmatprep.subr.bf16.mxu0 0
      %1986 = vmatpush1.bf16.msra.mxu0 0
      %1987 = vmatprep.subr.bf16.mxu0 0
      %1988 = vmatpush1.bf16.msra.mxu0 0
      %1989 = vmatprep.subr.bf16.mxu0 0
      %1990 = vmatpush1.bf16.msra.mxu0 0
      %1991 = vmatprep.subr.bf16.mxu0 0
      %1992 = vmatpush1.bf16.msra.mxu0 0
      %1993 = vmatprep.subr.bf16.mxu0 0
      %1994 = vmatpush1.bf16.msra.mxu0 0
      %1995 = vmatprep.subr.bf16.mxu0 0
      %1996 = vmatpush1.bf16.msra.mxu0 0
      %1997 = vmatprep.mubr.bf16.mxu0 0
      %1998 = vmatmul.mubr.bf16.gmra.mrb[0].mxu0 %v1957
      %v1999 = vpop.f32.mrb[0].mxu0
      %v2000 = vadd.f32 0.0, %v1999
      %v2001 = vpop.f32.mrb[0].mxu0
      %v2002 = vadd.f32 0.0, %v2001
      %v2003 = vpop.f32.mrb[0].mxu0
      %v2004 = vpop.f32.mrb[0].mxu0
      %2005 = vdwg.mxu0
      %v2006 = vadd.f32 %v1943, %v2000
      %v2007 = vadd.f32 %v1944, %v2002
      %s2008 = scalar_lea.vmem %s4, 100
      %v2009 = vld [vmem:[%s2008] sm:$0xf]
      %2010 = vrot.lane.b32.xlu0 %v441, 86
      %v2011 = vpop.permute.xlu0 %2010
      %2012 = vrot.lane.b32.xlu0 %v442, 86
      %v2013 = vpop.permute.xlu0 %2012
      %2014 = vrot.lane.b32.xlu0 %v437, 86
      %v2015 = vpop.permute.xlu0 %2014
      %vm2016 = vcmask 703488
      %v2017 = vsel %vm2016, %v2011, %v2013
      %v2018 = vsel %vm2016, %v2013, %v2015
      %v2020 = vsel %vm456, %v2009, 0
      %v2023 = vsel %vm460, %v2017, 0
      %v2026 = vsel %vm460, %v2018, 0
      %2028 = vmatprep.subr.bf16.mxu0 %v2026
      %2029 = vmatpush1.bf16.msra.mxu0 %v2023
      %2030 = vmatprep.subr.bf16.mxu0 0
      %2031 = vmatpush1.bf16.msra.mxu0 0
      %2032 = vmatprep.subr.bf16.mxu0 0
      %2033 = vmatpush1.bf16.msra.mxu0 0
      %2034 = vmatprep.subr.bf16.mxu0 0
      %2035 = vmatpush1.bf16.msra.mxu0 0
      %2036 = vmatprep.subr.bf16.mxu0 0
      %2037 = vmatpush1.bf16.msra.mxu0 0
      %2038 = vmatprep.subr.bf16.mxu0 0
      %2039 = vmatpush1.bf16.msra.mxu0 0
      %2040 = vmatprep.subr.bf16.mxu0 0
      %2041 = vmatpush1.bf16.msra.mxu0 0
      %2042 = vmatprep.subr.bf16.mxu0 0
      %2043 = vmatpush1.bf16.msra.mxu0 0
      %2044 = vmatprep.subr.bf16.mxu0 0
      %2045 = vmatpush1.bf16.msra.mxu0 0
      %2046 = vmatprep.subr.bf16.mxu0 0
      %2047 = vmatpush1.bf16.msra.mxu0 0
      %2048 = vmatprep.subr.bf16.mxu0 0
      %2049 = vmatpush1.bf16.msra.mxu0 0
      %2050 = vmatprep.subr.bf16.mxu0 0
      %2051 = vmatpush1.bf16.msra.mxu0 0
      %2052 = vmatprep.subr.bf16.mxu0 0
      %2053 = vmatpush1.bf16.msra.mxu0 0
      %2054 = vmatprep.subr.bf16.mxu0 0
      %2055 = vmatpush1.bf16.msra.mxu0 0
      %2056 = vmatprep.subr.bf16.mxu0 0
      %2057 = vmatpush1.bf16.msra.mxu0 0
      %2058 = vmatprep.subr.bf16.mxu0 0
      %2059 = vmatpush1.bf16.msra.mxu0 0
      %2060 = vmatprep.mubr.bf16.mxu0 0
      %2061 = vmatmul.mubr.bf16.gmra.mrb[0].mxu0 %v2020
      %v2062 = vpop.f32.mrb[0].mxu0
      %v2063 = vadd.f32 0.0, %v2062
      %v2064 = vpop.f32.mrb[0].mxu0
      %v2065 = vadd.f32 0.0, %v2064
      %v2066 = vpop.f32.mrb[0].mxu0
      %v2067 = vpop.f32.mrb[0].mxu0
      %2068 = vdwg.mxu0
      %v2069 = vadd.f32 %v2006, %v2063
      %v2070 = vadd.f32 %v2007, %v2065
      %s2071 = scalar_lea.vmem %s4, 104
      %v2072 = vld [vmem:[%s2071] sm:$0xf]
      %2073 = vrot.lane.b32.xlu0 %v441, 85
      %v2074 = vpop.permute.xlu0 %2073
      %2075 = vrot.lane.b32.xlu0 %v442, 85
      %v2076 = vpop.permute.xlu0 %2075
      %2077 = vrot.lane.b32.xlu0 %v437, 85
      %v2078 = vpop.permute.xlu0 %2077
      %vm2079 = vcmask 695296
      %v2080 = vsel %vm2079, %v2074, %v2076
      %v2081 = vsel %vm2079, %v2076, %v2078
      %v2083 = vsel %vm456, %v2072, 0
      %v2086 = vsel %vm460, %v2080, 0
      %v2089 = vsel %vm460, %v2081, 0
      %2091 = vmatprep.subr.bf16.mxu0 %v2089
      %2092 = vmatpush1.bf16.msra.mxu0 %v2086
      %2093 = vmatprep.subr.bf16.mxu0 0
      %2094 = vmatpush1.bf16.msra.mxu0 0
      %2095 = vmatprep.subr.bf16.mxu0 0
      %2096 = vmatpush1.bf16.msra.mxu0 0
      %2097 = vmatprep.subr.bf16.mxu0 0
      %2098 = vmatpush1.bf16.msra.mxu0 0
      %2099 = vmatprep.subr.bf16.mxu0 0
      %2100 = vmatpush1.bf16.msra.mxu0 0
      %2101 = vmatprep.subr.bf16.mxu0 0
      %2102 = vmatpush1.bf16.msra.mxu0 0
      %2103 = vmatprep.subr.bf16.mxu0 0
      %2104 = vmatpush1.bf16.msra.mxu0 0
      %2105 = vmatprep.subr.bf16.mxu0 0
      %2106 = vmatpush1.bf16.msra.mxu0 0
      %2107 = vmatprep.subr.bf16.mxu0 0
      %2108 = vmatpush1.bf16.msra.mxu0 0
      %2109 = vmatprep.subr.bf16.mxu0 0
      %2110 = vmatpush1.bf16.msra.mxu0 0
      %2111 = vmatprep.subr.bf16.mxu0 0
      %2112 = vmatpush1.bf16.msra.mxu0 0
      %2113 = vmatprep.subr.bf16.mxu0 0
      %2114 = vmatpush1.bf16.msra.mxu0 0
      %2115 = vmatprep.subr.bf16.mxu0 0
      %2116 = vmatpush1.bf16.msra.mxu0 0
      %2117 = vmatprep.subr.bf16.mxu0 0
      %2118 = vmatpush1.bf16.msra.mxu0 0
      %2119 = vmatprep.subr.bf16.mxu0 0
      %2120 = vmatpush1.bf16.msra.mxu0 0
      %2121 = vmatprep.subr.bf16.mxu0 0
      %2122 = vmatpush1.bf16.msra.mxu0 0
      %2123 = vmatprep.mubr.bf16.mxu0 0
      %2124 = vmatmul.mubr.bf16.gmra.mrb[0].mxu0 %v2083
      %v2125 = vpop.f32.mrb[0].mxu0
      %v2126 = vadd.f32 0.0, %v2125
      %v2127 = vpop.f32.mrb[0].mxu0
      %v2128 = vadd.f32 0.0, %v2127
      %v2129 = vpop.f32.mrb[0].mxu0
      %v2130 = vpop.f32.mrb[0].mxu0
      %2131 = vdwg.mxu0
      %v2132 = vadd.f32 %v2069, %v2126
      %v2133 = vadd.f32 %v2070, %v2128
      %v2134 = vld [vmem:[%s5] sm:$0xff]
      %2136 = vset.pattern.permute.xlu0 0
      %2137 = vperm.xlu0 %2136, %v2134
      %v2138 = vpop.permute.xlu0 %2137
      %v2140 = vmul.f32 %v2132, %v2138
      %v2141 = vmul.f32 %v2133, %v2138
      %v2142 = vld [vmem:[%s6] sm:$0xff]
      %2144 = vset.pattern.permute.xlu0 0
      %2145 = vperm.xlu0 %2144, %v2142
      %v2146 = vpop.permute.xlu0 %2145
      %v2148 = vadd.f32 %v2140, %v2146
      %v2149 = vadd.f32 %v2141, %v2146
      %v2150 = vld [vmem:[%s426] sm:$0xff]
      %v2151 = vunpack.c.l.bf16 %v2150
      %v2152 = vunpack.c.h.bf16 %v2150
      %v2153 = vld [vmem:[%s7] sm:$0xff]
      %2155 = vset.pattern.permute.xlu0 0
      %2156 = vperm.xlu0 %2155, %v2153
      %v2157 = vpop.permute.xlu0 %2156
      %v2159 = vmul.f32 %v2151, %v2157
      %v2160 = vmul.f32 %v2152, %v2157
      %v2161 = vadd.f32 %v2148, %v2159
      %v2162 = vadd.f32 %v2149, %v2160
      %v2163 = vld [vmem:[%s8] sm:$0xff]
      %2165 = vset.pattern.permute.xlu0 0
      %2166 = vperm.xlu0 %2165, %v2163
      %v2167 = vpop.permute.xlu0 %2166
      %v2169 = vadd.f32 %v2161, %v2167
      %v2170 = vadd.f32 %v2162, %v2167
      %vm2171 = vcmp.gt.f32.partialorder %v2169, 0.0
      %vm2172 = vcmp.gt.f32.partialorder %v2170, 0.0
      %v2173 = vmul.f32 %v2169, 0.01
      %v2174 = vmul.f32 %v2170, 0.01
      %v2175 = vsel %vm2171, %v2169, %v2173
      %v2176 = vsel %vm2172, %v2170, %v2174
      %2177 = vst [vmem:[%s432] sm:$0xff] %v2175
      %2178 = vst [vmem:[%s432 + $0x8] sm:$0xff] %v2176
      %s2179 = smul.u32 2, %s20
      %p2180 = scmp.lt.s32.totalorder %s2179, 3
      %s2181 = scalar_select %p2180, %s2179, 3
      %s2182 = smul.addr %s2181, 8
      %s2183 = scalar_lea.vmem %s9, %s2182
      // Predicated region
      $region57: #{conv_res_block.5} parent=55 // pred_check
        %p2184 = pneg %p259
      $region58: #{conv_res_block.5} parent=55 // pred_check_branch
        %2186 = sbr.rel (%p2184) target = $region60
      $region59: #{conv_res_block.5} parent=55 // pred_region
        %s2187 = smul.u32 2, %s20
      $region60: #{conv_res_block.5} parent=55 // pred_fallthru
        _
    $region56: #{conv_res_block.5} parent=5 // pred_fallthru
      _
    %p2188 = scmp.le.s32.totalorder 2, %s15
    // Predicated region
    $region61: #{conv_res_block.5} parent=5 // pred_check
      %p2189 = pneg %p2188
    $region62: #{conv_res_block.5} parent=5 // pred_check_branch
      %2191 = sbr.rel (%p2189) target = $region64
    $region63: #{conv_res_block.5} parent=5 // pred_region
      %s2192 = ssub.s32 %s15, 2
      // Predicated region
      $region65: #{conv_res_block.5} parent=63 // pred_check
        %p2193 = pneg %p265
      $region66: #{conv_res_block.5} parent=63 // pred_check_branch
        %2195 = sbr.rel (%p2193) target = $region68
      $region67: #{conv_res_block.5} parent=63 // pred_region
        %s2196 = smul.u32 2, %s21
        %p2197 = scmp.lt.s32.totalorder %s2196, 3
        %s2198 = scalar_select %p2197, %s2196, 3
        %s2199 = smul.addr %s2198, 8
        %s2200 = scalar_lea.vmem %s9, %s2199
      $region68: #{conv_res_block.5} parent=63 // pred_fallthru
        _
    $region64: #{conv_res_block.5} parent=5 // pred_fallthru
      _
  $region6: #{conv_res_block.5} parent=0 // loop_footer
    %s19 = sadd.s32 1, %s15
  $region7: #{conv_res_block.5} parent=0 // loop_footer_branch
    %14 = sbr.rel target = $region3
  $region8: #{conv_res_block.5} parent=0 // loop_exit
    _

</llo_original>
